<compile_context>
chip_gen: v5e
topology: v5e:2x2
jax: 0.10.0
libtpu: 0.0.40
codegen_flags: <defaults>
</compile_context>

<pallas_src>
import jax
import jax.numpy as jnp
from jax.experimental import pallas as pl
from jax.experimental.pallas import tpu as pltpu


# ----------------------------------------------------------------------------
# Hardware-aware sizing helpers
# ----------------------------------------------------------------------------

def _tpu_vmem_bytes():
    """Per-core VMEM capacity; conservative 64 MiB (v7x-sized) if unknown."""
    try:
        return int(pltpu.get_tpu_info().vmem_capacity_bytes)
    except Exception:
        return 64 * 1024 * 1024


def _pick_seq_tile(S, cap=512):
    """Return (st, S_pad): seq tile (16-aligned or full-S) and padded length."""
    if S <= cap:
        return S, S                                   # single seq tile, no pad
    start = cap - (cap % 16)
    for d in range(start, 15, -16):                    # 16-aligned divisor of S
        if S % d == 0:
            return d, S
    st = start                                         # pad S up to multiple of st
    return st, ((S + st - 1) // st) * st


def _pick_batch_tile(B, st, H, vmem_bytes, need_split):
    """Streamed f32 h block stays under a generation-aware budget; bt | B."""
    big_vmem = vmem_bytes >= 100 * 1024 * 1024         # v5e / v6e (128 MiB)
    budget = (14 if big_vmem else 6) * 1024 * 1024     # bytes per h buffer
    rows_cap = max(st, budget // (4 * H))              # f32 rows that fit
    rows_cap = min(rows_cap, 2048)
    bt = max(1, min(B, rows_cap // st))
    if need_split and B >= 2:                          # keep both v7x TCs busy
        bt = min(bt, B // 2)
    while B % bt != 0:
        bt -= 1
    return bt


# ----------------------------------------------------------------------------
# Kernel
# ----------------------------------------------------------------------------

def _make_head_kernel(seq_len, padded):
    inv_s = 1.0 / float(seq_len)

    def head_kernel(h_ref, w1_ref, b1_ref, w2_ref, b2_ref, w3_ref, b3_ref,
                    out_ref, acc_ref):
        s = pl.program_id(1)

        @pl.when(s == 0)
        def _():
            acc_ref[...] = jnp.zeros_like(acc_ref)

        bt, st, hd = h_ref.shape
        # f32 streamed in, bf16 matmul operands, f32 MXU accumulation.
        h = h_ref[...].astype(jnp.bfloat16).reshape(bt * st, hd)
        x = jnp.dot(h, w1_ref[...],
                    preferred_element_type=jnp.float32) + b1_ref[...]
        x = jnp.maximum(x, 0.0).astype(jnp.bfloat16)               # ReLU [R, 512]
        x = jnp.dot(x, w2_ref[...],
                    preferred_element_type=jnp.float32) + b2_ref[...]
        x = jnp.maximum(x, 0.0).astype(jnp.bfloat16)               # ReLU [R, 512]
        x = jnp.dot(x, w3_ref[...],
                    preferred_element_type=jnp.float32) + b3_ref[...]
        x = jax.nn.sigmoid(x)                                      # [R, 128] f32
        x = x.reshape(bt, st, -1)
        if padded:
            pos = s * st + jax.lax.broadcasted_iota(jnp.int32, (bt, st, 1), 1)
            x = jnp.where(pos < seq_len, x, 0.0)                   # mask pad rows
        acc_ref[...] += jnp.sum(x, axis=1)                         # [Bt, 128]

        @pl.when(s == pl.num_programs(1) - 1)
        def _():
            out_ref[0] = acc_ref[...] * inv_s                      # mean over S

    return head_kernel


# ----------------------------------------------------------------------------
# Wrapper
# ----------------------------------------------------------------------------

def prepare_head_params(params):
    """One-time weight prep (bf16 casts, lane-pad of the 2-wide output)."""
    w1, b1, w2, b2, w3, b3 = params
    DO = w3.shape[1]
    DOP = max(128, ((DO + 127) // 128) * 128)          # keep at 128, don't widen
    w1b = w1.astype(jnp.bfloat16)
    w2b = w2.astype(jnp.bfloat16)
    w3p = jnp.zeros((w3.shape[0], DOP), jnp.float32).at[:, :DO].set(w3)
    w3p = w3p.astype(jnp.bfloat16)
    b3p = jnp.zeros((1, DOP), jnp.float32).at[:, :DO].set(b3)
    return (w1b, b1, w2b, b2, w3p, b3p, DO)


def sm_head(last_hidden_states, prepared):
    """last_hidden_states: [B, S, H] f32 -> [B, 2] f32."""
    B, S, H = last_hidden_states.shape
    w1b, b1, w2b, b2, w3p, b3p, DO = prepared
    D1 = w1b.shape[1]
    D2 = w2b.shape[1]
    DOP = w3p.shape[1]

    vmem_cap = _tpu_vmem_bytes()
    need_split = vmem_cap < 100 * 1024 * 1024          # v7x-like: 2 TCs, 64 MiB
    st, S_pad = _pick_seq_tile(S)
    padded = S_pad != S
    bt = _pick_batch_tile(B, st, H, vmem_cap, need_split)
    nb, ns = B // bt, S_pad // st

    h_in = last_hidden_states
    if padded:
        h_in = jnp.pad(h_in, ((0, 0), (0, S_pad - S), (0, 0)))

    kernel = _make_head_kernel(S, padded)

    def run(single_buffer_weights):
        w_bufs = 1 if single_buffer_weights else 2
        # Right-sized VMEM limit: 2x streamed h block + weights + acc/out + slack.
        need = (bt * st * H * 4 * 2
                + (H * D1 + D1 * D2 + D2 * DOP) * 2 * w_bufs
                + (D1 + D2 + DOP) * 4 * w_bufs
                + bt * DOP * 4 * 2
                + bt * DOP * 4
                + (4 << 20))
        vmem_limit = int(min(vmem_cap, max(need, 32 << 20)))

        def const_spec(shape):
            if single_buffer_weights:
                return pl.BlockSpec(shape, lambda b, s: (0, 0),
                                    pipeline_mode=pl.Buffered(buffer_count=1))
            return pl.BlockSpec(shape, lambda b, s: (0, 0))

        return pl.pallas_call(
            kernel,
            out_shape=jax.ShapeDtypeStruct((nb, bt, DOP), jnp.float32),
            grid_spec=pltpu.PrefetchScalarGridSpec(
                num_scalar_prefetch=0,
                grid=(nb, ns),
                in_specs=[
                    pl.BlockSpec((bt, st, H), lambda b, s: (b, s, 0)),  # streamed h (f32)
                    const_spec((H, D1)),                                # resident w1
                    const_spec((1, D1)),
                    const_spec((D1, D2)),                               # resident w2
                    const_spec((1, D2)),
                    const_spec((D2, DOP)),                              # resident w3 (padded)
                    const_spec((1, DOP)),
                ],
                out_specs=pl.BlockSpec((1, bt, DOP), lambda b, s: (b, 0, 0)),
                scratch_shapes=[pltpu.VMEM((bt, DOP), jnp.float32)],
            ),
            compiler_params=pltpu.CompilerParams(
                dimension_semantics=("parallel", "arbitrary"),
                vmem_limit_bytes=vmem_limit,
            ),
        )(h_in, w1b, b1, w2b, b2, w3p, b3p)

    try:
        out = run(single_buffer_weights=True)
    except Exception:
        # pipeline_mode not supported by this build: fall back to defaults.
        out = run(single_buffer_weights=False)

    return out.reshape(B, DOP)[:, :DO]


# ----------------------------------------------------------------------------
# Model glue (backbone stand-in, params, reference)
# ----------------------------------------------------------------------------

def make_params(key, hidden_size, initializer_range=0.02):
    k1, k2, k3 = jax.random.split(key, 3)
    w1 = jax.random.normal(k1, (hidden_size, 512), jnp.float32) * initializer_range
    b1 = jnp.zeros((1, 512), jnp.float32)
    w2 = jax.random.normal(k2, (512, 512), jnp.float32) * initializer_range
    b2 = jnp.zeros((1, 512), jnp.float32)
    w3 = jax.random.normal(k3, (512, 2), jnp.float32) * initializer_range
    b3 = jnp.zeros((1, 2), jnp.float32)
    return (w1, b1, w2, b2, w3, b3)


def backbone_stub(ids, mask, emb_table):
    # TODO(synk): stand-in for AutoModel.from_pretrained(...)(ids, mask)[0]
    h = jnp.take(emb_table, ids, axis=0)               # [B, S, H]
    return h * mask[..., None].astype(jnp.float32)     # zero out padded positions


def sm_head_reference(last_hidden_states, params):
    w1, b1, w2, b2, w3, b3 = params
    x = jnp.maximum(last_hidden_states @ w1 + b1, 0.0)
    x = jnp.maximum(x @ w2 + b2, 0.0)
    x = jax.nn.sigmoid(x @ w3 + b3)
    return jnp.mean(x, axis=1)


def sm_model_forward(ids, mask, emb_table, prepared):
    last_hidden_states = backbone_stub(ids, mask, emb_table)
    prob = sm_head(last_hidden_states, prepared)        # [B, 2]
    return jnp.squeeze(prob)                            # matches torch .squeeze()


if __name__ == "__main__":
    B, S, H, VOCAB = 2, 8, 32, 128

    key = jax.random.PRNGKey(0)
    k_ids, k_emb, k_par = jax.random.split(key, 3)

    ids = jax.random.randint(k_ids, (B, S), 0, VOCAB, dtype=jnp.int32)
    mask = jnp.ones((B, S), dtype=jnp.int32)
    emb_table = jax.random.normal(k_emb, (VOCAB, H), jnp.float32) * 0.02
    params = make_params(k_par, H)
    prepared = prepare_head_params(params)               # hoisted weight prep

    out = sm_model_forward(ids, mask, emb_table, prepared)
    out = jax.block_until_ready(out)
    assert out.shape == (B, 2), out.shape

    # loose tolerance: kernel matmuls run in bf16 with f32 accumulation
    ref = jnp.squeeze(sm_head_reference(backbone_stub(ids, mask, emb_table), params))
    assert jnp.allclose(out, ref, atol=5e-2), (out, ref)
    print("KERNEL_OK")
</pallas_src>

<mosaic_0001>
module attributes {stable_mosaic.version = 11 : i64} {
  func.func @head_kernel(%arg0: i32, %arg1: i32, %arg2: memref<1x8x32xf32, #tpu.memory_space<vmem>>, %arg3: memref<32x512xbf16, #tpu.memory_space<vmem>>, %arg4: memref<1x512xf32, #tpu.memory_space<vmem>>, %arg5: memref<512x512xbf16, #tpu.memory_space<vmem>>, %arg6: memref<1x512xf32, #tpu.memory_space<vmem>>, %arg7: memref<512x128xbf16, #tpu.memory_space<vmem>>, %arg8: memref<1x128xf32, #tpu.memory_space<vmem>>, %arg9: memref<1x1x128xf32, #tpu.memory_space<vmem>>, %arg10: memref<1x128xf32, #tpu.memory_space<vmem>>) attributes {dimension_semantics = [#tpu.dimension_semantics<parallel>, #tpu.dimension_semantics<arbitrary>], iteration_bounds = array<i64: 2, 1>, scalar_prefetch = 0 : i64, scratch_operands = 1 : i64, tpu.core_type = #tpu.core_type<tc>, window_params = [{transform_indices = @transform_0, window_bounds = array<i64: 1, 8, 32>}, {pipeline_mode = #tpu.pipeline_mode<synchronous>, transform_indices = @transform_1, window_bounds = array<i64: 32, 512>}, {pipeline_mode = #tpu.pipeline_mode<synchronous>, transform_indices = @transform_2, window_bounds = array<i64: 1, 512>}, {pipeline_mode = #tpu.pipeline_mode<synchronous>, transform_indices = @transform_3, window_bounds = array<i64: 512, 512>}, {pipeline_mode = #tpu.pipeline_mode<synchronous>, transform_indices = @transform_4, window_bounds = array<i64: 1, 512>}, {pipeline_mode = #tpu.pipeline_mode<synchronous>, transform_indices = @transform_5, window_bounds = array<i64: 512, 128>}, {pipeline_mode = #tpu.pipeline_mode<synchronous>, transform_indices = @transform_6, window_bounds = array<i64: 1, 128>}, {transform_indices = @transform_7, window_bounds = array<i64: 1, 1, 128>}]} {
    %c0_i32 = arith.constant 0 : i32
    %0 = arith.cmpi eq, %arg1, %c0_i32 : i32
    %1 = arith.extui %0 : i1 to i32
    %c0_i32_0 = arith.constant 0 : i32
    %2 = arith.cmpi ne, %1, %c0_i32_0 : i32
    scf.if %2 {
      %cst_27 = arith.constant 0.000000e+00 : f32
      %40 = vector.broadcast %cst_27 : f32 to vector<1x128xf32>
      %c0_28 = arith.constant 0 : index
      %c0_29 = arith.constant 0 : index
      %41 = vector.load %arg10[%c0_28, %c0_29] : memref<1x128xf32, #tpu.memory_space<vmem>>, vector<1x128xf32>
      tpu.vector_store %arg10[%c0_28, %c0_29], %40 {strides = array<i32>} : memref<1x128xf32, #tpu.memory_space<vmem>>, vector<1x128xf32>,
    } else {
    }
    %c0 = arith.constant 0 : index
    %c0_1 = arith.constant 0 : index
    %c0_2 = arith.constant 0 : index
    %3 = vector.load %arg2[%c0, %c0_1, %c0_2] : memref<1x8x32xf32, #tpu.memory_space<vmem>>, vector<1x8x32xf32>
    %4 = arith.truncf %3 : vector<1x8x32xf32> to vector<1x8x32xbf16>
    %5 = vector.shape_cast %4 : vector<1x8x32xbf16> to vector<8x32xbf16>
    %c0_3 = arith.constant 0 : index
    %c0_4 = arith.constant 0 : index
    %6 = vector.load %arg3[%c0_3, %c0_4] : memref<32x512xbf16, #tpu.memory_space<vmem>>, vector<32x512xbf16>
    %cst = arith.constant dense<0.000000e+00> : vector<8x512xf32>
    %7 = tpu.matmul %5, %6, %cst {dimension_numbers = #tpu.dot_dimension_numbers<[1], [0], [0], [1], [0, 0, 1, 1], [], []>} : vector<8x32xbf16>, vector<32x512xbf16>, vector<8x512xf32> -> vector<8x512xf32>
    %c0_5 = arith.constant 0 : index
    %c0_6 = arith.constant 0 : index
    %8 = vector.load %arg4[%c0_5, %c0_6] : memref<1x512xf32, #tpu.memory_space<vmem>>, vector<1x512xf32>
    %9 = vector.broadcast %8 : vector<1x512xf32> to vector<8x512xf32>
    %10 = arith.addf %7, %9 : vector<8x512xf32>
    %cst_7 = arith.constant 0.000000e+00 : f32
    %11 = vector.broadcast %cst_7 : f32 to vector<8x512xf32>
    %12 = arith.maximumf %10, %11 : vector<8x512xf32>
    %13 = arith.truncf %12 : vector<8x512xf32> to vector<8x512xbf16>
    %c0_8 = arith.constant 0 : index
    %c0_9 = arith.constant 0 : index
    %14 = vector.load %arg5[%c0_8, %c0_9] : memref<512x512xbf16, #tpu.memory_space<vmem>>, vector<512x512xbf16>
    %cst_10 = arith.constant dense<0.000000e+00> : vector<8x512xf32>
    %15 = tpu.matmul %13, %14, %cst_10 {dimension_numbers = #tpu.dot_dimension_numbers<[1], [0], [0], [1], [0, 0, 1, 1], [], []>} : vector<8x512xbf16>, vector<512x512xbf16>, vector<8x512xf32> -> vector<8x512xf32>
    %c0_11 = arith.constant 0 : index
    %c0_12 = arith.constant 0 : index
    %16 = vector.load %arg6[%c0_11, %c0_12] : memref<1x512xf32, #tpu.memory_space<vmem>>, vector<1x512xf32>
    %17 = vector.broadcast %16 : vector<1x512xf32> to vector<8x512xf32>
    %18 = arith.addf %15, %17 : vector<8x512xf32>
    %cst_13 = arith.constant 0.000000e+00 : f32
    %19 = vector.broadcast %cst_13 : f32 to vector<8x512xf32>
    %20 = arith.maximumf %18, %19 : vector<8x512xf32>
    %21 = arith.truncf %20 : vector<8x512xf32> to vector<8x512xbf16>
    %c0_14 = arith.constant 0 : index
    %c0_15 = arith.constant 0 : index
    %22 = vector.load %arg7[%c0_14, %c0_15] : memref<512x128xbf16, #tpu.memory_space<vmem>>, vector<512x128xbf16>
    %cst_16 = arith.constant dense<0.000000e+00> : vector<8x128xf32>
    %23 = tpu.matmul %21, %22, %cst_16 {dimension_numbers = #tpu.dot_dimension_numbers<[1], [0], [0], [1], [0, 0, 1, 1], [], []>} : vector<8x512xbf16>, vector<512x128xbf16>, vector<8x128xf32> -> vector<8x128xf32>
    %c0_17 = arith.constant 0 : index
    %c0_18 = arith.constant 0 : index
    %24 = vector.load %arg8[%c0_17, %c0_18] : memref<1x128xf32, #tpu.memory_space<vmem>>, vector<1x128xf32>
    %25 = vector.broadcast %24 : vector<1x128xf32> to vector<8x128xf32>
    %26 = arith.addf %23, %25 : vector<8x128xf32>
    %27 = arith.negf %26 : vector<8x128xf32>
    %28 = math.exp %27 : vector<8x128xf32>
    %cst_19 = arith.constant 1.000000e+00 : f32
    %29 = vector.broadcast %cst_19 : f32 to vector<8x128xf32>
    %30 = arith.addf %29, %28 : vector<8x128xf32>
    %31 = arith.divf %29, %30 : vector<8x128xf32>
    %32 = vector.shape_cast %31 : vector<8x128xf32> to vector<1x8x128xf32>
    %c0_20 = arith.constant 0 : index
    %c0_21 = arith.constant 0 : index
    %33 = vector.load %arg10[%c0_20, %c0_21] : memref<1x128xf32, #tpu.memory_space<vmem>>, vector<1x128xf32>
    %cst_22 = arith.constant dense<0.000000e+00> : vector<1x128xf32>
    %34 = vector.multi_reduction <add>, %32, %cst_22 [1] : vector<1x8x128xf32> to vector<1x128xf32>
    %35 = arith.addf %33, %34 : vector<1x128xf32>
    %c0_23 = arith.constant 0 : index
    %c0_24 = arith.constant 0 : index
    %36 = vector.load %arg10[%c0_23, %c0_24] : memref<1x128xf32, #tpu.memory_space<vmem>>, vector<1x128xf32>
    tpu.vector_store %arg10[%c0_23, %c0_24], %35 {strides = array<i32>} : memref<1x128xf32, #tpu.memory_space<vmem>>, vector<1x128xf32>,
    %c0_i32_25 = arith.constant 0 : i32
    %37 = arith.cmpi eq, %arg1, %c0_i32_25 : i32
    %38 = arith.extui %37 : i1 to i32
    %c0_i32_26 = arith.constant 0 : i32
    %39 = arith.cmpi ne, %38, %c0_i32_26 : i32
    scf.if %39 {
      %c0_27 = arith.constant 0 : index
      %c0_28 = arith.constant 0 : index
      %40 = vector.load %arg10[%c0_27, %c0_28] : memref<1x128xf32, #tpu.memory_space<vmem>>, vector<1x128xf32>
      %cst_29 = arith.constant 1.250000e-01 : f32
      %41 = vector.broadcast %cst_29 : f32 to vector<1x128xf32>
      %42 = arith.mulf %40, %41 : vector<1x128xf32>
      %c0_30 = arith.constant 0 : index
      %c0_31 = arith.constant 0 : index
      %c0_32 = arith.constant 0 : index
      %43 = vector.load %arg9[%c0_30, %c0_31, %c0_32] : memref<1x1x128xf32, #tpu.memory_space<vmem>>, vector<1x1x128xf32>
      %44 = vector.shape_cast %43 : vector<1x1x128xf32> to vector<1x128xf32>
      %45 = vector.shape_cast %42 : vector<1x128xf32> to vector<1x1x128xf32>
      tpu.vector_store %arg9[%c0_30, %c0_31, %c0_32], %45 {strides = array<i32>} : memref<1x1x128xf32, #tpu.memory_space<vmem>>, vector<1x1x128xf32>,
    } else {
    }
    return
  }
  func.func @transform_0(%arg0: i32, %arg1: i32) -> (i32, i32, i32) {
    %c0_i32 = arith.constant 0 : i32
    %c0_i32_0 = arith.constant 0 : i32
    return %arg0, %arg1, %c0_i32 : i32, i32, i32
  }
  func.func @transform_1(%arg0: i32, %arg1: i32) -> (i32, i32) {
    %c0_i32 = arith.constant 0 : i32
    %c0_i32_0 = arith.constant 0 : i32
    %c0_i32_1 = arith.constant 0 : i32
    return %c0_i32, %c0_i32_0 : i32, i32
  }
  func.func @transform_2(%arg0: i32, %arg1: i32) -> (i32, i32) {
    %c0_i32 = arith.constant 0 : i32
    %c0_i32_0 = arith.constant 0 : i32
    %c0_i32_1 = arith.constant 0 : i32
    return %c0_i32, %c0_i32_0 : i32, i32
  }
  func.func @transform_3(%arg0: i32, %arg1: i32) -> (i32, i32) {
    %c0_i32 = arith.constant 0 : i32
    %c0_i32_0 = arith.constant 0 : i32
    %c0_i32_1 = arith.constant 0 : i32
    return %c0_i32, %c0_i32_0 : i32, i32
  }
  func.func @transform_4(%arg0: i32, %arg1: i32) -> (i32, i32) {
    %c0_i32 = arith.constant 0 : i32
    %c0_i32_0 = arith.constant 0 : i32
    %c0_i32_1 = arith.constant 0 : i32
    return %c0_i32, %c0_i32_0 : i32, i32
  }
  func.func @transform_5(%arg0: i32, %arg1: i32) -> (i32, i32) {
    %c0_i32 = arith.constant 0 : i32
    %c0_i32_0 = arith.constant 0 : i32
    %c0_i32_1 = arith.constant 0 : i32
    return %c0_i32, %c0_i32_0 : i32, i32
  }
  func.func @transform_6(%arg0: i32, %arg1: i32) -> (i32, i32) {
    %c0_i32 = arith.constant 0 : i32
    %c0_i32_0 = arith.constant 0 : i32
    %c0_i32_1 = arith.constant 0 : i32
    return %c0_i32, %c0_i32_0 : i32, i32
  }
  func.func @transform_7(%arg0: i32, %arg1: i32) -> (i32, i32, i32) {
    %c0_i32 = arith.constant 0 : i32
    %c0_i32_0 = arith.constant 0 : i32
    %c0_i32_1 = arith.constant 0 : i32
    return %arg0, %c0_i32, %c0_i32_0 : i32, i32, i32
  }
}

module attributes {stable_mosaic.version = 11 : i64} {
  func.func @head_kernel(%arg0: i32, %arg1: i32, %arg2: memref<1x8x32xf32, #tpu.memory_space<vmem>>, %arg3: memref<32x512xbf16, #tpu.memory_space<vmem>>, %arg4: memref<1x512xf32, #tpu.memory_space<vmem>>, %arg5: memref<512x512xbf16, #tpu.memory_space<vmem>>, %arg6: memref<1x512xf32, #tpu.memory_space<vmem>>, %arg7: memref<512x128xbf16, #tpu.memory_space<vmem>>, %arg8: memref<1x128xf32, #tpu.memory_space<vmem>>, %arg9: memref<1x1x128xf32, #tpu.memory_space<vmem>>, %arg10: memref<1x128xf32, #tpu.memory_space<vmem>>) attributes {dimension_semantics = [#tpu.dimension_semantics<parallel>, #tpu.dimension_semantics<arbitrary>], iteration_bounds = array<i64: 2, 1>, scalar_prefetch = 0 : i64, scratch_operands = 1 : i64, tpu.core_type = #tpu.core_type<tc>, window_params = [{transform_indices = @transform_0, window_bounds = array<i64: 1, 8, 32>}, {pipeline_mode = #tpu.pipeline_mode<synchronous>, transform_indices = @transform_1, window_bounds = array<i64: 32, 512>}, {pipeline_mode = #tpu.pipeline_mode<synchronous>, transform_indices = @transform_2, window_bounds = array<i64: 1, 512>}, {pipeline_mode = #tpu.pipeline_mode<synchronous>, transform_indices = @transform_3, window_bounds = array<i64: 512, 512>}, {pipeline_mode = #tpu.pipeline_mode<synchronous>, transform_indices = @transform_4, window_bounds = array<i64: 1, 512>}, {pipeline_mode = #tpu.pipeline_mode<synchronous>, transform_indices = @transform_5, window_bounds = array<i64: 512, 128>}, {pipeline_mode = #tpu.pipeline_mode<synchronous>, transform_indices = @transform_6, window_bounds = array<i64: 1, 128>}, {transform_indices = @transform_7, window_bounds = array<i64: 1, 1, 128>}]} {
    %c0_i32 = arith.constant 0 : i32
    %0 = arith.cmpi eq, %arg1, %c0_i32 : i32
    %1 = arith.extui %0 : i1 to i32
    %c0_i32_0 = arith.constant 0 : i32
    %2 = arith.cmpi ne, %1, %c0_i32_0 : i32
    scf.if %2 {
      %cst_27 = arith.constant 0.000000e+00 : f32
      %40 = vector.broadcast %cst_27 : f32 to vector<1x128xf32>
      %c0_28 = arith.constant 0 : index
      %c0_29 = arith.constant 0 : index
      %41 = vector.load %arg10[%c0_28, %c0_29] : memref<1x128xf32, #tpu.memory_space<vmem>>, vector<1x128xf32>
      tpu.vector_store %arg10[%c0_28, %c0_29], %40 {strides = array<i32>} : memref<1x128xf32, #tpu.memory_space<vmem>>, vector<1x128xf32>,
    } else {
    }
    %c0 = arith.constant 0 : index
    %c0_1 = arith.constant 0 : index
    %c0_2 = arith.constant 0 : index
    %3 = vector.load %arg2[%c0, %c0_1, %c0_2] : memref<1x8x32xf32, #tpu.memory_space<vmem>>, vector<1x8x32xf32>
    %4 = arith.truncf %3 : vector<1x8x32xf32> to vector<1x8x32xbf16>
    %5 = vector.shape_cast %4 : vector<1x8x32xbf16> to vector<8x32xbf16>
    %c0_3 = arith.constant 0 : index
    %c0_4 = arith.constant 0 : index
    %6 = vector.load %arg3[%c0_3, %c0_4] : memref<32x512xbf16, #tpu.memory_space<vmem>>, vector<32x512xbf16>
    %cst = arith.constant dense<0.000000e+00> : vector<8x512xf32>
    %7 = tpu.matmul %5, %6, %cst {dimension_numbers = #tpu.dot_dimension_numbers<[1], [0], [0], [1], [0, 0, 1, 1], [], []>} : vector<8x32xbf16>, vector<32x512xbf16>, vector<8x512xf32> -> vector<8x512xf32>
    %c0_5 = arith.constant 0 : index
    %c0_6 = arith.constant 0 : index
    %8 = vector.load %arg4[%c0_5, %c0_6] : memref<1x512xf32, #tpu.memory_space<vmem>>, vector<1x512xf32>
    %9 = vector.broadcast %8 : vector<1x512xf32> to vector<8x512xf32>
    %10 = arith.addf %7, %9 : vector<8x512xf32>
    %cst_7 = arith.constant 0.000000e+00 : f32
    %11 = vector.broadcast %cst_7 : f32 to vector<8x512xf32>
    %12 = arith.maximumf %10, %11 : vector<8x512xf32>
    %13 = arith.truncf %12 : vector<8x512xf32> to vector<8x512xbf16>
    %c0_8 = arith.constant 0 : index
    %c0_9 = arith.constant 0 : index
    %14 = vector.load %arg5[%c0_8, %c0_9] : memref<512x512xbf16, #tpu.memory_space<vmem>>, vector<512x512xbf16>
    %cst_10 = arith.constant dense<0.000000e+00> : vector<8x512xf32>
    %15 = tpu.matmul %13, %14, %cst_10 {dimension_numbers = #tpu.dot_dimension_numbers<[1], [0], [0], [1], [0, 0, 1, 1], [], []>} : vector<8x512xbf16>, vector<512x512xbf16>, vector<8x512xf32> -> vector<8x512xf32>
    %c0_11 = arith.constant 0 : index
    %c0_12 = arith.constant 0 : index
    %16 = vector.load %arg6[%c0_11, %c0_12] : memref<1x512xf32, #tpu.memory_space<vmem>>, vector<1x512xf32>
    %17 = vector.broadcast %16 : vector<1x512xf32> to vector<8x512xf32>
    %18 = arith.addf %15, %17 : vector<8x512xf32>
    %cst_13 = arith.constant 0.000000e+00 : f32
    %19 = vector.broadcast %cst_13 : f32 to vector<8x512xf32>
    %20 = arith.maximumf %18, %19 : vector<8x512xf32>
    %21 = arith.truncf %20 : vector<8x512xf32> to vector<8x512xbf16>
    %c0_14 = arith.constant 0 : index
    %c0_15 = arith.constant 0 : index
    %22 = vector.load %arg7[%c0_14, %c0_15] : memref<512x128xbf16, #tpu.memory_space<vmem>>, vector<512x128xbf16>
    %cst_16 = arith.constant dense<0.000000e+00> : vector<8x128xf32>
    %23 = tpu.matmul %21, %22, %cst_16 {dimension_numbers = #tpu.dot_dimension_numbers<[1], [0], [0], [1], [0, 0, 1, 1], [], []>} : vector<8x512xbf16>, vector<512x128xbf16>, vector<8x128xf32> -> vector<8x128xf32>
    %c0_17 = arith.constant 0 : index
    %c0_18 = arith.constant 0 : index
    %24 = vector.load %arg8[%c0_17, %c0_18] : memref<1x128xf32, #tpu.memory_space<vmem>>, vector<1x128xf32>
    %25 = vector.broadcast %24 : vector<1x128xf32> to vector<8x128xf32>
    %26 = arith.addf %23, %25 : vector<8x128xf32>
    %27 = arith.negf %26 : vector<8x128xf32>
    %28 = math.exp %27 : vector<8x128xf32>
    %cst_19 = arith.constant 1.000000e+00 : f32
    %29 = vector.broadcast %cst_19 : f32 to vector<8x128xf32>
    %30 = arith.addf %29, %28 : vector<8x128xf32>
    %31 = arith.divf %29, %30 : vector<8x128xf32>
    %32 = vector.shape_cast %31 : vector<8x128xf32> to vector<1x8x128xf32>
    %c0_20 = arith.constant 0 : index
    %c0_21 = arith.constant 0 : index
    %33 = vector.load %arg10[%c0_20, %c0_21] : memref<1x128xf32, #tpu.memory_space<vmem>>, vector<1x128xf32>
    %cst_22 = arith.constant dense<0.000000e+00> : vector<1x128xf32>
    %34 = vector.multi_reduction <add>, %32, %cst_22 [1] : vector<1x8x128xf32> to vector<1x128xf32>
    %35 = arith.addf %33, %34 : vector<1x128xf32>
    %c0_23 = arith.constant 0 : index
    %c0_24 = arith.constant 0 : index
    %36 = vector.load %arg10[%c0_23, %c0_24] : memref<1x128xf32, #tpu.memory_space<vmem>>, vector<1x128xf32>
    tpu.vector_store %arg10[%c0_23, %c0_24], %35 {strides = array<i32>} : memref<1x128xf32, #tpu.memory_space<vmem>>, vector<1x128xf32>,
    %c0_i32_25 = arith.constant 0 : i32
    %37 = arith.cmpi eq, %arg1, %c0_i32_25 : i32
    %38 = arith.extui %37 : i1 to i32
    %c0_i32_26 = arith.constant 0 : i32
    %39 = arith.cmpi ne, %38, %c0_i32_26 : i32
    scf.if %39 {
      %c0_27 = arith.constant 0 : index
      %c0_28 = arith.constant 0 : index
      %40 = vector.load %arg10[%c0_27, %c0_28] : memref<1x128xf32, #tpu.memory_space<vmem>>, vector<1x128xf32>
      %cst_29 = arith.constant 1.250000e-01 : f32
      %41 = vector.broadcast %cst_29 : f32 to vector<1x128xf32>
      %42 = arith.mulf %40, %41 : vector<1x128xf32>
      %c0_30 = arith.constant 0 : index
      %c0_31 = arith.constant 0 : index
      %c0_32 = arith.constant 0 : index
      %43 = vector.load %arg9[%c0_30, %c0_31, %c0_32] : memref<1x1x128xf32, #tpu.memory_space<vmem>>, vector<1x1x128xf32>
      %44 = vector.shape_cast %43 : vector<1x1x128xf32> to vector<1x128xf32>
      %45 = vector.shape_cast %42 : vector<1x128xf32> to vector<1x1x128xf32>
      tpu.vector_store %arg9[%c0_30, %c0_31, %c0_32], %45 {strides = array<i32>} : memref<1x1x128xf32, #tpu.memory_space<vmem>>, vector<1x1x128xf32>,
    } else {
    }
    return
  }
  func.func @transform_0(%arg0: i32, %arg1: i32) -> (i32, i32, i32) {
    %c0_i32 = arith.constant 0 : i32
    %c0_i32_0 = arith.constant 0 : i32
    return %arg0, %arg1, %c0_i32 : i32, i32, i32
  }
  func.func @transform_1(%arg0: i32, %arg1: i32) -> (i32, i32) {
    %c0_i32 = arith.constant 0 : i32
    %c0_i32_0 = arith.constant 0 : i32
    %c0_i32_1 = arith.constant 0 : i32
    return %c0_i32, %c0_i32_0 : i32, i32
  }
  func.func @transform_2(%arg0: i32, %arg1: i32) -> (i32, i32) {
    %c0_i32 = arith.constant 0 : i32
    %c0_i32_0 = arith.constant 0 : i32
    %c0_i32_1 = arith.constant 0 : i32
    return %c0_i32, %c0_i32_0 : i32, i32
  }
  func.func @transform_3(%arg0: i32, %arg1: i32) -> (i32, i32) {
    %c0_i32 = arith.constant 0 : i32
    %c0_i32_0 = arith.constant 0 : i32
    %c0_i32_1 = arith.constant 0 : i32
    return %c0_i32, %c0_i32_0 : i32, i32
  }
  func.func @transform_4(%arg0: i32, %arg1: i32) -> (i32, i32) {
    %c0_i32 = arith.constant 0 : i32
    %c0_i32_0 = arith.constant 0 : i32
    %c0_i32_1 = arith.constant 0 : i32
    return %c0_i32, %c0_i32_0 : i32, i32
  }
  func.func @transform_5(%arg0: i32, %arg1: i32) -> (i32, i32) {
    %c0_i32 = arith.constant 0 : i32
    %c0_i32_0 = arith.constant 0 : i32
    %c0_i32_1 = arith.constant 0 : i32
    return %c0_i32, %c0_i32_0 : i32, i32
  }
  func.func @transform_6(%arg0: i32, %arg1: i32) -> (i32, i32) {
    %c0_i32 = arith.constant 0 : i32
    %c0_i32_0 = arith.constant 0 : i32
    %c0_i32_1 = arith.constant 0 : i32
    return %c0_i32, %c0_i32_0 : i32, i32
  }
  func.func @transform_7(%arg0: i32, %arg1: i32) -> (i32, i32, i32) {
    %c0_i32 = arith.constant 0 : i32
    %c0_i32_0 = arith.constant 0 : i32
    %c0_i32_1 = arith.constant 0 : i32
    return %arg0, %c0_i32, %c0_i32_0 : i32, i32, i32
  }
}

</mosaic_0001>

<llo_original>
// kernel: tpu_custom_call.1
$region0: #{tpu_custom_call.1}
  #allocation0 [shape = 'u32[]', space=smem, size = 0x4, offset = 0x4, fixed_abs, tag = 'smem constant byte address 0x4 - core index']
  #allocation1 [shape = 'u32[72,128]{1,0:T(1,128)}', space=vmem, size = 0x9000, scoped, tag = 'internal scratch']
  #allocation2 [shape = 'f32[1,128]{1,0:T(1,128)}', space=vmem, size = 0x200, scoped, tag = 'scratch operand']
  %s0 = inlined_call_operand.hbm [shape: f32[2,8,32], index: 0, kind: input, shape index: {}]
  %s1 = inlined_call_operand.hbm [shape: bf16[32,512], index: 1, kind: input, shape index: {}]
  %s2 = inlined_call_operand.hbm [shape: f32[1,512], index: 2, kind: input, shape index: {}]
  %s3 = inlined_call_operand.hbm [shape: bf16[512,512], index: 3, kind: input, shape index: {}]
  %s4 = inlined_call_operand.hbm [shape: f32[1,512], index: 4, kind: input, shape index: {}]
  %s5 = inlined_call_operand.hbm [shape: bf16[512,128], index: 5, kind: input, shape index: {}]
  %s6 = inlined_call_operand.vmem [shape: f32[1,128], index: 6, kind: input, shape index: {}]
  %s7 = inlined_call_operand.hbm [shape: f32[2,1,128], index: 7, kind: output, shape index: {}]
  %s8 = sld [smem:[#allocation0]]
  $region93: #{tpu_custom_call.1} parent=0
    _
  %s10 = ssub.s32 1, %s8
  %s11 = scalar_select 0, %s10, %s8
  $region1: #{tpu_custom_call.1} parent=0
    #allocation3 [shape = 'u8[8192]{0}', space=vmem, size = 0x2000, scoped, tag = 'input window, operand 0']
    #allocation4 [shape = 's32[2]{0}', space=sflag, size = 0x8, scoped, tag = 'scoped memory for tpu_custom_call.1']
    #allocation5 [shape = 's32[2]{0}', space=sflag, size = 0x8, scoped, tag = 'scoped memory for tpu_custom_call.1']
    #allocation6 [shape = 'u8[32768]{0}', space=vmem, size = 0x8000, scoped, tag = 'input window, operand 1, single buffered']
    #allocation7 [shape = 's32[1]{0}', space=sflag, size = 0x4, scoped, tag = 'scoped memory for tpu_custom_call.1']
    #allocation8 [shape = 'u8[2048]{0}', space=vmem, size = 0x800, scoped, tag = 'input window, operand 2, single buffered']
    #allocation9 [shape = 'u8[524288]{0}', space=vmem, size = 0x80000, scoped, tag = 'input window, operand 3, single buffered']
    #allocation10 [shape = 's32[1]{0}', space=sflag, size = 0x4, scoped, tag = 'scoped memory for tpu_custom_call.1']
    #allocation11 [shape = 'u8[2048]{0}', space=vmem, size = 0x800, scoped, tag = 'input window, operand 4, single buffered']
    #allocation12 [shape = 'u8[131072]{0}', space=vmem, size = 0x20000, scoped, tag = 'input window, operand 5, single buffered']
    #allocation13 [shape = 's32[1]{0}', space=sflag, size = 0x4, scoped, tag = 'scoped memory for tpu_custom_call.1']
    #allocation14 [shape = 'u8[1024]{0}', space=vmem, size = 0x400, scoped, tag = 'output window, operand 0']
    %12 = vsyncpa [#allocation4], 0
    %s13 = scalar_lea.sflag [#allocation4], 1
    %14 = vsyncpa %s13, 0
    %15 = vsyncpa [#allocation7], 0
    %16 = vsyncpa [#allocation10], 0
    %17 = vsyncpa [#allocation13], 0
    %18 = vsyncpa [#allocation5], 0
    %s19 = scalar_lea.sflag [#allocation5], 1
    %20 = vsyncpa %s19, 0
    loop: start=0, step=1, limit=4
    $region2: #{tpu_custom_call.1} parent=1 // loop_pre_header
      _
    $region3: #{tpu_custom_call.1} parent=1 // loop_header
      %s22 = sphi 0, %s26
      %p23 = scmp.ge.s32.totalorder %s22, 4
      %s29 = sphi 0, %s41
      %s30 = sphi 0, %s37
      %s31 = sphi 0, %s29
      %s32 = sphi 0, %s30
      %s33 = sphi 0, %s31
      %s34 = sphi 0, %s32
      %s46 = sphi 0, %s48
      %s49 = sphi 0, %s46
      %s50 = sphi 0, %s49
      %s66 = sphi 0, %s50
      %s70 = sphi 0, %s70
      %s72 = sphi 0, %s70
      %s73 = sphi 0, %s72
      %s87 = sphi 0, %s73
      %s91 = sphi 0, %s91
      %s93 = sphi 0, %s91
      %s94 = sphi 0, %s93
      %s108 = sphi 0, %s94
      %s112 = sphi 0, %s112
      %s114 = sphi 0, %s112
      %s115 = sphi 0, %s114
      %s129 = sphi 0, %s115
      %s133 = sphi 0, %s133
      %s135 = sphi 0, %s133
      %s136 = sphi 0, %s135
      %s150 = sphi 0, %s136
      %s154 = sphi 0, %s154
      %s156 = sphi 0, %s154
      %s157 = sphi 0, %s156
      %s171 = sphi 0, %s157
      %s175 = sphi 0, %s175
      %s177 = sphi 0, %s175
      %s178 = sphi 0, %s177
      %s192 = sphi 0, %s178
      %s198 = sphi 0, %s200
      %s201 = sphi 0, %s198
      %s202 = sphi 0, %s201
      %s218 = sphi 0, %s202
    $region4: #{tpu_custom_call.1} parent=1 // loop_header_branch
      %25 = sbr.rel (%p23) target = $region8
    $region5: #{tpu_custom_call.1} parent=1 // loop_body
      %s27 = ssub.s32 %s22, 1
      %s28 = ssub.s32 %s22, 2
      %s35 = sadd.s32 1, %s30
      %p36 = scmp.ge.s32.totalorder %s35, 1
      %s37 = scalar_select %p36, 0, %s35
      %s38 = sadd.s32 1, %s29
      %s39 = scalar_select %p36, %s38, %s29
      %p40 = scmp.ge.s32.totalorder %s39, 2
      %s41 = scalar_select %p40, 0, %s39
      %s42 = ssub.s32 %s29, %s41
      %s43 = ssub.s32 %s30, %s37
      %s44 = sor.u32 %s42, %s43
      %p45 = scmp.eq.s32.totalorder %s44, 0
      %s47 = sadd.s32 %s46, 1
      %s48 = scalar_select %p45, %s46, %s47
      %p51 = pneg %p45
      %p52 = scmp.eq.s32.totalorder %s22, 1
      %p53 = por %p51, %p52
      %p54 = scmp.ne.s32.totalorder %s46, %s49
      %p55 = scmp.eq.s32.totalorder %s22, 0
      %p56 = por %p54, %p55
      %p57 = scmp.ne.s32.totalorder %s46, %s49
      %p58 = scmp.eq.s32.totalorder %s27, 1
      %p59 = por %p57, %p58
      %p60 = scmp.ne.s32.totalorder %s49, %s50
      %p61 = scmp.eq.s32.totalorder %s27, 0
      %p62 = por %p60, %p61
      %p63 = scmp.ne.s32.totalorder %s49, %s50
      %p64 = scmp.eq.s32.totalorder %s28, 1
      %p65 = por %p63, %p64
      %p67 = scmp.ne.s32.totalorder %s50, %s66
      %p68 = scmp.eq.s32.totalorder %s28, 0
      %p69 = por %p67, %p68
      %s71 = sadd.s32 %s70, 1
      %p74 = scmp.eq.s32.totalorder %s22, 1
      %p75 = scmp.ne.s32.totalorder %s70, %s72
      %p76 = scmp.eq.s32.totalorder %s22, 0
      %p77 = por %p75, %p76
      %p78 = scmp.ne.s32.totalorder %s70, %s72
      %p79 = scmp.eq.s32.totalorder %s27, 1
      %p80 = por %p78, %p79
      %p81 = scmp.ne.s32.totalorder %s72, %s73
      %p82 = scmp.eq.s32.totalorder %s27, 0
      %p83 = por %p81, %p82
      %p84 = scmp.ne.s32.totalorder %s72, %s73
      %p85 = scmp.eq.s32.totalorder %s28, 1
      %p86 = por %p84, %p85
      %p88 = scmp.ne.s32.totalorder %s73, %s87
      %p89 = scmp.eq.s32.totalorder %s28, 0
      %p90 = por %p88, %p89
      %s92 = sadd.s32 %s91, 1
      %p95 = scmp.eq.s32.totalorder %s22, 1
      %p96 = scmp.ne.s32.totalorder %s91, %s93
      %p97 = scmp.eq.s32.totalorder %s22, 0
      %p98 = por %p96, %p97
      %p99 = scmp.ne.s32.totalorder %s91, %s93
      %p100 = scmp.eq.s32.totalorder %s27, 1
      %p101 = por %p99, %p100
      %p102 = scmp.ne.s32.totalorder %s93, %s94
      %p103 = scmp.eq.s32.totalorder %s27, 0
      %p104 = por %p102, %p103
      %p105 = scmp.ne.s32.totalorder %s93, %s94
      %p106 = scmp.eq.s32.totalorder %s28, 1
      %p107 = por %p105, %p106
      %p109 = scmp.ne.s32.totalorder %s94, %s108
      %p110 = scmp.eq.s32.totalorder %s28, 0
      %p111 = por %p109, %p110
      %s113 = sadd.s32 %s112, 1
      %p116 = scmp.eq.s32.totalorder %s22, 1
      %p117 = scmp.ne.s32.totalorder %s112, %s114
      %p118 = scmp.eq.s32.totalorder %s22, 0
      %p119 = por %p117, %p118
      %p120 = scmp.ne.s32.totalorder %s112, %s114
      %p121 = scmp.eq.s32.totalorder %s27, 1
      %p122 = por %p120, %p121
      %p123 = scmp.ne.s32.totalorder %s114, %s115
      %p124 = scmp.eq.s32.totalorder %s27, 0
      %p125 = por %p123, %p124
      %p126 = scmp.ne.s32.totalorder %s114, %s115
      %p127 = scmp.eq.s32.totalorder %s28, 1
      %p128 = por %p126, %p127
      %p130 = scmp.ne.s32.totalorder %s115, %s129
      %p131 = scmp.eq.s32.totalorder %s28, 0
      %p132 = por %p130, %p131
      %s134 = sadd.s32 %s133, 1
      %p137 = scmp.eq.s32.totalorder %s22, 1
      %p138 = scmp.ne.s32.totalorder %s133, %s135
      %p139 = scmp.eq.s32.totalorder %s22, 0
      %p140 = por %p138, %p139
      %p141 = scmp.ne.s32.totalorder %s133, %s135
      %p142 = scmp.eq.s32.totalorder %s27, 1
      %p143 = por %p141, %p142
      %p144 = scmp.ne.s32.totalorder %s135, %s136
      %p145 = scmp.eq.s32.totalorder %s27, 0
      %p146 = por %p144, %p145
      %p147 = scmp.ne.s32.totalorder %s135, %s136
      %p148 = scmp.eq.s32.totalorder %s28, 1
      %p149 = por %p147, %p148
      %p151 = scmp.ne.s32.totalorder %s136, %s150
      %p152 = scmp.eq.s32.totalorder %s28, 0
      %p153 = por %p151, %p152
      %s155 = sadd.s32 %s154, 1
      %p158 = scmp.eq.s32.totalorder %s22, 1
      %p159 = scmp.ne.s32.totalorder %s154, %s156
      %p160 = scmp.eq.s32.totalorder %s22, 0
      %p161 = por %p159, %p160
      %p162 = scmp.ne.s32.totalorder %s154, %s156
      %p163 = scmp.eq.s32.totalorder %s27, 1
      %p164 = por %p162, %p163
      %p165 = scmp.ne.s32.totalorder %s156, %s157
      %p166 = scmp.eq.s32.totalorder %s27, 0
      %p167 = por %p165, %p166
      %p168 = scmp.ne.s32.totalorder %s156, %s157
      %p169 = scmp.eq.s32.totalorder %s28, 1
      %p170 = por %p168, %p169
      %p172 = scmp.ne.s32.totalorder %s157, %s171
      %p173 = scmp.eq.s32.totalorder %s28, 0
      %p174 = por %p172, %p173
      %s176 = sadd.s32 %s175, 1
      %p179 = scmp.eq.s32.totalorder %s22, 1
      %p180 = scmp.ne.s32.totalorder %s175, %s177
      %p181 = scmp.eq.s32.totalorder %s22, 0
      %p182 = por %p180, %p181
      %p183 = scmp.ne.s32.totalorder %s175, %s177
      %p184 = scmp.eq.s32.totalorder %s27, 1
      %p185 = por %p183, %p184
      %p186 = scmp.ne.s32.totalorder %s177, %s178
      %p187 = scmp.eq.s32.totalorder %s27, 0
      %p188 = por %p186, %p187
      %p189 = scmp.ne.s32.totalorder %s177, %s178
      %p190 = scmp.eq.s32.totalorder %s28, 1
      %p191 = por %p189, %p190
      %p193 = scmp.ne.s32.totalorder %s178, %s192
      %p194 = scmp.eq.s32.totalorder %s28, 0
      %p195 = por %p193, %p194
      %s196 = ssub.s32 %s29, %s41
      %p197 = scmp.eq.s32.totalorder %s196, 0
      %s199 = sadd.s32 %s198, 1
      %s200 = scalar_select %p197, %s198, %s199
      %p203 = pneg %p197
      %p204 = scmp.eq.s32.totalorder %s22, 1
      %p205 = por %p203, %p204
      %p206 = scmp.ne.s32.totalorder %s198, %s201
      %p207 = scmp.eq.s32.totalorder %s22, 0
      %p208 = por %p206, %p207
      %p209 = scmp.ne.s32.totalorder %s198, %s201
      %p210 = scmp.eq.s32.totalorder %s27, 1
      %p211 = por %p209, %p210
      %p212 = scmp.ne.s32.totalorder %s201, %s202
      %p213 = scmp.eq.s32.totalorder %s27, 0
      %p214 = por %p212, %p213
      %p215 = scmp.ne.s32.totalorder %s201, %s202
      %p216 = scmp.eq.s32.totalorder %s28, 1
      %p217 = por %p215, %p216
      %p219 = scmp.ne.s32.totalorder %s202, %s218
      %p220 = scmp.eq.s32.totalorder %s28, 0
      %p221 = por %p219, %p220
      %p222 = scmp.le.s32.totalorder 1, %s22
      %p223 = scmp.lt.s32.totalorder %s22, 3
      %p224 = pnand %p222, %p223
      %p225 = pneg %p224
      // Predicated region
      $region9: #{tpu_custom_call.1} parent=5 // pred_check
        _
      $region10: #{tpu_custom_call.1} parent=5 // pred_check_branch
        %227 = sbr.rel (%p224) target = $region12
      $region11: #{tpu_custom_call.1} parent=5 // pred_region
        %s228 = ssub.s32 %s22, 1
        // Predicated region
        $region13: #{tpu_custom_call.1} parent=11 // pred_check
          %p229 = pneg %p83
        $region14: #{tpu_custom_call.1} parent=11 // pred_check_branch
          %231 = sbr.rel (%p229) target = $region16
        $region15: #{tpu_custom_call.1} parent=11 // pred_region
          %233 = vsyncadd [#allocation7], 0
          %s234 = sshll.u32 %s1, 4
          %s235 = int_to_ptr.hbm [resolvable:$true] %s234
          %s236 = sshll.u32 [#allocation6], 4
          %s237 = int_to_ptr.vmem [resolvable:$true] %s236
          %242 = dma.hbm_to_vmem [thread:$0]  %s235, 1024, %s237, [#allocation7], 256, 256, 16
        $region16: #{tpu_custom_call.1} parent=11 // pred_fallthru
          _
        // Predicated region
        $region17: #{tpu_custom_call.1} parent=11 // pred_check
          %p243 = pneg %p104
        $region18: #{tpu_custom_call.1} parent=11 // pred_check_branch
          %245 = sbr.rel (%p243) target = $region20
        $region19: #{tpu_custom_call.1} parent=11 // pred_region
          %247 = vsyncadd [#allocation7], 0
          %s249 = sshll.u32 %s2, 4
          %s250 = int_to_ptr.hbm [resolvable:$true] %s249
          %s251 = sshll.u32 [#allocation8], 4
          %s252 = int_to_ptr.vmem [resolvable:$true] %s251
          %254 = dma.hbm_to_vmem [thread:$0]  %s250, 64, %s252, [#allocation7]
        $region20: #{tpu_custom_call.1} parent=11 // pred_fallthru
          _
        // Predicated region
        $region21: #{tpu_custom_call.1} parent=11 // pred_check
          %p255 = pneg %p125
        $region22: #{tpu_custom_call.1} parent=11 // pred_check_branch
          %257 = sbr.rel (%p255) target = $region24
        $region23: #{tpu_custom_call.1} parent=11 // pred_region
          %259 = vsyncadd [#allocation10], 0
          %s260 = sshll.u32 %s3, 4
          %s261 = int_to_ptr.hbm [resolvable:$true] %s260
          %s262 = sshll.u32 [#allocation9], 4
          %s263 = int_to_ptr.vmem [resolvable:$true] %s262
          %268 = dma.hbm_to_vmem [thread:$0]  %s261, 16384, %s263, [#allocation10], 256, 256, 16
        $region24: #{tpu_custom_call.1} parent=11 // pred_fallthru
          _
        // Predicated region
        $region25: #{tpu_custom_call.1} parent=11 // pred_check
          %p269 = pneg %p146
        $region26: #{tpu_custom_call.1} parent=11 // pred_check_branch
          %271 = sbr.rel (%p269) target = $region28
        $region27: #{tpu_custom_call.1} parent=11 // pred_region
          %273 = vsyncadd [#allocation10], 0
          %s275 = sshll.u32 %s4, 4
          %s276 = int_to_ptr.hbm [resolvable:$true] %s275
          %s277 = sshll.u32 [#allocation11], 4
          %s278 = int_to_ptr.vmem [resolvable:$true] %s277
          %280 = dma.hbm_to_vmem [thread:$0]  %s276, 64, %s278, [#allocation10]
        $region28: #{tpu_custom_call.1} parent=11 // pred_fallthru
          _
        // Predicated region
        $region29: #{tpu_custom_call.1} parent=11 // pred_check
          %p281 = pneg %p167
        $region30: #{tpu_custom_call.1} parent=11 // pred_check_branch
          %283 = sbr.rel (%p281) target = $region32
        $region31: #{tpu_custom_call.1} parent=11 // pred_region
          %285 = vsyncadd [#allocation13], 0
          %s286 = sshll.u32 %s5, 4
          %s287 = int_to_ptr.hbm [resolvable:$true] %s286
          %s288 = sshll.u32 [#allocation12], 4
          %s289 = int_to_ptr.vmem [resolvable:$true] %s288
          %294 = dma.hbm_to_vmem [thread:$0]  %s287, 4096, %s289, [#allocation13], 64, 64, 4
        $region32: #{tpu_custom_call.1} parent=11 // pred_fallthru
          _
        // Predicated region
        $region33: #{tpu_custom_call.1} parent=11 // pred_check
          %p295 = pneg %p188
        $region34: #{tpu_custom_call.1} parent=11 // pred_check_branch
          %297 = sbr.rel (%p295) target = $region36
        $region35: #{tpu_custom_call.1} parent=11 // pred_region
          _
        $region36: #{tpu_custom_call.1} parent=11 // pred_fallthru
          _
      $region12: #{tpu_custom_call.1} parent=5 // pred_fallthru
        _
      %p298 = scmp.lt.s32.totalorder %s22, 2
      // Predicated region
      $region37: #{tpu_custom_call.1} parent=5 // pred_check
        %p299 = pneg %p298
      $region38: #{tpu_custom_call.1} parent=5 // pred_check_branch
        %301 = sbr.rel (%p299) target = $region40
      $region39: #{tpu_custom_call.1} parent=5 // pred_region
        // Predicated region
        $region41: #{tpu_custom_call.1} parent=39 // pred_check
          %p302 = pneg %p56
        $region42: #{tpu_custom_call.1} parent=39 // pred_check_branch
          %304 = sbr.rel (%p302) target = $region44
        $region43: #{tpu_custom_call.1} parent=39 // pred_region
          %s305 = sand.u32 %s46, 1
          %s306 = scalar_lea.sflag [#allocation4], %s305
          %s307 = sand.u32 %s46, 1
          %s308 = smul.addr %s307, 8
          %s309 = scalar_lea.vmem [#allocation3], %s308
          %311 = vsyncadd %s306, 0
          %s312 = sadd.s32 %s30, %s29
          %s313 = smul.addr %s312, 8
          %s314 = scalar_lea.hbm %s0, %s313
          %s316 = sshll.u32 %s314, 4
          %s317 = int_to_ptr.hbm [resolvable:$true] %s316
          %s318 = sshll.u32 %s309, 4
          %s319 = int_to_ptr.vmem [resolvable:$true] %s318
          %321 = dma.hbm_to_vmem [thread:$0]  %s317, 128, %s319, %s306
        $region44: #{tpu_custom_call.1} parent=39 // pred_fallthru
          _
      $region40: #{tpu_custom_call.1} parent=5 // pred_fallthru
        _
      %p322 = scmp.le.s32.totalorder 1, %s22
      %p323 = scmp.lt.s32.totalorder %s22, 3
      %p324 = pnand %p322, %p323
      %p325 = pneg %p324
      // Predicated region
      $region45: #{tpu_custom_call.1} parent=5 // pred_check
        _
      $region46: #{tpu_custom_call.1} parent=5 // pred_check_branch
        %327 = sbr.rel (%p324) target = $region48
      $region47: #{tpu_custom_call.1} parent=5 // pred_region
        %s328 = ssub.s32 %s22, 1
        %s329 = sand.u32 %s49, 1
        %s330 = scalar_lea.sflag [#allocation4], %s329
        %s331 = sand.u32 %s49, 1
        %s332 = smul.addr %s331, 8
        %s333 = scalar_lea.vmem [#allocation3], %s332
        // Predicated region
        $region49: #{tpu_custom_call.1} parent=47 // pred_check
          %p334 = pneg %p62
        $region50: #{tpu_custom_call.1} parent=47 // pred_check_branch
          %336 = sbr.rel (%p334) target = $region52
        $region51: #{tpu_custom_call.1} parent=47 // pred_region
          %338 = dma.done %s330, 128
        $region52: #{tpu_custom_call.1} parent=47 // pred_fallthru
          _
        // Predicated region
        $region53: #{tpu_custom_call.1} parent=47 // pred_check
          %p339 = pneg %p83
        $region54: #{tpu_custom_call.1} parent=47 // pred_check_branch
          %341 = sbr.rel (%p339) target = $region56
        $region55: #{tpu_custom_call.1} parent=47 // pred_region
          %343 = dma.done [#allocation7], 1024
        $region56: #{tpu_custom_call.1} parent=47 // pred_fallthru
          _
        // Predicated region
        $region57: #{tpu_custom_call.1} parent=47 // pred_check
          %p344 = pneg %p104
        $region58: #{tpu_custom_call.1} parent=47 // pred_check_branch
          %346 = sbr.rel (%p344) target = $region60
        $region59: #{tpu_custom_call.1} parent=47 // pred_region
          %348 = dma.done [#allocation7], 64
        $region60: #{tpu_custom_call.1} parent=47 // pred_fallthru
          _
        // Predicated region
        $region61: #{tpu_custom_call.1} parent=47 // pred_check
          %p349 = pneg %p125
        $region62: #{tpu_custom_call.1} parent=47 // pred_check_branch
          %351 = sbr.rel (%p349) target = $region64
        $region63: #{tpu_custom_call.1} parent=47 // pred_region
          %353 = dma.done [#allocation10], 16384
        $region64: #{tpu_custom_call.1} parent=47 // pred_fallthru
          _
        // Predicated region
        $region65: #{tpu_custom_call.1} parent=47 // pred_check
          %p354 = pneg %p146
        $region66: #{tpu_custom_call.1} parent=47 // pred_check_branch
          %356 = sbr.rel (%p354) target = $region68
        $region67: #{tpu_custom_call.1} parent=47 // pred_region
          %358 = dma.done [#allocation10], 64
        $region68: #{tpu_custom_call.1} parent=47 // pred_fallthru
          _
        // Predicated region
        $region69: #{tpu_custom_call.1} parent=47 // pred_check
          %p359 = pneg %p167
        $region70: #{tpu_custom_call.1} parent=47 // pred_check_branch
          %361 = sbr.rel (%p359) target = $region72
        $region71: #{tpu_custom_call.1} parent=47 // pred_region
          %363 = dma.done [#allocation13], 4096
        $region72: #{tpu_custom_call.1} parent=47 // pred_fallthru
          _
        %s364 = sand.u32 %s49, 1
        %s365 = scalar_lea.sflag [#allocation4], %s364
        %s366 = sand.u32 %s49, 1
        %s367 = smul.addr %s366, 8
        %s368 = scalar_lea.vmem [#allocation3], %s367
        %p369 = pneg %p62
        %p370 = pneg %p59
        %p371 = pneg %p83
        %p372 = pneg %p80
        %p373 = pneg %p104
        %p374 = pneg %p101
        %p375 = pneg %p125
        %p376 = pneg %p122
        %p377 = pneg %p146
        %p378 = pneg %p143
        %p379 = pneg %p167
        %p380 = pneg %p164
        %p381 = pneg %p188
        %p382 = pneg %p185
        %p383 = pneg %p214
        %p384 = pneg %p211
        %s385 = sand.u32 %s201, 1
        %s386 = scalar_lea.sflag [#allocation5], %s385
        %s387 = sand.u32 %s201, 1
        %s388 = scalar_lea.vmem [#allocation14], %s387
        %p390 = scmp.eq.s32.totalorder %s32, 0
        // Predicated region
        $region73: #{tpu_custom_call.1} parent=47 // pred_check
          %p391 = pneg %p390
        $region74: #{tpu_custom_call.1} parent=47 // pred_check_branch
          %393 = sbr.rel (%p391) target = $region76
        $region75: #{tpu_custom_call.1} parent=47 // pred_region
          %394 = vst [vmem:[#allocation2] sm:$0x1] 0.0
        $region76: #{tpu_custom_call.1} parent=47 // pred_fallthru
          _
        %v395 = vld [vmem:[%s333] sm:$0xff]
        %v396 = vpack.c.bf16 %v395, %v395
        %v397 = vld [vmem:[#allocation6] sm:$0xff]
        %v398 = vld [vmem:[#allocation6 + $0x8] sm:$0xff]
        %v399 = vld [vmem:[#allocation6 + $0x10] sm:$0xff]
        %v400 = vld [vmem:[#allocation6 + $0x18] sm:$0xff]
        %v401 = vld [vmem:[#allocation6 + $0x20] sm:$0xff]
        %v402 = vld [vmem:[#allocation6 + $0x28] sm:$0xff]
        %v403 = vld [vmem:[#allocation6 + $0x30] sm:$0xff]
        %v404 = vld [vmem:[#allocation6 + $0x38] sm:$0xff]
        %v405 = vld [vmem:[#allocation8] sm:$0xf]
        %v407 = vperm.slane %v405, 0
        %v408 = vperm.slane %v405, 1
        %v409 = vperm.slane %v405, 2
        %v410 = vperm.slane %v405, 3
        %v423 = vunpack.c.l.b16 %v397
        %v424 = vunpack.c.h.b16 %v397
        %v425 = vunpack.c.l.b16 %v398
        %v426 = vunpack.c.h.b16 %v398
        %v427 = vunpack.c.l.b16 %v399
        %v428 = vunpack.c.h.b16 %v399
        %v429 = vunpack.c.l.b16 %v400
        %v430 = vunpack.c.h.b16 %v400
        %v431 = vunpack.c.l.b16 %v401
        %v432 = vunpack.c.h.b16 %v401
        %v433 = vunpack.c.l.b16 %v402
        %v434 = vunpack.c.h.b16 %v402
        %v435 = vunpack.c.l.b16 %v403
        %v436 = vunpack.c.h.b16 %v403
        %v437 = vunpack.c.l.b16 %v404
        %v438 = vunpack.c.h.b16 %v404
        %v439 = vpack.c.b16 %v427, %v423
        %v440 = vpack.c.b16 %v428, %v424
        %v441 = vpack.c.b16 %v429, %v425
        %v442 = vpack.c.b16 %v430, %v426
        %v443 = vpack.c.b16 %v435, %v431
        %v444 = vpack.c.b16 %v436, %v432
        %v445 = vpack.c.b16 %v437, %v433
        %v446 = vpack.c.b16 %v438, %v434
        %vm455 = vcmask 261120
        %v457 = vsel %vm455, %v396, 0
        %459 = vmatpush.bf16.msra.mxu0 0
        %460 = vmatpush.bf16.msra.mxu0 0
        %461 = vmatpush.bf16.msra.mxu0 0
        %462 = vmatpush.bf16.msra.mxu0 0
        %463 = vmatpush.bf16.msra.mxu0 0
        %464 = vmatpush.bf16.msra.mxu0 0
        %465 = vmatpush.bf16.msra.mxu0 %v443
        %466 = vmatpush.bf16.msra.mxu0 %v439
        %467 = vmatmul.bf16.gmra.mxu0 %v457
        %v468 = vpop.f32.mrf.mxu0
        %v469 = vadd.f32 %v407, %v468
        %v470 = vpop.f32.mrf.mxu0
        %471 = vdwg.mxu0
        %472 = vmatpush.bf16.msra.mxu0 0
        %473 = vmatpush.bf16.msra.mxu0 0
        %474 = vmatpush.bf16.msra.mxu0 0
        %475 = vmatpush.bf16.msra.mxu0 0
        %476 = vmatpush.bf16.msra.mxu0 0
        %477 = vmatpush.bf16.msra.mxu0 0
        %478 = vmatpush.bf16.msra.mxu0 %v444
        %479 = vmatpush.bf16.msra.mxu0 %v440
        %480 = vmatmul.bf16.gmra.mxu0 %v457
        %v481 = vpop.f32.mrf.mxu0
        %v482 = vadd.f32 %v408, %v481
        %v483 = vpop.f32.mrf.mxu0
        %484 = vdwg.mxu0
        %485 = vmatpush.bf16.msra.mxu0 0
        %486 = vmatpush.bf16.msra.mxu0 0
        %487 = vmatpush.bf16.msra.mxu0 0
        %488 = vmatpush.bf16.msra.mxu0 0
        %489 = vmatpush.bf16.msra.mxu0 0
        %490 = vmatpush.bf16.msra.mxu0 0
        %491 = vmatpush.bf16.msra.mxu0 %v445
        %492 = vmatpush.bf16.msra.mxu0 %v441
        %493 = vmatmul.bf16.gmra.mxu0 %v457
        %v494 = vpop.f32.mrf.mxu0
        %v495 = vadd.f32 %v409, %v494
        %v496 = vpop.f32.mrf.mxu0
        %497 = vdwg.mxu0
        %498 = vmatpush.bf16.msra.mxu0 0
        %499 = vmatpush.bf16.msra.mxu0 0
        %500 = vmatpush.bf16.msra.mxu0 0
        %501 = vmatpush.bf16.msra.mxu0 0
        %502 = vmatpush.bf16.msra.mxu0 0
        %503 = vmatpush.bf16.msra.mxu0 0
        %504 = vmatpush.bf16.msra.mxu0 %v446
        %505 = vmatpush.bf16.msra.mxu0 %v442
        %506 = vmatmul.bf16.gmra.mxu0 %v457
        %v507 = vpop.f32.mrf.mxu0
        %v508 = vadd.f32 %v410, %v507
        %v509 = vpop.f32.mrf.mxu0
        %510 = vdwg.mxu0
        %v511 = vmax.f32 %v469, 0.0
        %v512 = vmax.f32 %v482, 0.0
        %v513 = vmax.f32 %v495, 0.0
        %v514 = vmax.f32 %v508, 0.0
        %v515 = vpack.c.bf16 %v511, %v511
        %v516 = vpack.c.bf16 %v512, %v512
        %v517 = vpack.c.bf16 %v513, %v513
        %v518 = vpack.c.bf16 %v514, %v514
        %v519 = vld [vmem:[#allocation9] sm:$0xff]
        %v520 = vld [vmem:[#allocation9 + $0x8] sm:$0xff]
        %v521 = vld [vmem:[#allocation9 + $0x10] sm:$0xff]
        %v522 = vld [vmem:[#allocation9 + $0x18] sm:$0xff]
        %v523 = vld [vmem:[#allocation9 + $0x20] sm:$0xff]
        %v524 = vld [vmem:[#allocation9 + $0x28] sm:$0xff]
        %v525 = vld [vmem:[#allocation9 + $0x30] sm:$0xff]
        %v526 = vld [vmem:[#allocation9 + $0x38] sm:$0xff]
        %v527 = vld [vmem:[#allocation9 + $0x40] sm:$0xff]
        %v528 = vld [vmem:[#allocation9 + $0x48] sm:$0xff]
        %v529 = vld [vmem:[#allocation9 + $0x50] sm:$0xff]
        %v530 = vld [vmem:[#allocation9 + $0x58] sm:$0xff]
        %v531 = vld [vmem:[#allocation9 + $0x60] sm:$0xff]
        %v532 = vld [vmem:[#allocation9 + $0x68] sm:$0xff]
        %v533 = vld [vmem:[#allocation9 + $0x70] sm:$0xff]
        %v534 = vld [vmem:[#allocation9 + $0x78] sm:$0xff]
        %v535 = vld [vmem:[#allocation9 + $0x80] sm:$0xff]
        %v536 = vld [vmem:[#allocation9 + $0x88] sm:$0xff]
        %v537 = vld [vmem:[#allocation9 + $0x90] sm:$0xff]
        %v538 = vld [vmem:[#allocation9 + $0x98] sm:$0xff]
        %v539 = vld [vmem:[#allocation9 + $0xa0] sm:$0xff]
        %v540 = vld [vmem:[#allocation9 + $0xa8] sm:$0xff]
        %v541 = vld [vmem:[#allocation9 + $0xb0] sm:$0xff]
        %v542 = vld [vmem:[#allocation9 + $0xb8] sm:$0xff]
        %v543 = vld [vmem:[#allocation9 + $0xc0] sm:$0xff]
        %v544 = vld [vmem:[#allocation9 + $0xc8] sm:$0xff]
        %v545 = vld [vmem:[#allocation9 + $0xd0] sm:$0xff]
        %v546 = vld [vmem:[#allocation9 + $0xd8] sm:$0xff]
        %v547 = vld [vmem:[#allocation9 + $0xe0] sm:$0xff]
        %v548 = vld [vmem:[#allocation9 + $0xe8] sm:$0xff]
        %v549 = vld [vmem:[#allocation9 + $0xf0] sm:$0xff]
        %v550 = vld [vmem:[#allocation9 + $0xf8] sm:$0xff]
        %v551 = vld [vmem:[#allocation9 + $0x100] sm:$0xff]
        %v552 = vld [vmem:[#allocation9 + $0x108] sm:$0xff]
        %v553 = vld [vmem:[#allocation9 + $0x110] sm:$0xff]
        %v554 = vld [vmem:[#allocation9 + $0x118] sm:$0xff]
        %v555 = vld [vmem:[#allocation9 + $0x120] sm:$0xff]
        %v556 = vld [vmem:[#allocation9 + $0x128] sm:$0xff]
        %v557 = vld [vmem:[#allocation9 + $0x130] sm:$0xff]
        %v558 = vld [vmem:[#allocation9 + $0x138] sm:$0xff]
        %v559 = vld [vmem:[#allocation9 + $0x140] sm:$0xff]
        %v560 = vld [vmem:[#allocation9 + $0x148] sm:$0xff]
        %v561 = vld [vmem:[#allocation9 + $0x150] sm:$0xff]
        %v562 = vld [vmem:[#allocation9 + $0x158] sm:$0xff]
        %v563 = vld [vmem:[#allocation9 + $0x160] sm:$0xff]
        %v564 = vld [vmem:[#allocation9 + $0x168] sm:$0xff]
        %v565 = vld [vmem:[#allocation9 + $0x170] sm:$0xff]
        %v566 = vld [vmem:[#allocation9 + $0x178] sm:$0xff]
        %v567 = vld [vmem:[#allocation9 + $0x180] sm:$0xff]
        %v568 = vld [vmem:[#allocation9 + $0x188] sm:$0xff]
        %v569 = vld [vmem:[#allocation9 + $0x190] sm:$0xff]
        %v570 = vld [vmem:[#allocation9 + $0x198] sm:$0xff]
        %v571 = vld [vmem:[#allocation9 + $0x1a0] sm:$0xff]
        %v572 = vld [vmem:[#allocation9 + $0x1a8] sm:$0xff]
        %v573 = vld [vmem:[#allocation9 + $0x1b0] sm:$0xff]
        %v574 = vld [vmem:[#allocation9 + $0x1b8] sm:$0xff]
        %v575 = vld [vmem:[#allocation9 + $0x1c0] sm:$0xff]
        %v576 = vld [vmem:[#allocation9 + $0x1c8] sm:$0xff]
        %v577 = vld [vmem:[#allocation9 + $0x1d0] sm:$0xff]
        %v578 = vld [vmem:[#allocation9 + $0x1d8] sm:$0xff]
        %v579 = vld [vmem:[#allocation9 + $0x1e0] sm:$0xff]
        %v580 = vld [vmem:[#allocation9 + $0x1e8] sm:$0xff]
        %v581 = vld [vmem:[#allocation9 + $0x1f0] sm:$0xff]
        %v582 = vld [vmem:[#allocation9 + $0x1f8] sm:$0xff]
        %v583 = vld [vmem:[#allocation9 + $0x200] sm:$0xff]
        %v584 = vld [vmem:[#allocation9 + $0x208] sm:$0xff]
        %v585 = vld [vmem:[#allocation9 + $0x210] sm:$0xff]
        %v586 = vld [vmem:[#allocation9 + $0x218] sm:$0xff]
        %v587 = vld [vmem:[#allocation9 + $0x220] sm:$0xff]
        %v588 = vld [vmem:[#allocation9 + $0x228] sm:$0xff]
        %v589 = vld [vmem:[#allocation9 + $0x230] sm:$0xff]
        %v590 = vld [vmem:[#allocation9 + $0x238] sm:$0xff]
        %v591 = vld [vmem:[#allocation9 + $0x240] sm:$0xff]
        %v592 = vld [vmem:[#allocation9 + $0x248] sm:$0xff]
        %v593 = vld [vmem:[#allocation9 + $0x250] sm:$0xff]
        %v594 = vld [vmem:[#allocation9 + $0x258] sm:$0xff]
        %v595 = vld [vmem:[#allocation9 + $0x260] sm:$0xff]
        %v596 = vld [vmem:[#allocation9 + $0x268] sm:$0xff]
        %v597 = vld [vmem:[#allocation9 + $0x270] sm:$0xff]
        %v598 = vld [vmem:[#allocation9 + $0x278] sm:$0xff]
        %v599 = vld [vmem:[#allocation9 + $0x280] sm:$0xff]
        %v600 = vld [vmem:[#allocation9 + $0x288] sm:$0xff]
        %v601 = vld [vmem:[#allocation9 + $0x290] sm:$0xff]
        %v602 = vld [vmem:[#allocation9 + $0x298] sm:$0xff]
        %v603 = vld [vmem:[#allocation9 + $0x2a0] sm:$0xff]
        %v604 = vld [vmem:[#allocation9 + $0x2a8] sm:$0xff]
        %v605 = vld [vmem:[#allocation9 + $0x2b0] sm:$0xff]
        %v606 = vld [vmem:[#allocation9 + $0x2b8] sm:$0xff]
        %v607 = vld [vmem:[#allocation9 + $0x2c0] sm:$0xff]
        %v608 = vld [vmem:[#allocation9 + $0x2c8] sm:$0xff]
        %v609 = vld [vmem:[#allocation9 + $0x2d0] sm:$0xff]
        %v610 = vld [vmem:[#allocation9 + $0x2d8] sm:$0xff]
        %v611 = vld [vmem:[#allocation9 + $0x2e0] sm:$0xff]
        %v612 = vld [vmem:[#allocation9 + $0x2e8] sm:$0xff]
        %v613 = vld [vmem:[#allocation9 + $0x2f0] sm:$0xff]
        %v614 = vld [vmem:[#allocation9 + $0x2f8] sm:$0xff]
        %v615 = vld [vmem:[#allocation9 + $0x300] sm:$0xff]
        %v616 = vld [vmem:[#allocation9 + $0x308] sm:$0xff]
        %v617 = vld [vmem:[#allocation9 + $0x310] sm:$0xff]
        %v618 = vld [vmem:[#allocation9 + $0x318] sm:$0xff]
        %v619 = vld [vmem:[#allocation9 + $0x320] sm:$0xff]
        %v620 = vld [vmem:[#allocation9 + $0x328] sm:$0xff]
        %v621 = vld [vmem:[#allocation9 + $0x330] sm:$0xff]
        %v622 = vld [vmem:[#allocation9 + $0x338] sm:$0xff]
        %v623 = vld [vmem:[#allocation9 + $0x340] sm:$0xff]
        %v624 = vld [vmem:[#allocation9 + $0x348] sm:$0xff]
        %v625 = vld [vmem:[#allocation9 + $0x350] sm:$0xff]
        %v626 = vld [vmem:[#allocation9 + $0x358] sm:$0xff]
        %v627 = vld [vmem:[#allocation9 + $0x360] sm:$0xff]
        %v628 = vld [vmem:[#allocation9 + $0x368] sm:$0xff]
        %v629 = vld [vmem:[#allocation9 + $0x370] sm:$0xff]
        %v630 = vld [vmem:[#allocation9 + $0x378] sm:$0xff]
        %v631 = vld [vmem:[#allocation9 + $0x380] sm:$0xff]
        %v632 = vld [vmem:[#allocation9 + $0x388] sm:$0xff]
        %v633 = vld [vmem:[#allocation9 + $0x390] sm:$0xff]
        %v634 = vld [vmem:[#allocation9 + $0x398] sm:$0xff]
        %v635 = vld [vmem:[#allocation9 + $0x3a0] sm:$0xff]
        %v636 = vld [vmem:[#allocation9 + $0x3a8] sm:$0xff]
        %v637 = vld [vmem:[#allocation9 + $0x3b0] sm:$0xff]
        %v638 = vld [vmem:[#allocation9 + $0x3b8] sm:$0xff]
        %v639 = vld [vmem:[#allocation9 + $0x3c0] sm:$0xff]
        %v640 = vld [vmem:[#allocation9 + $0x3c8] sm:$0xff]
        %v641 = vld [vmem:[#allocation9 + $0x3d0] sm:$0xff]
        %v642 = vld [vmem:[#allocation9 + $0x3d8] sm:$0xff]
        %v643 = vld [vmem:[#allocation9 + $0x3e0] sm:$0xff]
        %v644 = vld [vmem:[#allocation9 + $0x3e8] sm:$0xff]
        %v645 = vld [vmem:[#allocation9 + $0x3f0] sm:$0xff]
        %v646 = vld [vmem:[#allocation9 + $0x3f8] sm:$0xff]
        %v647 = vld [vmem:[#allocation11] sm:$0xf]
        %v649 = vperm.slane %v647, 0
        %v650 = vperm.slane %v647, 1
        %v651 = vperm.slane %v647, 2
        %v652 = vperm.slane %v647, 3
        %v785 = vunpack.c.l.b16 %v519
        %v786 = vunpack.c.h.b16 %v519
        %v787 = vunpack.c.l.b16 %v520
        %v788 = vunpack.c.h.b16 %v520
        %v789 = vunpack.c.l.b16 %v521
        %v790 = vunpack.c.h.b16 %v521
        %v791 = vunpack.c.l.b16 %v522
        %v792 = vunpack.c.h.b16 %v522
        %v793 = vunpack.c.l.b16 %v523
        %v794 = vunpack.c.h.b16 %v523
        %v795 = vunpack.c.l.b16 %v524
        %v796 = vunpack.c.h.b16 %v524
        %v797 = vunpack.c.l.b16 %v525
        %v798 = vunpack.c.h.b16 %v525
        %v799 = vunpack.c.l.b16 %v526
        %v800 = vunpack.c.h.b16 %v526
        %v801 = vunpack.c.l.b16 %v527
        %v802 = vunpack.c.h.b16 %v527
        %v803 = vunpack.c.l.b16 %v528
        %v804 = vunpack.c.h.b16 %v528
        %v805 = vunpack.c.l.b16 %v529
        %v806 = vunpack.c.h.b16 %v529
        %v807 = vunpack.c.l.b16 %v530
        %v808 = vunpack.c.h.b16 %v530
        %v809 = vunpack.c.l.b16 %v531
        %v810 = vunpack.c.h.b16 %v531
        %v811 = vunpack.c.l.b16 %v532
        %v812 = vunpack.c.h.b16 %v532
        %v813 = vunpack.c.l.b16 %v533
        %v814 = vunpack.c.h.b16 %v533
        %v815 = vunpack.c.l.b16 %v534
        %v816 = vunpack.c.h.b16 %v534
        %v817 = vunpack.c.l.b16 %v535
        %v818 = vunpack.c.h.b16 %v535
        %v819 = vunpack.c.l.b16 %v536
        %v820 = vunpack.c.h.b16 %v536
        %v821 = vunpack.c.l.b16 %v537
        %v822 = vunpack.c.h.b16 %v537
        %v823 = vunpack.c.l.b16 %v538
        %v824 = vunpack.c.h.b16 %v538
        %v825 = vunpack.c.l.b16 %v539
        %v826 = vunpack.c.h.b16 %v539
        %v827 = vunpack.c.l.b16 %v540
        %v828 = vunpack.c.h.b16 %v540
        %v829 = vunpack.c.l.b16 %v541
        %v830 = vunpack.c.h.b16 %v541
        %v831 = vunpack.c.l.b16 %v542
        %v832 = vunpack.c.h.b16 %v542
        %v833 = vunpack.c.l.b16 %v543
        %v834 = vunpack.c.h.b16 %v543
        %v835 = vunpack.c.l.b16 %v544
        %v836 = vunpack.c.h.b16 %v544
        %v837 = vunpack.c.l.b16 %v545
        %v838 = vunpack.c.h.b16 %v545
        %v839 = vunpack.c.l.b16 %v546
        %v840 = vunpack.c.h.b16 %v546
        %v841 = vunpack.c.l.b16 %v547
        %v842 = vunpack.c.h.b16 %v547
        %v843 = vunpack.c.l.b16 %v548
        %v844 = vunpack.c.h.b16 %v548
        %v845 = vunpack.c.l.b16 %v549
        %v846 = vunpack.c.h.b16 %v549
        %v847 = vunpack.c.l.b16 %v550
        %v848 = vunpack.c.h.b16 %v550
        %v849 = vunpack.c.l.b16 %v551
        %v850 = vunpack.c.h.b16 %v551
        %v851 = vunpack.c.l.b16 %v552
        %v852 = vunpack.c.h.b16 %v552
        %v853 = vunpack.c.l.b16 %v553
        %v854 = vunpack.c.h.b16 %v553
        %v855 = vunpack.c.l.b16 %v554
        %v856 = vunpack.c.h.b16 %v554
        %v857 = vunpack.c.l.b16 %v555
        %v858 = vunpack.c.h.b16 %v555
        %v859 = vunpack.c.l.b16 %v556
        %v860 = vunpack.c.h.b16 %v556
        %v861 = vunpack.c.l.b16 %v557
        %v862 = vunpack.c.h.b16 %v557
        %v863 = vunpack.c.l.b16 %v558
        %v864 = vunpack.c.h.b16 %v558
        %v865 = vunpack.c.l.b16 %v559
        %v866 = vunpack.c.h.b16 %v559
        %v867 = vunpack.c.l.b16 %v560
        %v868 = vunpack.c.h.b16 %v560
        %v869 = vunpack.c.l.b16 %v561
        %v870 = vunpack.c.h.b16 %v561
        %v871 = vunpack.c.l.b16 %v562
        %v872 = vunpack.c.h.b16 %v562
        %v873 = vunpack.c.l.b16 %v563
        %v874 = vunpack.c.h.b16 %v563
        %v875 = vunpack.c.l.b16 %v564
        %v876 = vunpack.c.h.b16 %v564
        %v877 = vunpack.c.l.b16 %v565
        %v878 = vunpack.c.h.b16 %v565
        %v879 = vunpack.c.l.b16 %v566
        %v880 = vunpack.c.h.b16 %v566
        %v881 = vunpack.c.l.b16 %v567
        %v882 = vunpack.c.h.b16 %v567
        %v883 = vunpack.c.l.b16 %v568
        %v884 = vunpack.c.h.b16 %v568
        %v885 = vunpack.c.l.b16 %v569
        %v886 = vunpack.c.h.b16 %v569
        %v887 = vunpack.c.l.b16 %v570
        %v888 = vunpack.c.h.b16 %v570
        %v889 = vunpack.c.l.b16 %v571
        %v890 = vunpack.c.h.b16 %v571
        %v891 = vunpack.c.l.b16 %v572
        %v892 = vunpack.c.h.b16 %v572
        %v893 = vunpack.c.l.b16 %v573
        %v894 = vunpack.c.h.b16 %v573
        %v895 = vunpack.c.l.b16 %v574
        %v896 = vunpack.c.h.b16 %v574
        %v897 = vunpack.c.l.b16 %v575
        %v898 = vunpack.c.h.b16 %v575
        %v899 = vunpack.c.l.b16 %v576
        %v900 = vunpack.c.h.b16 %v576
        %v901 = vunpack.c.l.b16 %v577
        %v902 = vunpack.c.h.b16 %v577
        %v903 = vunpack.c.l.b16 %v578
        %v904 = vunpack.c.h.b16 %v578
        %v905 = vunpack.c.l.b16 %v579
        %v906 = vunpack.c.h.b16 %v579
        %v907 = vunpack.c.l.b16 %v580
        %v908 = vunpack.c.h.b16 %v580
        %v909 = vunpack.c.l.b16 %v581
        %v910 = vunpack.c.h.b16 %v581
        %v911 = vunpack.c.l.b16 %v582
        %v912 = vunpack.c.h.b16 %v582
        %v913 = vunpack.c.l.b16 %v583
        %v914 = vunpack.c.h.b16 %v583
        %v915 = vunpack.c.l.b16 %v584
        %v916 = vunpack.c.h.b16 %v584
        %v917 = vunpack.c.l.b16 %v585
        %v918 = vunpack.c.h.b16 %v585
        %v919 = vunpack.c.l.b16 %v586
        %v920 = vunpack.c.h.b16 %v586
        %v921 = vunpack.c.l.b16 %v587
        %v922 = vunpack.c.h.b16 %v587
        %v923 = vunpack.c.l.b16 %v588
        %v924 = vunpack.c.h.b16 %v588
        %v925 = vunpack.c.l.b16 %v589
        %v926 = vunpack.c.h.b16 %v589
        %v927 = vunpack.c.l.b16 %v590
        %v928 = vunpack.c.h.b16 %v590
        %v929 = vunpack.c.l.b16 %v591
        %v930 = vunpack.c.h.b16 %v591
        %v931 = vunpack.c.l.b16 %v592
        %v932 = vunpack.c.h.b16 %v592
        %v933 = vunpack.c.l.b16 %v593
        %v934 = vunpack.c.h.b16 %v593
        %v935 = vunpack.c.l.b16 %v594
        %v936 = vunpack.c.h.b16 %v594
        %v937 = vunpack.c.l.b16 %v595
        %v938 = vunpack.c.h.b16 %v595
        %v939 = vunpack.c.l.b16 %v596
        %v940 = vunpack.c.h.b16 %v596
        %v941 = vunpack.c.l.b16 %v597
        %v942 = vunpack.c.h.b16 %v597
        %v943 = vunpack.c.l.b16 %v598
        %v944 = vunpack.c.h.b16 %v598
        %v945 = vunpack.c.l.b16 %v599
        %v946 = vunpack.c.h.b16 %v599
        %v947 = vunpack.c.l.b16 %v600
        %v948 = vunpack.c.h.b16 %v600
        %v949 = vunpack.c.l.b16 %v601
        %v950 = vunpack.c.h.b16 %v601
        %v951 = vunpack.c.l.b16 %v602
        %v952 = vunpack.c.h.b16 %v602
        %v953 = vunpack.c.l.b16 %v603
        %v954 = vunpack.c.h.b16 %v603
        %v955 = vunpack.c.l.b16 %v604
        %v956 = vunpack.c.h.b16 %v604
        %v957 = vunpack.c.l.b16 %v605
        %v958 = vunpack.c.h.b16 %v605
        %v959 = vunpack.c.l.b16 %v606
        %v960 = vunpack.c.h.b16 %v606
        %v961 = vunpack.c.l.b16 %v607
        %v962 = vunpack.c.h.b16 %v607
        %v963 = vunpack.c.l.b16 %v608
        %v964 = vunpack.c.h.b16 %v608
        %v965 = vunpack.c.l.b16 %v609
        %v966 = vunpack.c.h.b16 %v609
        %v967 = vunpack.c.l.b16 %v610
        %v968 = vunpack.c.h.b16 %v610
        %v969 = vunpack.c.l.b16 %v611
        %v970 = vunpack.c.h.b16 %v611
        %v971 = vunpack.c.l.b16 %v612
        %v972 = vunpack.c.h.b16 %v612
        %v973 = vunpack.c.l.b16 %v613
        %v974 = vunpack.c.h.b16 %v613
        %v975 = vunpack.c.l.b16 %v614
        %v976 = vunpack.c.h.b16 %v614
        %v977 = vunpack.c.l.b16 %v615
        %v978 = vunpack.c.h.b16 %v615
        %v979 = vunpack.c.l.b16 %v616
        %v980 = vunpack.c.h.b16 %v616
        %v981 = vunpack.c.l.b16 %v617
        %v982 = vunpack.c.h.b16 %v617
        %v983 = vunpack.c.l.b16 %v618
        %v984 = vunpack.c.h.b16 %v618
        %v985 = vunpack.c.l.b16 %v619
        %v986 = vunpack.c.h.b16 %v619
        %v987 = vunpack.c.l.b16 %v620
        %v988 = vunpack.c.h.b16 %v620
        %v989 = vunpack.c.l.b16 %v621
        %v990 = vunpack.c.h.b16 %v621
        %v991 = vunpack.c.l.b16 %v622
        %v992 = vunpack.c.h.b16 %v622
        %v993 = vunpack.c.l.b16 %v623
        %v994 = vunpack.c.h.b16 %v623
        %v995 = vunpack.c.l.b16 %v624
        %v996 = vunpack.c.h.b16 %v624
        %v997 = vunpack.c.l.b16 %v625
        %v998 = vunpack.c.h.b16 %v625
        %v999 = vunpack.c.l.b16 %v626
        %v1000 = vunpack.c.h.b16 %v626
        %v1001 = vunpack.c.l.b16 %v627
        %v1002 = vunpack.c.h.b16 %v627
        %v1003 = vunpack.c.l.b16 %v628
        %v1004 = vunpack.c.h.b16 %v628
        %v1005 = vunpack.c.l.b16 %v629
        %v1006 = vunpack.c.h.b16 %v629
        %v1007 = vunpack.c.l.b16 %v630
        %v1008 = vunpack.c.h.b16 %v630
        %v1009 = vunpack.c.l.b16 %v631
        %v1010 = vunpack.c.h.b16 %v631
        %v1011 = vunpack.c.l.b16 %v632
        %v1012 = vunpack.c.h.b16 %v632
        %v1013 = vunpack.c.l.b16 %v633
        %v1014 = vunpack.c.h.b16 %v633
        %v1015 = vunpack.c.l.b16 %v634
        %v1016 = vunpack.c.h.b16 %v634
        %v1017 = vunpack.c.l.b16 %v635
        %v1018 = vunpack.c.h.b16 %v635
        %v1019 = vunpack.c.l.b16 %v636
        %v1020 = vunpack.c.h.b16 %v636
        %v1021 = vunpack.c.l.b16 %v637
        %v1022 = vunpack.c.h.b16 %v637
        %v1023 = vunpack.c.l.b16 %v638
        %v1024 = vunpack.c.h.b16 %v638
        %v1025 = vunpack.c.l.b16 %v639
        %v1026 = vunpack.c.h.b16 %v639
        %v1027 = vunpack.c.l.b16 %v640
        %v1028 = vunpack.c.h.b16 %v640
        %v1029 = vunpack.c.l.b16 %v641
        %v1030 = vunpack.c.h.b16 %v641
        %v1031 = vunpack.c.l.b16 %v642
        %v1032 = vunpack.c.h.b16 %v642
        %v1033 = vunpack.c.l.b16 %v643
        %v1034 = vunpack.c.h.b16 %v643
        %v1035 = vunpack.c.l.b16 %v644
        %v1036 = vunpack.c.h.b16 %v644
        %v1037 = vunpack.c.l.b16 %v645
        %v1038 = vunpack.c.h.b16 %v645
        %v1039 = vunpack.c.l.b16 %v646
        %v1040 = vunpack.c.h.b16 %v646
        %v1041 = vpack.c.b16 %v789, %v785
        %v1042 = vpack.c.b16 %v790, %v786
        %v1043 = vpack.c.b16 %v791, %v787
        %v1044 = vpack.c.b16 %v792, %v788
        %v1045 = vpack.c.b16 %v797, %v793
        %v1046 = vpack.c.b16 %v798, %v794
        %v1047 = vpack.c.b16 %v799, %v795
        %v1048 = vpack.c.b16 %v800, %v796
        %v1049 = vpack.c.b16 %v805, %v801
        %v1050 = vpack.c.b16 %v806, %v802
        %v1051 = vpack.c.b16 %v807, %v803
        %v1052 = vpack.c.b16 %v808, %v804
        %v1053 = vpack.c.b16 %v813, %v809
        %v1054 = vpack.c.b16 %v814, %v810
        %v1055 = vpack.c.b16 %v815, %v811
        %v1056 = vpack.c.b16 %v816, %v812
        %v1057 = vpack.c.b16 %v821, %v817
        %v1058 = vpack.c.b16 %v822, %v818
        %v1059 = vpack.c.b16 %v823, %v819
        %v1060 = vpack.c.b16 %v824, %v820
        %v1061 = vpack.c.b16 %v829, %v825
        %v1062 = vpack.c.b16 %v830, %v826
        %v1063 = vpack.c.b16 %v831, %v827
        %v1064 = vpack.c.b16 %v832, %v828
        %v1065 = vpack.c.b16 %v837, %v833
        %v1066 = vpack.c.b16 %v838, %v834
        %v1067 = vpack.c.b16 %v839, %v835
        %v1068 = vpack.c.b16 %v840, %v836
        %v1069 = vpack.c.b16 %v845, %v841
        %v1070 = vpack.c.b16 %v846, %v842
        %v1071 = vpack.c.b16 %v847, %v843
        %v1072 = vpack.c.b16 %v848, %v844
        %v1073 = vpack.c.b16 %v853, %v849
        %v1074 = vpack.c.b16 %v854, %v850
        %v1075 = vpack.c.b16 %v855, %v851
        %v1076 = vpack.c.b16 %v856, %v852
        %v1077 = vpack.c.b16 %v861, %v857
        %v1078 = vpack.c.b16 %v862, %v858
        %v1079 = vpack.c.b16 %v863, %v859
        %v1080 = vpack.c.b16 %v864, %v860
        %v1081 = vpack.c.b16 %v869, %v865
        %v1082 = vpack.c.b16 %v870, %v866
        %v1083 = vpack.c.b16 %v871, %v867
        %v1084 = vpack.c.b16 %v872, %v868
        %v1085 = vpack.c.b16 %v877, %v873
        %v1086 = vpack.c.b16 %v878, %v874
        %v1087 = vpack.c.b16 %v879, %v875
        %v1088 = vpack.c.b16 %v880, %v876
        %v1089 = vpack.c.b16 %v885, %v881
        %v1090 = vpack.c.b16 %v886, %v882
        %v1091 = vpack.c.b16 %v887, %v883
        %v1092 = vpack.c.b16 %v888, %v884
        %v1093 = vpack.c.b16 %v893, %v889
        %v1094 = vpack.c.b16 %v894, %v890
        %v1095 = vpack.c.b16 %v895, %v891
        %v1096 = vpack.c.b16 %v896, %v892
        %v1097 = vpack.c.b16 %v901, %v897
        %v1098 = vpack.c.b16 %v902, %v898
        %v1099 = vpack.c.b16 %v903, %v899
        %v1100 = vpack.c.b16 %v904, %v900
        %v1101 = vpack.c.b16 %v909, %v905
        %v1102 = vpack.c.b16 %v910, %v906
        %v1103 = vpack.c.b16 %v911, %v907
        %v1104 = vpack.c.b16 %v912, %v908
        %v1105 = vpack.c.b16 %v917, %v913
        %v1106 = vpack.c.b16 %v918, %v914
        %v1107 = vpack.c.b16 %v919, %v915
        %v1108 = vpack.c.b16 %v920, %v916
        %v1109 = vpack.c.b16 %v925, %v921
        %v1110 = vpack.c.b16 %v926, %v922
        %v1111 = vpack.c.b16 %v927, %v923
        %v1112 = vpack.c.b16 %v928, %v924
        %v1113 = vpack.c.b16 %v933, %v929
        %v1114 = vpack.c.b16 %v934, %v930
        %v1115 = vpack.c.b16 %v935, %v931
        %v1116 = vpack.c.b16 %v936, %v932
        %v1117 = vpack.c.b16 %v941, %v937
        %v1118 = vpack.c.b16 %v942, %v938
        %v1119 = vpack.c.b16 %v943, %v939
        %v1120 = vpack.c.b16 %v944, %v940
        %v1121 = vpack.c.b16 %v949, %v945
        %v1122 = vpack.c.b16 %v950, %v946
        %v1123 = vpack.c.b16 %v951, %v947
        %v1124 = vpack.c.b16 %v952, %v948
        %v1125 = vpack.c.b16 %v957, %v953
        %v1126 = vpack.c.b16 %v958, %v954
        %v1127 = vpack.c.b16 %v959, %v955
        %v1128 = vpack.c.b16 %v960, %v956
        %v1129 = vpack.c.b16 %v965, %v961
        %v1130 = vpack.c.b16 %v966, %v962
        %v1131 = vpack.c.b16 %v967, %v963
        %v1132 = vpack.c.b16 %v968, %v964
        %v1133 = vpack.c.b16 %v973, %v969
        %v1134 = vpack.c.b16 %v974, %v970
        %v1135 = vpack.c.b16 %v975, %v971
        %v1136 = vpack.c.b16 %v976, %v972
        %v1137 = vpack.c.b16 %v981, %v977
        %v1138 = vpack.c.b16 %v982, %v978
        %v1139 = vpack.c.b16 %v983, %v979
        %v1140 = vpack.c.b16 %v984, %v980
        %v1141 = vpack.c.b16 %v989, %v985
        %v1142 = vpack.c.b16 %v990, %v986
        %v1143 = vpack.c.b16 %v991, %v987
        %v1144 = vpack.c.b16 %v992, %v988
        %v1145 = vpack.c.b16 %v997, %v993
        %v1146 = vpack.c.b16 %v998, %v994
        %v1147 = vpack.c.b16 %v999, %v995
        %v1148 = vpack.c.b16 %v1000, %v996
        %v1149 = vpack.c.b16 %v1005, %v1001
        %v1150 = vpack.c.b16 %v1006, %v1002
        %v1151 = vpack.c.b16 %v1007, %v1003
        %v1152 = vpack.c.b16 %v1008, %v1004
        %v1153 = vpack.c.b16 %v1013, %v1009
        %v1154 = vpack.c.b16 %v1014, %v1010
        %v1155 = vpack.c.b16 %v1015, %v1011
        %v1156 = vpack.c.b16 %v1016, %v1012
        %v1157 = vpack.c.b16 %v1021, %v1017
        %v1158 = vpack.c.b16 %v1022, %v1018
        %v1159 = vpack.c.b16 %v1023, %v1019
        %v1160 = vpack.c.b16 %v1024, %v1020
        %v1161 = vpack.c.b16 %v1029, %v1025
        %v1162 = vpack.c.b16 %v1030, %v1026
        %v1163 = vpack.c.b16 %v1031, %v1027
        %v1164 = vpack.c.b16 %v1032, %v1028
        %v1165 = vpack.c.b16 %v1037, %v1033
        %v1166 = vpack.c.b16 %v1038, %v1034
        %v1167 = vpack.c.b16 %v1039, %v1035
        %v1168 = vpack.c.b16 %v1040, %v1036
        %1297 = vmatpush.bf16.msra.mxu0 %v1069
        %1298 = vmatpush.bf16.msra.mxu0 %v1065
        %1299 = vmatpush.bf16.msra.mxu0 %v1061
        %1300 = vmatpush.bf16.msra.mxu0 %v1057
        %1301 = vmatpush.bf16.msra.mxu0 %v1053
        %1302 = vmatpush.bf16.msra.mxu0 %v1049
        %1303 = vmatpush.bf16.msra.mxu0 %v1045
        %1304 = vmatpush.bf16.msra.mxu0 %v1041
        %1305 = vmatmul.bf16.gmra.mxu0 %v515
        %v1306 = vpop.f32.mrf.mxu0
        %v1307 = vadd.f32 %v649, %v1306
        %v1308 = vpop.f32.mrf.mxu0
        %1309 = vdwg.mxu0
        %1310 = vmatpush.bf16.msra.mxu0 %v1101
        %1311 = vmatpush.bf16.msra.mxu0 %v1097
        %1312 = vmatpush.bf16.msra.mxu0 %v1093
        %1313 = vmatpush.bf16.msra.mxu0 %v1089
        %1314 = vmatpush.bf16.msra.mxu0 %v1085
        %1315 = vmatpush.bf16.msra.mxu0 %v1081
        %1316 = vmatpush.bf16.msra.mxu0 %v1077
        %1317 = vmatpush.bf16.msra.mxu0 %v1073
        %1318 = vmatmul.bf16.gmra.mxu0 %v516
        %v1319 = vpop.f32.mrf.mxu0
        %v1320 = vadd.f32 %v1307, %v1319
        %v1321 = vpop.f32.mrf.mxu0
        %1322 = vdwg.mxu0
        %1323 = vmatpush.bf16.msra.mxu0 %v1133
        %1324 = vmatpush.bf16.msra.mxu0 %v1129
        %1325 = vmatpush.bf16.msra.mxu0 %v1125
        %1326 = vmatpush.bf16.msra.mxu0 %v1121
        %1327 = vmatpush.bf16.msra.mxu0 %v1117
        %1328 = vmatpush.bf16.msra.mxu0 %v1113
        %1329 = vmatpush.bf16.msra.mxu0 %v1109
        %1330 = vmatpush.bf16.msra.mxu0 %v1105
        %1331 = vmatmul.bf16.gmra.mxu0 %v517
        %v1332 = vpop.f32.mrf.mxu0
        %v1333 = vadd.f32 %v1320, %v1332
        %v1334 = vpop.f32.mrf.mxu0
        %1335 = vdwg.mxu0
        %1336 = vmatpush.bf16.msra.mxu0 %v1165
        %1337 = vmatpush.bf16.msra.mxu0 %v1161
        %1338 = vmatpush.bf16.msra.mxu0 %v1157
        %1339 = vmatpush.bf16.msra.mxu0 %v1153
        %1340 = vmatpush.bf16.msra.mxu0 %v1149
        %1341 = vmatpush.bf16.msra.mxu0 %v1145
        %1342 = vmatpush.bf16.msra.mxu0 %v1141
        %1343 = vmatpush.bf16.msra.mxu0 %v1137
        %1344 = vmatmul.bf16.gmra.mxu0 %v518
        %v1345 = vpop.f32.mrf.mxu0
        %v1346 = vadd.f32 %v1333, %v1345
        %v1347 = vpop.f32.mrf.mxu0
        %1348 = vdwg.mxu0
        %1349 = vmatpush.bf16.msra.mxu0 %v1070
        %1350 = vmatpush.bf16.msra.mxu0 %v1066
        %1351 = vmatpush.bf16.msra.mxu0 %v1062
        %1352 = vmatpush.bf16.msra.mxu0 %v1058
        %1353 = vmatpush.bf16.msra.mxu0 %v1054
        %1354 = vmatpush.bf16.msra.mxu0 %v1050
        %1355 = vmatpush.bf16.msra.mxu0 %v1046
        %1356 = vmatpush.bf16.msra.mxu0 %v1042
        %1357 = vmatmul.bf16.gmra.mxu0 %v515
        %v1358 = vpop.f32.mrf.mxu0
        %v1359 = vadd.f32 %v650, %v1358
        %v1360 = vpop.f32.mrf.mxu0
        %1361 = vdwg.mxu0
        %1362 = vmatpush.bf16.msra.mxu0 %v1102
        %1363 = vmatpush.bf16.msra.mxu0 %v1098
        %1364 = vmatpush.bf16.msra.mxu0 %v1094
        %1365 = vmatpush.bf16.msra.mxu0 %v1090
        %1366 = vmatpush.bf16.msra.mxu0 %v1086
        %1367 = vmatpush.bf16.msra.mxu0 %v1082
        %1368 = vmatpush.bf16.msra.mxu0 %v1078
        %1369 = vmatpush.bf16.msra.mxu0 %v1074
        %1370 = vmatmul.bf16.gmra.mxu0 %v516
        %v1371 = vpop.f32.mrf.mxu0
        %v1372 = vadd.f32 %v1359, %v1371
        %v1373 = vpop.f32.mrf.mxu0
        %1374 = vdwg.mxu0
        %1375 = vmatpush.bf16.msra.mxu0 %v1134
        %1376 = vmatpush.bf16.msra.mxu0 %v1130
        %1377 = vmatpush.bf16.msra.mxu0 %v1126
        %1378 = vmatpush.bf16.msra.mxu0 %v1122
        %1379 = vmatpush.bf16.msra.mxu0 %v1118
        %1380 = vmatpush.bf16.msra.mxu0 %v1114
        %1381 = vmatpush.bf16.msra.mxu0 %v1110
        %1382 = vmatpush.bf16.msra.mxu0 %v1106
        %1383 = vmatmul.bf16.gmra.mxu0 %v517
        %v1384 = vpop.f32.mrf.mxu0
        %v1385 = vadd.f32 %v1372, %v1384
        %v1386 = vpop.f32.mrf.mxu0
        %1387 = vdwg.mxu0
        %1388 = vmatpush.bf16.msra.mxu0 %v1166
        %1389 = vmatpush.bf16.msra.mxu0 %v1162
        %1390 = vmatpush.bf16.msra.mxu0 %v1158
        %1391 = vmatpush.bf16.msra.mxu0 %v1154
        %1392 = vmatpush.bf16.msra.mxu0 %v1150
        %1393 = vmatpush.bf16.msra.mxu0 %v1146
        %1394 = vmatpush.bf16.msra.mxu0 %v1142
        %1395 = vmatpush.bf16.msra.mxu0 %v1138
        %1396 = vmatmul.bf16.gmra.mxu0 %v518
        %v1397 = vpop.f32.mrf.mxu0
        %v1398 = vadd.f32 %v1385, %v1397
        %v1399 = vpop.f32.mrf.mxu0
        %1400 = vdwg.mxu0
        %1401 = vmatpush.bf16.msra.mxu0 %v1071
        %1402 = vmatpush.bf16.msra.mxu0 %v1067
        %1403 = vmatpush.bf16.msra.mxu0 %v1063
        %1404 = vmatpush.bf16.msra.mxu0 %v1059
        %1405 = vmatpush.bf16.msra.mxu0 %v1055
        %1406 = vmatpush.bf16.msra.mxu0 %v1051
        %1407 = vmatpush.bf16.msra.mxu0 %v1047
        %1408 = vmatpush.bf16.msra.mxu0 %v1043
        %1409 = vmatmul.bf16.gmra.mxu0 %v515
        %v1410 = vpop.f32.mrf.mxu0
        %v1411 = vadd.f32 %v651, %v1410
        %v1412 = vpop.f32.mrf.mxu0
        %1413 = vdwg.mxu0
        %1414 = vmatpush.bf16.msra.mxu0 %v1103
        %1415 = vmatpush.bf16.msra.mxu0 %v1099
        %1416 = vmatpush.bf16.msra.mxu0 %v1095
        %1417 = vmatpush.bf16.msra.mxu0 %v1091
        %1418 = vmatpush.bf16.msra.mxu0 %v1087
        %1419 = vmatpush.bf16.msra.mxu0 %v1083
        %1420 = vmatpush.bf16.msra.mxu0 %v1079
        %1421 = vmatpush.bf16.msra.mxu0 %v1075
        %1422 = vmatmul.bf16.gmra.mxu0 %v516
        %v1423 = vpop.f32.mrf.mxu0
        %v1424 = vadd.f32 %v1411, %v1423
        %v1425 = vpop.f32.mrf.mxu0
        %1426 = vdwg.mxu0
        %1427 = vmatpush.bf16.msra.mxu0 %v1135
        %1428 = vmatpush.bf16.msra.mxu0 %v1131
        %1429 = vmatpush.bf16.msra.mxu0 %v1127
        %1430 = vmatpush.bf16.msra.mxu0 %v1123
        %1431 = vmatpush.bf16.msra.mxu0 %v1119
        %1432 = vmatpush.bf16.msra.mxu0 %v1115
        %1433 = vmatpush.bf16.msra.mxu0 %v1111
        %1434 = vmatpush.bf16.msra.mxu0 %v1107
        %1435 = vmatmul.bf16.gmra.mxu0 %v517
        %v1436 = vpop.f32.mrf.mxu0
        %v1437 = vadd.f32 %v1424, %v1436
        %v1438 = vpop.f32.mrf.mxu0
        %1439 = vdwg.mxu0
        %1440 = vmatpush.bf16.msra.mxu0 %v1167
        %1441 = vmatpush.bf16.msra.mxu0 %v1163
        %1442 = vmatpush.bf16.msra.mxu0 %v1159
        %1443 = vmatpush.bf16.msra.mxu0 %v1155
        %1444 = vmatpush.bf16.msra.mxu0 %v1151
        %1445 = vmatpush.bf16.msra.mxu0 %v1147
        %1446 = vmatpush.bf16.msra.mxu0 %v1143
        %1447 = vmatpush.bf16.msra.mxu0 %v1139
        %1448 = vmatmul.bf16.gmra.mxu0 %v518
        %v1449 = vpop.f32.mrf.mxu0
        %v1450 = vadd.f32 %v1437, %v1449
        %v1451 = vpop.f32.mrf.mxu0
        %1452 = vdwg.mxu0
        %1453 = vmatpush.bf16.msra.mxu0 %v1072
        %1454 = vmatpush.bf16.msra.mxu0 %v1068
        %1455 = vmatpush.bf16.msra.mxu0 %v1064
        %1456 = vmatpush.bf16.msra.mxu0 %v1060
        %1457 = vmatpush.bf16.msra.mxu0 %v1056
        %1458 = vmatpush.bf16.msra.mxu0 %v1052
        %1459 = vmatpush.bf16.msra.mxu0 %v1048
        %1460 = vmatpush.bf16.msra.mxu0 %v1044
        %1461 = vmatmul.bf16.gmra.mxu0 %v515
        %v1462 = vpop.f32.mrf.mxu0
        %v1463 = vadd.f32 %v652, %v1462
        %v1464 = vpop.f32.mrf.mxu0
        %1465 = vdwg.mxu0
        %1466 = vmatpush.bf16.msra.mxu0 %v1104
        %1467 = vmatpush.bf16.msra.mxu0 %v1100
        %1468 = vmatpush.bf16.msra.mxu0 %v1096
        %1469 = vmatpush.bf16.msra.mxu0 %v1092
        %1470 = vmatpush.bf16.msra.mxu0 %v1088
        %1471 = vmatpush.bf16.msra.mxu0 %v1084
        %1472 = vmatpush.bf16.msra.mxu0 %v1080
        %1473 = vmatpush.bf16.msra.mxu0 %v1076
        %1474 = vmatmul.bf16.gmra.mxu0 %v516
        %v1475 = vpop.f32.mrf.mxu0
        %v1476 = vadd.f32 %v1463, %v1475
        %v1477 = vpop.f32.mrf.mxu0
        %1478 = vdwg.mxu0
        %1479 = vmatpush.bf16.msra.mxu0 %v1136
        %1480 = vmatpush.bf16.msra.mxu0 %v1132
        %1481 = vmatpush.bf16.msra.mxu0 %v1128
        %1482 = vmatpush.bf16.msra.mxu0 %v1124
        %1483 = vmatpush.bf16.msra.mxu0 %v1120
        %1484 = vmatpush.bf16.msra.mxu0 %v1116
        %1485 = vmatpush.bf16.msra.mxu0 %v1112
        %1486 = vmatpush.bf16.msra.mxu0 %v1108
        %1487 = vmatmul.bf16.gmra.mxu0 %v517
        %v1488 = vpop.f32.mrf.mxu0
        %v1489 = vadd.f32 %v1476, %v1488
        %v1490 = vpop.f32.mrf.mxu0
        %1491 = vdwg.mxu0
        %1492 = vmatpush.bf16.msra.mxu0 %v1168
        %1493 = vmatpush.bf16.msra.mxu0 %v1164
        %1494 = vmatpush.bf16.msra.mxu0 %v1160
        %1495 = vmatpush.bf16.msra.mxu0 %v1156
        %1496 = vmatpush.bf16.msra.mxu0 %v1152
        %1497 = vmatpush.bf16.msra.mxu0 %v1148
        %1498 = vmatpush.bf16.msra.mxu0 %v1144
        %1499 = vmatpush.bf16.msra.mxu0 %v1140
        %1500 = vmatmul.bf16.gmra.mxu0 %v518
        %v1501 = vpop.f32.mrf.mxu0
        %v1502 = vadd.f32 %v1489, %v1501
        %v1503 = vpop.f32.mrf.mxu0
        %1504 = vdwg.mxu0
        %v1505 = vmax.f32 %v1346, 0.0
        %v1506 = vmax.f32 %v1398, 0.0
        %v1507 = vmax.f32 %v1450, 0.0
        %v1508 = vmax.f32 %v1502, 0.0
        %v1509 = vpack.c.bf16 %v1505, %v1505
        %v1510 = vpack.c.bf16 %v1506, %v1506
        %v1511 = vpack.c.bf16 %v1507, %v1507
        %v1512 = vpack.c.bf16 %v1508, %v1508
        %v1513 = vld [vmem:[#allocation12] sm:$0xf]
        %v1514 = vld [vmem:[#allocation12 + $0x4] sm:$0xf]
        %v1515 = vld [vmem:[#allocation12 + $0x8] sm:$0xf]
        %v1516 = vld [vmem:[#allocation12 + $0xc] sm:$0xf]
        %v1517 = vld [vmem:[#allocation12 + $0x10] sm:$0xf]
        %v1518 = vld [vmem:[#allocation12 + $0x14] sm:$0xf]
        %v1519 = vld [vmem:[#allocation12 + $0x18] sm:$0xf]
        %v1520 = vld [vmem:[#allocation12 + $0x1c] sm:$0xf]
        %v1521 = vld [vmem:[#allocation12 + $0x20] sm:$0xf]
        %v1522 = vld [vmem:[#allocation12 + $0x24] sm:$0xf]
        %v1523 = vld [vmem:[#allocation12 + $0x28] sm:$0xf]
        %v1524 = vld [vmem:[#allocation12 + $0x2c] sm:$0xf]
        %v1525 = vld [vmem:[#allocation12 + $0x30] sm:$0xf]
        %v1526 = vld [vmem:[#allocation12 + $0x34] sm:$0xf]
        %v1527 = vld [vmem:[#allocation12 + $0x38] sm:$0xf]
        %v1528 = vld [vmem:[#allocation12 + $0x3c] sm:$0xf]
        %v1529 = vld [vmem:[#allocation12 + $0x40] sm:$0xf]
        %v1530 = vld [vmem:[#allocation12 + $0x44] sm:$0xf]
        %v1531 = vld [vmem:[#allocation12 + $0x48] sm:$0xf]
        %v1532 = vld [vmem:[#allocation12 + $0x4c] sm:$0xf]
        %v1533 = vld [vmem:[#allocation12 + $0x50] sm:$0xf]
        %v1534 = vld [vmem:[#allocation12 + $0x54] sm:$0xf]
        %v1535 = vld [vmem:[#allocation12 + $0x58] sm:$0xf]
        %v1536 = vld [vmem:[#allocation12 + $0x5c] sm:$0xf]
        %v1537 = vld [vmem:[#allocation12 + $0x60] sm:$0xf]
        %v1538 = vld [vmem:[#allocation12 + $0x64] sm:$0xf]
        %v1539 = vld [vmem:[#allocation12 + $0x68] sm:$0xf]
        %v1540 = vld [vmem:[#allocation12 + $0x6c] sm:$0xf]
        %v1541 = vld [vmem:[#allocation12 + $0x70] sm:$0xf]
        %v1542 = vld [vmem:[#allocation12 + $0x74] sm:$0xf]
        %v1543 = vld [vmem:[#allocation12 + $0x78] sm:$0xf]
        %v1544 = vld [vmem:[#allocation12 + $0x7c] sm:$0xf]
        %v1545 = vld [vmem:[#allocation12 + $0x80] sm:$0xf]
        %v1546 = vld [vmem:[#allocation12 + $0x84] sm:$0xf]
        %v1547 = vld [vmem:[#allocation12 + $0x88] sm:$0xf]
        %v1548 = vld [vmem:[#allocation12 + $0x8c] sm:$0xf]
        %v1549 = vld [vmem:[#allocation12 + $0x90] sm:$0xf]
        %v1550 = vld [vmem:[#allocation12 + $0x94] sm:$0xf]
        %v1551 = vld [vmem:[#allocation12 + $0x98] sm:$0xf]
        %v1552 = vld [vmem:[#allocation12 + $0x9c] sm:$0xf]
        %v1553 = vld [vmem:[#allocation12 + $0xa0] sm:$0xf]
        %v1554 = vld [vmem:[#allocation12 + $0xa4] sm:$0xf]
        %v1555 = vld [vmem:[#allocation12 + $0xa8] sm:$0xf]
        %v1556 = vld [vmem:[#allocation12 + $0xac] sm:$0xf]
        %v1557 = vld [vmem:[#allocation12 + $0xb0] sm:$0xf]
        %v1558 = vld [vmem:[#allocation12 + $0xb4] sm:$0xf]
        %v1559 = vld [vmem:[#allocation12 + $0xb8] sm:$0xf]
        %v1560 = vld [vmem:[#allocation12 + $0xbc] sm:$0xf]
        %v1561 = vld [vmem:[#allocation12 + $0xc0] sm:$0xf]
        %v1562 = vld [vmem:[#allocation12 + $0xc4] sm:$0xf]
        %v1563 = vld [vmem:[#allocation12 + $0xc8] sm:$0xf]
        %v1564 = vld [vmem:[#allocation12 + $0xcc] sm:$0xf]
        %v1565 = vld [vmem:[#allocation12 + $0xd0] sm:$0xf]
        %v1566 = vld [vmem:[#allocation12 + $0xd4] sm:$0xf]
        %v1567 = vld [vmem:[#allocation12 + $0xd8] sm:$0xf]
        %v1568 = vld [vmem:[#allocation12 + $0xdc] sm:$0xf]
        %v1569 = vld [vmem:[#allocation12 + $0xe0] sm:$0xf]
        %v1570 = vld [vmem:[#allocation12 + $0xe4] sm:$0xf]
        %v1571 = vld [vmem:[#allocation12 + $0xe8] sm:$0xf]
        %v1572 = vld [vmem:[#allocation12 + $0xec] sm:$0xf]
        %v1573 = vld [vmem:[#allocation12 + $0xf0] sm:$0xf]
        %v1574 = vld [vmem:[#allocation12 + $0xf4] sm:$0xf]
        %v1575 = vld [vmem:[#allocation12 + $0xf8] sm:$0xf]
        %v1576 = vld [vmem:[#allocation12 + $0xfc] sm:$0xf]
        %v1577 = vld [vmem:[%s6] sm:$0x1]
        %v1579 = vperm.slane %v1577, 0
        %v1645 = vunpack.c.l.b16 %v1513
        %v1646 = vunpack.c.l.b16 %v1514
        %v1647 = vunpack.c.l.b16 %v1515
        %v1648 = vunpack.c.l.b16 %v1516
        %v1649 = vunpack.c.l.b16 %v1517
        %v1650 = vunpack.c.l.b16 %v1518
        %v1651 = vunpack.c.l.b16 %v1519
        %v1652 = vunpack.c.l.b16 %v1520
        %v1653 = vunpack.c.l.b16 %v1521
        %v1654 = vunpack.c.l.b16 %v1522
        %v1655 = vunpack.c.l.b16 %v1523
        %v1656 = vunpack.c.l.b16 %v1524
        %v1657 = vunpack.c.l.b16 %v1525
        %v1658 = vunpack.c.l.b16 %v1526
        %v1659 = vunpack.c.l.b16 %v1527
        %v1660 = vunpack.c.l.b16 %v1528
        %v1661 = vunpack.c.l.b16 %v1529
        %v1662 = vunpack.c.l.b16 %v1530
        %v1663 = vunpack.c.l.b16 %v1531
        %v1664 = vunpack.c.l.b16 %v1532
        %v1665 = vunpack.c.l.b16 %v1533
        %v1666 = vunpack.c.l.b16 %v1534
        %v1667 = vunpack.c.l.b16 %v1535
        %v1668 = vunpack.c.l.b16 %v1536
        %v1669 = vunpack.c.l.b16 %v1537
        %v1670 = vunpack.c.l.b16 %v1538
        %v1671 = vunpack.c.l.b16 %v1539
        %v1672 = vunpack.c.l.b16 %v1540
        %v1673 = vunpack.c.l.b16 %v1541
        %v1674 = vunpack.c.l.b16 %v1542
        %v1675 = vunpack.c.l.b16 %v1543
        %v1676 = vunpack.c.l.b16 %v1544
        %v1677 = vunpack.c.l.b16 %v1545
        %v1678 = vunpack.c.l.b16 %v1546
        %v1679 = vunpack.c.l.b16 %v1547
        %v1680 = vunpack.c.l.b16 %v1548
        %v1681 = vunpack.c.l.b16 %v1549
        %v1682 = vunpack.c.l.b16 %v1550
        %v1683 = vunpack.c.l.b16 %v1551
        %v1684 = vunpack.c.l.b16 %v1552
        %v1685 = vunpack.c.l.b16 %v1553
        %v1686 = vunpack.c.l.b16 %v1554
        %v1687 = vunpack.c.l.b16 %v1555
        %v1688 = vunpack.c.l.b16 %v1556
        %v1689 = vunpack.c.l.b16 %v1557
        %v1690 = vunpack.c.l.b16 %v1558
        %v1691 = vunpack.c.l.b16 %v1559
        %v1692 = vunpack.c.l.b16 %v1560
        %v1693 = vunpack.c.l.b16 %v1561
        %v1694 = vunpack.c.l.b16 %v1562
        %v1695 = vunpack.c.l.b16 %v1563
        %v1696 = vunpack.c.l.b16 %v1564
        %v1697 = vunpack.c.l.b16 %v1565
        %v1698 = vunpack.c.l.b16 %v1566
        %v1699 = vunpack.c.l.b16 %v1567
        %v1700 = vunpack.c.l.b16 %v1568
        %v1701 = vunpack.c.l.b16 %v1569
        %v1702 = vunpack.c.l.b16 %v1570
        %v1703 = vunpack.c.l.b16 %v1571
        %v1704 = vunpack.c.l.b16 %v1572
        %v1705 = vunpack.c.l.b16 %v1573
        %v1706 = vunpack.c.l.b16 %v1574
        %v1707 = vunpack.c.l.b16 %v1575
        %v1708 = vunpack.c.l.b16 %v1576
        %v1709 = vpack.c.b16 %v1646, %v1645
        %v1710 = vpack.c.b16 %v1648, %v1647
        %v1711 = vpack.c.b16 %v1650, %v1649
        %v1712 = vpack.c.b16 %v1652, %v1651
        %v1713 = vpack.c.b16 %v1654, %v1653
        %v1714 = vpack.c.b16 %v1656, %v1655
        %v1715 = vpack.c.b16 %v1658, %v1657
        %v1716 = vpack.c.b16 %v1660, %v1659
        %v1717 = vpack.c.b16 %v1662, %v1661
        %v1718 = vpack.c.b16 %v1664, %v1663
        %v1719 = vpack.c.b16 %v1666, %v1665
        %v1720 = vpack.c.b16 %v1668, %v1667
        %v1721 = vpack.c.b16 %v1670, %v1669
        %v1722 = vpack.c.b16 %v1672, %v1671
        %v1723 = vpack.c.b16 %v1674, %v1673
        %v1724 = vpack.c.b16 %v1676, %v1675
        %v1725 = vpack.c.b16 %v1678, %v1677
        %v1726 = vpack.c.b16 %v1680, %v1679
        %v1727 = vpack.c.b16 %v1682, %v1681
        %v1728 = vpack.c.b16 %v1684, %v1683
        %v1729 = vpack.c.b16 %v1686, %v1685
        %v1730 = vpack.c.b16 %v1688, %v1687
        %v1731 = vpack.c.b16 %v1690, %v1689
        %v1732 = vpack.c.b16 %v1692, %v1691
        %v1733 = vpack.c.b16 %v1694, %v1693
        %v1734 = vpack.c.b16 %v1696, %v1695
        %v1735 = vpack.c.b16 %v1698, %v1697
        %v1736 = vpack.c.b16 %v1700, %v1699
        %v1737 = vpack.c.b16 %v1702, %v1701
        %v1738 = vpack.c.b16 %v1704, %v1703
        %v1739 = vpack.c.b16 %v1706, %v1705
        %v1740 = vpack.c.b16 %v1708, %v1707
        %1773 = vmatpush.bf16.msra.mxu0 %v1716
        %1774 = vmatpush.bf16.msra.mxu0 %v1715
        %1775 = vmatpush.bf16.msra.mxu0 %v1714
        %1776 = vmatpush.bf16.msra.mxu0 %v1713
        %1777 = vmatpush.bf16.msra.mxu0 %v1712
        %1778 = vmatpush.bf16.msra.mxu0 %v1711
        %1779 = vmatpush.bf16.msra.mxu0 %v1710
        %1780 = vmatpush.bf16.msra.mxu0 %v1709
        %1781 = vmatmul.bf16.gmra.mxu0 %v1509
        %v1782 = vpop.f32.mrf.mxu0
        %v1783 = vadd.f32 %v1579, %v1782
        %v1784 = vpop.f32.mrf.mxu0
        %1785 = vdwg.mxu0
        %1786 = vmatpush.bf16.msra.mxu0 %v1724
        %1787 = vmatpush.bf16.msra.mxu0 %v1723
        %1788 = vmatpush.bf16.msra.mxu0 %v1722
        %1789 = vmatpush.bf16.msra.mxu0 %v1721
        %1790 = vmatpush.bf16.msra.mxu0 %v1720
        %1791 = vmatpush.bf16.msra.mxu0 %v1719
        %1792 = vmatpush.bf16.msra.mxu0 %v1718
        %1793 = vmatpush.bf16.msra.mxu0 %v1717
        %1794 = vmatmul.bf16.gmra.mxu0 %v1510
        %v1795 = vpop.f32.mrf.mxu0
        %v1796 = vadd.f32 %v1783, %v1795
        %v1797 = vpop.f32.mrf.mxu0
        %1798 = vdwg.mxu0
        %1799 = vmatpush.bf16.msra.mxu0 %v1732
        %1800 = vmatpush.bf16.msra.mxu0 %v1731
        %1801 = vmatpush.bf16.msra.mxu0 %v1730
        %1802 = vmatpush.bf16.msra.mxu0 %v1729
        %1803 = vmatpush.bf16.msra.mxu0 %v1728
        %1804 = vmatpush.bf16.msra.mxu0 %v1727
        %1805 = vmatpush.bf16.msra.mxu0 %v1726
        %1806 = vmatpush.bf16.msra.mxu0 %v1725
        %1807 = vmatmul.bf16.gmra.mxu0 %v1511
        %v1808 = vpop.f32.mrf.mxu0
        %v1809 = vadd.f32 %v1796, %v1808
        %v1810 = vpop.f32.mrf.mxu0
        %1811 = vdwg.mxu0
        %1812 = vmatpush.bf16.msra.mxu0 %v1740
        %1813 = vmatpush.bf16.msra.mxu0 %v1739
        %1814 = vmatpush.bf16.msra.mxu0 %v1738
        %1815 = vmatpush.bf16.msra.mxu0 %v1737
        %1816 = vmatpush.bf16.msra.mxu0 %v1736
        %1817 = vmatpush.bf16.msra.mxu0 %v1735
        %1818 = vmatpush.bf16.msra.mxu0 %v1734
        %1819 = vmatpush.bf16.msra.mxu0 %v1733
        %1820 = vmatmul.bf16.gmra.mxu0 %v1512
        %v1821 = vpop.f32.mrf.mxu0
        %v1822 = vadd.f32 %v1809, %v1821
        %v1823 = vpop.f32.mrf.mxu0
        %1824 = vdwg.mxu0
        %v1825 = vxor.u32 %v1822, 2147483648
        %v1826 = vmul.f32 %v1825, 1.442695
        %v1827 = vpow.pop %v1826
        %v1828 = vadd.f32 %v1827, 1.0
        %v1829 = vrcp.pop %v1828
        %v1830 = vmul.f32 %v1828, %v1829
        %v1831 = vsub.f32 1.0, %v1830
        %v1832 = vmul.f32 %v1829, %v1831
        %v1833 = vadd.f32 %v1829, %v1832
        %vm1834 = vweird.f32 %v1828
        %vm1835 = vweird.f32 %v1829
        %vm1836 = vmor %vm1834, %vm1835
        %v1837 = vsel %vm1836, %v1829, %v1833
        %v1838 = vand.u32 2147483647, %v1828
        %vm1839 = vcmp.eq.f32.partialorder %v1838, 8.507059e+37
        %v1840 = vand.u32 %v1828, 2147483648
        %v1841 = vor.u32 1.1754944e-38, %v1840
        %v1842 = vsel %vm1839, %v1841, %v1837
        %v1843 = vmul.f32 1.0, %v1842
        %v1844 = vld [vmem:[#allocation2] sm:$0x1]
        %v1845 = vrot.slane %v1843, 4
        %v1846 = vadd.f32 %v1843, %v1845
        %v1847 = vrot.slane %v1846, 2
        %v1848 = vadd.f32 %v1846, %v1847
        %v1849 = vrot.slane %v1848, 1
        %v1850 = vadd.f32 %v1848, %v1849
        %v1851 = vadd.f32 %v1844, %v1850
        %1852 = vst [vmem:[#allocation2] sm:$0x1] %v1851
        // Predicated region
        $region77: #{tpu_custom_call.1} parent=47 // pred_check
          %p1853 = pneg %p390
        $region78: #{tpu_custom_call.1} parent=47 // pred_check_branch
          %1855 = sbr.rel (%p1853) target = $region80
        $region79: #{tpu_custom_call.1} parent=47 // pred_region
          %v1856 = vld [vmem:[#allocation2] sm:$0x1]
          %v1857 = vmul.f32 %v1856, 0.125
          %1858 = vst [vmem:[%s388] sm:$0x1] %v1857
        $region80: #{tpu_custom_call.1} parent=47 // pred_fallthru
          _
        %s1859 = sand.u32 %s201, 1
        %s1860 = scalar_lea.sflag [#allocation5], %s1859
        %s1861 = sand.u32 %s201, 1
        %s1862 = scalar_lea.vmem [#allocation14], %s1861
        // Predicated region
        $region81: #{tpu_custom_call.1} parent=47 // pred_check
          %p1863 = pneg %p211
        $region82: #{tpu_custom_call.1} parent=47 // pred_check_branch
          %1865 = sbr.rel (%p1863) target = $region84
        $region83: #{tpu_custom_call.1} parent=47 // pred_region
          %1867 = vsyncadd %s1860, 0
          %s1868 = scalar_lea.hbm %s7, %s31
          %s1870 = sshll.u32 %s1862, 4
          %s1871 = int_to_ptr.vmem [resolvable:$true] %s1870
          %s1872 = sshll.u32 %s1868, 4
          %s1873 = int_to_ptr.hbm [resolvable:$true] %s1872
          %1875 = dma.vmem_to_hbm [thread:$0]  %s1871, 16, %s1873, %s1860
        $region84: #{tpu_custom_call.1} parent=47 // pred_fallthru
          _
      $region48: #{tpu_custom_call.1} parent=5 // pred_fallthru
        _
      %p1876 = scmp.le.s32.totalorder 2, %s22
      // Predicated region
      $region85: #{tpu_custom_call.1} parent=5 // pred_check
        %p1877 = pneg %p1876
      $region86: #{tpu_custom_call.1} parent=5 // pred_check_branch
        %1879 = sbr.rel (%p1877) target = $region88
      $region87: #{tpu_custom_call.1} parent=5 // pred_region
        %s1880 = ssub.s32 %s22, 2
        // Predicated region
        $region89: #{tpu_custom_call.1} parent=87 // pred_check
          %p1881 = pneg %p217
        $region90: #{tpu_custom_call.1} parent=87 // pred_check_branch
          %1883 = sbr.rel (%p1881) target = $region92
        $region91: #{tpu_custom_call.1} parent=87 // pred_region
          %s1884 = sand.u32 %s202, 1
          %s1885 = scalar_lea.sflag [#allocation5], %s1884
          %s1886 = sand.u32 %s202, 1
          %s1887 = scalar_lea.vmem [#allocation14], %s1886
          %1889 = dma.done %s1885, 16
        $region92: #{tpu_custom_call.1} parent=87 // pred_fallthru
          _
      $region88: #{tpu_custom_call.1} parent=5 // pred_fallthru
        _
    $region6: #{tpu_custom_call.1} parent=1 // loop_footer
      %s26 = sadd.s32 1, %s22
    $region7: #{tpu_custom_call.1} parent=1 // loop_footer_branch
      %21 = sbr.rel target = $region3
    $region8: #{tpu_custom_call.1} parent=1 // loop_exit
      _
    %1890 = vsyncpa [#allocation4], 1
    %s1891 = scalar_lea.sflag [#allocation4], 1
    %1892 = vsyncpa %s1891, 1
    %1893 = vsyncpa [#allocation7], 1
    %1894 = vsyncpa [#allocation10], 1
    %1895 = vsyncpa [#allocation13], 1
    %1896 = vsyncpa [#allocation5], 1
    %s1897 = scalar_lea.sflag [#allocation5], 1
    %1898 = vsyncpa %s1897, 1

// kernel: tpu_custom_call.1
$region0: #{tpu_custom_call.1}
  #allocation0 [shape = 'u32[]', space=smem, size = 0x4, offset = 0x4, fixed_abs, tag = 'smem constant byte address 0x4 - core index']
  #allocation1 [shape = 'u32[72,128]{1,0:T(1,128)}', space=vmem, size = 0x9000, scoped, tag = 'internal scratch']
  #allocation2 [shape = 'f32[1,128]{1,0:T(1,128)}', space=vmem, size = 0x200, scoped, tag = 'scratch operand']
  %s0 = inlined_call_operand.hbm [shape: f32[2,8,32], index: 0, kind: input, shape index: {}]
  %s1 = inlined_call_operand.hbm [shape: bf16[32,512], index: 1, kind: input, shape index: {}]
  %s2 = inlined_call_operand.hbm [shape: f32[1,512], index: 2, kind: input, shape index: {}]
  %s3 = inlined_call_operand.hbm [shape: bf16[512,512], index: 3, kind: input, shape index: {}]
  %s4 = inlined_call_operand.hbm [shape: f32[1,512], index: 4, kind: input, shape index: {}]
  %s5 = inlined_call_operand.hbm [shape: bf16[512,128], index: 5, kind: input, shape index: {}]
  %s6 = inlined_call_operand.vmem [shape: f32[1,128], index: 6, kind: input, shape index: {}]
  %s7 = inlined_call_operand.hbm [shape: f32[2,1,128], index: 7, kind: output, shape index: {}]
  %s8 = sld [smem:[#allocation0]]
  $region93: #{tpu_custom_call.1} parent=0
    _
  %s10 = ssub.s32 1, %s8
  %s11 = scalar_select 0, %s10, %s8
  $region1: #{tpu_custom_call.1} parent=0
    #allocation3 [shape = 'u8[8192]{0}', space=vmem, size = 0x2000, scoped, tag = 'input window, operand 0']
    #allocation4 [shape = 's32[2]{0}', space=sflag, size = 0x8, scoped, tag = 'scoped memory for tpu_custom_call.1']
    #allocation5 [shape = 's32[2]{0}', space=sflag, size = 0x8, scoped, tag = 'scoped memory for tpu_custom_call.1']
    #allocation6 [shape = 'u8[32768]{0}', space=vmem, size = 0x8000, scoped, tag = 'input window, operand 1, single buffered']
    #allocation7 [shape = 's32[1]{0}', space=sflag, size = 0x4, scoped, tag = 'scoped memory for tpu_custom_call.1']
    #allocation8 [shape = 'u8[2048]{0}', space=vmem, size = 0x800, scoped, tag = 'input window, operand 2, single buffered']
    #allocation9 [shape = 'u8[524288]{0}', space=vmem, size = 0x80000, scoped, tag = 'input window, operand 3, single buffered']
    #allocation10 [shape = 's32[1]{0}', space=sflag, size = 0x4, scoped, tag = 'scoped memory for tpu_custom_call.1']
    #allocation11 [shape = 'u8[2048]{0}', space=vmem, size = 0x800, scoped, tag = 'input window, operand 4, single buffered']
    #allocation12 [shape = 'u8[131072]{0}', space=vmem, size = 0x20000, scoped, tag = 'input window, operand 5, single buffered']
    #allocation13 [shape = 's32[1]{0}', space=sflag, size = 0x4, scoped, tag = 'scoped memory for tpu_custom_call.1']
    #allocation14 [shape = 'u8[1024]{0}', space=vmem, size = 0x400, scoped, tag = 'output window, operand 0']
    %12 = vsyncpa [#allocation4], 0
    %s13 = scalar_lea.sflag [#allocation4], 1
    %14 = vsyncpa %s13, 0
    %15 = vsyncpa [#allocation7], 0
    %16 = vsyncpa [#allocation10], 0
    %17 = vsyncpa [#allocation13], 0
    %18 = vsyncpa [#allocation5], 0
    %s19 = scalar_lea.sflag [#allocation5], 1
    %20 = vsyncpa %s19, 0
    loop: start=0, step=1, limit=4
    $region2: #{tpu_custom_call.1} parent=1 // loop_pre_header
      _
    $region3: #{tpu_custom_call.1} parent=1 // loop_header
      %s22 = sphi 0, %s26
      %p23 = scmp.ge.s32.totalorder %s22, 4
      %s29 = sphi 0, %s41
      %s30 = sphi 0, %s37
      %s31 = sphi 0, %s29
      %s32 = sphi 0, %s30
      %s33 = sphi 0, %s31
      %s34 = sphi 0, %s32
      %s46 = sphi 0, %s48
      %s49 = sphi 0, %s46
      %s50 = sphi 0, %s49
      %s66 = sphi 0, %s50
      %s70 = sphi 0, %s70
      %s72 = sphi 0, %s70
      %s73 = sphi 0, %s72
      %s87 = sphi 0, %s73
      %s91 = sphi 0, %s91
      %s93 = sphi 0, %s91
      %s94 = sphi 0, %s93
      %s108 = sphi 0, %s94
      %s112 = sphi 0, %s112
      %s114 = sphi 0, %s112
      %s115 = sphi 0, %s114
      %s129 = sphi 0, %s115
      %s133 = sphi 0, %s133
      %s135 = sphi 0, %s133
      %s136 = sphi 0, %s135
      %s150 = sphi 0, %s136
      %s154 = sphi 0, %s154
      %s156 = sphi 0, %s154
      %s157 = sphi 0, %s156
      %s171 = sphi 0, %s157
      %s175 = sphi 0, %s175
      %s177 = sphi 0, %s175
      %s178 = sphi 0, %s177
      %s192 = sphi 0, %s178
      %s198 = sphi 0, %s200
      %s201 = sphi 0, %s198
      %s202 = sphi 0, %s201
      %s218 = sphi 0, %s202
    $region4: #{tpu_custom_call.1} parent=1 // loop_header_branch
      %25 = sbr.rel (%p23) target = $region8
    $region5: #{tpu_custom_call.1} parent=1 // loop_body
      %s27 = ssub.s32 %s22, 1
      %s28 = ssub.s32 %s22, 2
      %s35 = sadd.s32 1, %s30
      %p36 = scmp.ge.s32.totalorder %s35, 1
      %s37 = scalar_select %p36, 0, %s35
      %s38 = sadd.s32 1, %s29
      %s39 = scalar_select %p36, %s38, %s29
      %p40 = scmp.ge.s32.totalorder %s39, 2
      %s41 = scalar_select %p40, 0, %s39
      %s42 = ssub.s32 %s29, %s41
      %s43 = ssub.s32 %s30, %s37
      %s44 = sor.u32 %s42, %s43
      %p45 = scmp.eq.s32.totalorder %s44, 0
      %s47 = sadd.s32 %s46, 1
      %s48 = scalar_select %p45, %s46, %s47
      %p51 = pneg %p45
      %p52 = scmp.eq.s32.totalorder %s22, 1
      %p53 = por %p51, %p52
      %p54 = scmp.ne.s32.totalorder %s46, %s49
      %p55 = scmp.eq.s32.totalorder %s22, 0
      %p56 = por %p54, %p55
      %p57 = scmp.ne.s32.totalorder %s46, %s49
      %p58 = scmp.eq.s32.totalorder %s27, 1
      %p59 = por %p57, %p58
      %p60 = scmp.ne.s32.totalorder %s49, %s50
      %p61 = scmp.eq.s32.totalorder %s27, 0
      %p62 = por %p60, %p61
      %p63 = scmp.ne.s32.totalorder %s49, %s50
      %p64 = scmp.eq.s32.totalorder %s28, 1
      %p65 = por %p63, %p64
      %p67 = scmp.ne.s32.totalorder %s50, %s66
      %p68 = scmp.eq.s32.totalorder %s28, 0
      %p69 = por %p67, %p68
      %s71 = sadd.s32 %s70, 1
      %p74 = scmp.eq.s32.totalorder %s22, 1
      %p75 = scmp.ne.s32.totalorder %s70, %s72
      %p76 = scmp.eq.s32.totalorder %s22, 0
      %p77 = por %p75, %p76
      %p78 = scmp.ne.s32.totalorder %s70, %s72
      %p79 = scmp.eq.s32.totalorder %s27, 1
      %p80 = por %p78, %p79
      %p81 = scmp.ne.s32.totalorder %s72, %s73
      %p82 = scmp.eq.s32.totalorder %s27, 0
      %p83 = por %p81, %p82
      %p84 = scmp.ne.s32.totalorder %s72, %s73
      %p85 = scmp.eq.s32.totalorder %s28, 1
      %p86 = por %p84, %p85
      %p88 = scmp.ne.s32.totalorder %s73, %s87
      %p89 = scmp.eq.s32.totalorder %s28, 0
      %p90 = por %p88, %p89
      %s92 = sadd.s32 %s91, 1
      %p95 = scmp.eq.s32.totalorder %s22, 1
      %p96 = scmp.ne.s32.totalorder %s91, %s93
      %p97 = scmp.eq.s32.totalorder %s22, 0
      %p98 = por %p96, %p97
      %p99 = scmp.ne.s32.totalorder %s91, %s93
      %p100 = scmp.eq.s32.totalorder %s27, 1
      %p101 = por %p99, %p100
      %p102 = scmp.ne.s32.totalorder %s93, %s94
      %p103 = scmp.eq.s32.totalorder %s27, 0
      %p104 = por %p102, %p103
      %p105 = scmp.ne.s32.totalorder %s93, %s94
      %p106 = scmp.eq.s32.totalorder %s28, 1
      %p107 = por %p105, %p106
      %p109 = scmp.ne.s32.totalorder %s94, %s108
      %p110 = scmp.eq.s32.totalorder %s28, 0
      %p111 = por %p109, %p110
      %s113 = sadd.s32 %s112, 1
      %p116 = scmp.eq.s32.totalorder %s22, 1
      %p117 = scmp.ne.s32.totalorder %s112, %s114
      %p118 = scmp.eq.s32.totalorder %s22, 0
      %p119 = por %p117, %p118
      %p120 = scmp.ne.s32.totalorder %s112, %s114
      %p121 = scmp.eq.s32.totalorder %s27, 1
      %p122 = por %p120, %p121
      %p123 = scmp.ne.s32.totalorder %s114, %s115
      %p124 = scmp.eq.s32.totalorder %s27, 0
      %p125 = por %p123, %p124
      %p126 = scmp.ne.s32.totalorder %s114, %s115
      %p127 = scmp.eq.s32.totalorder %s28, 1
      %p128 = por %p126, %p127
      %p130 = scmp.ne.s32.totalorder %s115, %s129
      %p131 = scmp.eq.s32.totalorder %s28, 0
      %p132 = por %p130, %p131
      %s134 = sadd.s32 %s133, 1
      %p137 = scmp.eq.s32.totalorder %s22, 1
      %p138 = scmp.ne.s32.totalorder %s133, %s135
      %p139 = scmp.eq.s32.totalorder %s22, 0
      %p140 = por %p138, %p139
      %p141 = scmp.ne.s32.totalorder %s133, %s135
      %p142 = scmp.eq.s32.totalorder %s27, 1
      %p143 = por %p141, %p142
      %p144 = scmp.ne.s32.totalorder %s135, %s136
      %p145 = scmp.eq.s32.totalorder %s27, 0
      %p146 = por %p144, %p145
      %p147 = scmp.ne.s32.totalorder %s135, %s136
      %p148 = scmp.eq.s32.totalorder %s28, 1
      %p149 = por %p147, %p148
      %p151 = scmp.ne.s32.totalorder %s136, %s150
      %p152 = scmp.eq.s32.totalorder %s28, 0
      %p153 = por %p151, %p152
      %s155 = sadd.s32 %s154, 1
      %p158 = scmp.eq.s32.totalorder %s22, 1
      %p159 = scmp.ne.s32.totalorder %s154, %s156
      %p160 = scmp.eq.s32.totalorder %s22, 0
      %p161 = por %p159, %p160
      %p162 = scmp.ne.s32.totalorder %s154, %s156
      %p163 = scmp.eq.s32.totalorder %s27, 1
      %p164 = por %p162, %p163
      %p165 = scmp.ne.s32.totalorder %s156, %s157
      %p166 = scmp.eq.s32.totalorder %s27, 0
      %p167 = por %p165, %p166
      %p168 = scmp.ne.s32.totalorder %s156, %s157
      %p169 = scmp.eq.s32.totalorder %s28, 1
      %p170 = por %p168, %p169
      %p172 = scmp.ne.s32.totalorder %s157, %s171
      %p173 = scmp.eq.s32.totalorder %s28, 0
      %p174 = por %p172, %p173
      %s176 = sadd.s32 %s175, 1
      %p179 = scmp.eq.s32.totalorder %s22, 1
      %p180 = scmp.ne.s32.totalorder %s175, %s177
      %p181 = scmp.eq.s32.totalorder %s22, 0
      %p182 = por %p180, %p181
      %p183 = scmp.ne.s32.totalorder %s175, %s177
      %p184 = scmp.eq.s32.totalorder %s27, 1
      %p185 = por %p183, %p184
      %p186 = scmp.ne.s32.totalorder %s177, %s178
      %p187 = scmp.eq.s32.totalorder %s27, 0
      %p188 = por %p186, %p187
      %p189 = scmp.ne.s32.totalorder %s177, %s178
      %p190 = scmp.eq.s32.totalorder %s28, 1
      %p191 = por %p189, %p190
      %p193 = scmp.ne.s32.totalorder %s178, %s192
      %p194 = scmp.eq.s32.totalorder %s28, 0
      %p195 = por %p193, %p194
      %s196 = ssub.s32 %s29, %s41
      %p197 = scmp.eq.s32.totalorder %s196, 0
      %s199 = sadd.s32 %s198, 1
      %s200 = scalar_select %p197, %s198, %s199
      %p203 = pneg %p197
      %p204 = scmp.eq.s32.totalorder %s22, 1
      %p205 = por %p203, %p204
      %p206 = scmp.ne.s32.totalorder %s198, %s201
      %p207 = scmp.eq.s32.totalorder %s22, 0
      %p208 = por %p206, %p207
      %p209 = scmp.ne.s32.totalorder %s198, %s201
      %p210 = scmp.eq.s32.totalorder %s27, 1
      %p211 = por %p209, %p210
      %p212 = scmp.ne.s32.totalorder %s201, %s202
      %p213 = scmp.eq.s32.totalorder %s27, 0
      %p214 = por %p212, %p213
      %p215 = scmp.ne.s32.totalorder %s201, %s202
      %p216 = scmp.eq.s32.totalorder %s28, 1
      %p217 = por %p215, %p216
      %p219 = scmp.ne.s32.totalorder %s202, %s218
      %p220 = scmp.eq.s32.totalorder %s28, 0
      %p221 = por %p219, %p220
      %p222 = scmp.le.s32.totalorder 1, %s22
      %p223 = scmp.lt.s32.totalorder %s22, 3
      %p224 = pnand %p222, %p223
      %p225 = pneg %p224
      // Predicated region
      $region9: #{tpu_custom_call.1} parent=5 // pred_check
        _
      $region10: #{tpu_custom_call.1} parent=5 // pred_check_branch
        %227 = sbr.rel (%p224) target = $region12
      $region11: #{tpu_custom_call.1} parent=5 // pred_region
        %s228 = ssub.s32 %s22, 1
        // Predicated region
        $region13: #{tpu_custom_call.1} parent=11 // pred_check
          %p229 = pneg %p83
        $region14: #{tpu_custom_call.1} parent=11 // pred_check_branch
          %231 = sbr.rel (%p229) target = $region16
        $region15: #{tpu_custom_call.1} parent=11 // pred_region
          %233 = vsyncadd [#allocation7], 0
          %s234 = sshll.u32 %s1, 4
          %s235 = int_to_ptr.hbm [resolvable:$true] %s234
          %s236 = sshll.u32 [#allocation6], 4
          %s237 = int_to_ptr.vmem [resolvable:$true] %s236
          %242 = dma.hbm_to_vmem [thread:$0]  %s235, 1024, %s237, [#allocation7], 256, 256, 16
        $region16: #{tpu_custom_call.1} parent=11 // pred_fallthru
          _
        // Predicated region
        $region17: #{tpu_custom_call.1} parent=11 // pred_check
          %p243 = pneg %p104
        $region18: #{tpu_custom_call.1} parent=11 // pred_check_branch
          %245 = sbr.rel (%p243) target = $region20
        $region19: #{tpu_custom_call.1} parent=11 // pred_region
          %247 = vsyncadd [#allocation7], 0
          %s249 = sshll.u32 %s2, 4
          %s250 = int_to_ptr.hbm [resolvable:$true] %s249
          %s251 = sshll.u32 [#allocation8], 4
          %s252 = int_to_ptr.vmem [resolvable:$true] %s251
          %254 = dma.hbm_to_vmem [thread:$0]  %s250, 64, %s252, [#allocation7]
        $region20: #{tpu_custom_call.1} parent=11 // pred_fallthru
          _
        // Predicated region
        $region21: #{tpu_custom_call.1} parent=11 // pred_check
          %p255 = pneg %p125
        $region22: #{tpu_custom_call.1} parent=11 // pred_check_branch
          %257 = sbr.rel (%p255) target = $region24
        $region23: #{tpu_custom_call.1} parent=11 // pred_region
          %259 = vsyncadd [#allocation10], 0
          %s260 = sshll.u32 %s3, 4
          %s261 = int_to_ptr.hbm [resolvable:$true] %s260
          %s262 = sshll.u32 [#allocation9], 4
          %s263 = int_to_ptr.vmem [resolvable:$true] %s262
          %268 = dma.hbm_to_vmem [thread:$0]  %s261, 16384, %s263, [#allocation10], 256, 256, 16
        $region24: #{tpu_custom_call.1} parent=11 // pred_fallthru
          _
        // Predicated region
        $region25: #{tpu_custom_call.1} parent=11 // pred_check
          %p269 = pneg %p146
        $region26: #{tpu_custom_call.1} parent=11 // pred_check_branch
          %271 = sbr.rel (%p269) target = $region28
        $region27: #{tpu_custom_call.1} parent=11 // pred_region
          %273 = vsyncadd [#allocation10], 0
          %s275 = sshll.u32 %s4, 4
          %s276 = int_to_ptr.hbm [resolvable:$true] %s275
          %s277 = sshll.u32 [#allocation11], 4
          %s278 = int_to_ptr.vmem [resolvable:$true] %s277
          %280 = dma.hbm_to_vmem [thread:$0]  %s276, 64, %s278, [#allocation10]
        $region28: #{tpu_custom_call.1} parent=11 // pred_fallthru
          _
        // Predicated region
        $region29: #{tpu_custom_call.1} parent=11 // pred_check
          %p281 = pneg %p167
        $region30: #{tpu_custom_call.1} parent=11 // pred_check_branch
          %283 = sbr.rel (%p281) target = $region32
        $region31: #{tpu_custom_call.1} parent=11 // pred_region
          %285 = vsyncadd [#allocation13], 0
          %s286 = sshll.u32 %s5, 4
          %s287 = int_to_ptr.hbm [resolvable:$true] %s286
          %s288 = sshll.u32 [#allocation12], 4
          %s289 = int_to_ptr.vmem [resolvable:$true] %s288
          %294 = dma.hbm_to_vmem [thread:$0]  %s287, 4096, %s289, [#allocation13], 64, 64, 4
        $region32: #{tpu_custom_call.1} parent=11 // pred_fallthru
          _
        // Predicated region
        $region33: #{tpu_custom_call.1} parent=11 // pred_check
          %p295 = pneg %p188
        $region34: #{tpu_custom_call.1} parent=11 // pred_check_branch
          %297 = sbr.rel (%p295) target = $region36
        $region35: #{tpu_custom_call.1} parent=11 // pred_region
          _
        $region36: #{tpu_custom_call.1} parent=11 // pred_fallthru
          _
      $region12: #{tpu_custom_call.1} parent=5 // pred_fallthru
        _
      %p298 = scmp.lt.s32.totalorder %s22, 2
      // Predicated region
      $region37: #{tpu_custom_call.1} parent=5 // pred_check
        %p299 = pneg %p298
      $region38: #{tpu_custom_call.1} parent=5 // pred_check_branch
        %301 = sbr.rel (%p299) target = $region40
      $region39: #{tpu_custom_call.1} parent=5 // pred_region
        // Predicated region
        $region41: #{tpu_custom_call.1} parent=39 // pred_check
          %p302 = pneg %p56
        $region42: #{tpu_custom_call.1} parent=39 // pred_check_branch
          %304 = sbr.rel (%p302) target = $region44
        $region43: #{tpu_custom_call.1} parent=39 // pred_region
          %s305 = sand.u32 %s46, 1
          %s306 = scalar_lea.sflag [#allocation4], %s305
          %s307 = sand.u32 %s46, 1
          %s308 = smul.addr %s307, 8
          %s309 = scalar_lea.vmem [#allocation3], %s308
          %311 = vsyncadd %s306, 0
          %s312 = sadd.s32 %s30, %s29
          %s313 = smul.addr %s312, 8
          %s314 = scalar_lea.hbm %s0, %s313
          %s316 = sshll.u32 %s314, 4
          %s317 = int_to_ptr.hbm [resolvable:$true] %s316
          %s318 = sshll.u32 %s309, 4
          %s319 = int_to_ptr.vmem [resolvable:$true] %s318
          %321 = dma.hbm_to_vmem [thread:$0]  %s317, 128, %s319, %s306
        $region44: #{tpu_custom_call.1} parent=39 // pred_fallthru
          _
      $region40: #{tpu_custom_call.1} parent=5 // pred_fallthru
        _
      %p322 = scmp.le.s32.totalorder 1, %s22
      %p323 = scmp.lt.s32.totalorder %s22, 3
      %p324 = pnand %p322, %p323
      %p325 = pneg %p324
      // Predicated region
      $region45: #{tpu_custom_call.1} parent=5 // pred_check
        _
      $region46: #{tpu_custom_call.1} parent=5 // pred_check_branch
        %327 = sbr.rel (%p324) target = $region48
      $region47: #{tpu_custom_call.1} parent=5 // pred_region
        %s328 = ssub.s32 %s22, 1
        %s329 = sand.u32 %s49, 1
        %s330 = scalar_lea.sflag [#allocation4], %s329
        %s331 = sand.u32 %s49, 1
        %s332 = smul.addr %s331, 8
        %s333 = scalar_lea.vmem [#allocation3], %s332
        // Predicated region
        $region49: #{tpu_custom_call.1} parent=47 // pred_check
          %p334 = pneg %p62
        $region50: #{tpu_custom_call.1} parent=47 // pred_check_branch
          %336 = sbr.rel (%p334) target = $region52
        $region51: #{tpu_custom_call.1} parent=47 // pred_region
          %338 = dma.done %s330, 128
        $region52: #{tpu_custom_call.1} parent=47 // pred_fallthru
          _
        // Predicated region
        $region53: #{tpu_custom_call.1} parent=47 // pred_check
          %p339 = pneg %p83
        $region54: #{tpu_custom_call.1} parent=47 // pred_check_branch
          %341 = sbr.rel (%p339) target = $region56
        $region55: #{tpu_custom_call.1} parent=47 // pred_region
          %343 = dma.done [#allocation7], 1024
        $region56: #{tpu_custom_call.1} parent=47 // pred_fallthru
          _
        // Predicated region
        $region57: #{tpu_custom_call.1} parent=47 // pred_check
          %p344 = pneg %p104
        $region58: #{tpu_custom_call.1} parent=47 // pred_check_branch
          %346 = sbr.rel (%p344) target = $region60
        $region59: #{tpu_custom_call.1} parent=47 // pred_region
          %348 = dma.done [#allocation7], 64
        $region60: #{tpu_custom_call.1} parent=47 // pred_fallthru
          _
        // Predicated region
        $region61: #{tpu_custom_call.1} parent=47 // pred_check
          %p349 = pneg %p125
        $region62: #{tpu_custom_call.1} parent=47 // pred_check_branch
          %351 = sbr.rel (%p349) target = $region64
        $region63: #{tpu_custom_call.1} parent=47 // pred_region
          %353 = dma.done [#allocation10], 16384
        $region64: #{tpu_custom_call.1} parent=47 // pred_fallthru
          _
        // Predicated region
        $region65: #{tpu_custom_call.1} parent=47 // pred_check
          %p354 = pneg %p146
        $region66: #{tpu_custom_call.1} parent=47 // pred_check_branch
          %356 = sbr.rel (%p354) target = $region68
        $region67: #{tpu_custom_call.1} parent=47 // pred_region
          %358 = dma.done [#allocation10], 64
        $region68: #{tpu_custom_call.1} parent=47 // pred_fallthru
          _
        // Predicated region
        $region69: #{tpu_custom_call.1} parent=47 // pred_check
          %p359 = pneg %p167
        $region70: #{tpu_custom_call.1} parent=47 // pred_check_branch
          %361 = sbr.rel (%p359) target = $region72
        $region71: #{tpu_custom_call.1} parent=47 // pred_region
          %363 = dma.done [#allocation13], 4096
        $region72: #{tpu_custom_call.1} parent=47 // pred_fallthru
          _
        %s364 = sand.u32 %s49, 1
        %s365 = scalar_lea.sflag [#allocation4], %s364
        %s366 = sand.u32 %s49, 1
        %s367 = smul.addr %s366, 8
        %s368 = scalar_lea.vmem [#allocation3], %s367
        %p369 = pneg %p62
        %p370 = pneg %p59
        %p371 = pneg %p83
        %p372 = pneg %p80
        %p373 = pneg %p104
        %p374 = pneg %p101
        %p375 = pneg %p125
        %p376 = pneg %p122
        %p377 = pneg %p146
        %p378 = pneg %p143
        %p379 = pneg %p167
        %p380 = pneg %p164
        %p381 = pneg %p188
        %p382 = pneg %p185
        %p383 = pneg %p214
        %p384 = pneg %p211
        %s385 = sand.u32 %s201, 1
        %s386 = scalar_lea.sflag [#allocation5], %s385
        %s387 = sand.u32 %s201, 1
        %s388 = scalar_lea.vmem [#allocation14], %s387
        %p390 = scmp.eq.s32.totalorder %s32, 0
        // Predicated region
        $region73: #{tpu_custom_call.1} parent=47 // pred_check
          %p391 = pneg %p390
        $region74: #{tpu_custom_call.1} parent=47 // pred_check_branch
          %393 = sbr.rel (%p391) target = $region76
        $region75: #{tpu_custom_call.1} parent=47 // pred_region
          %394 = vst [vmem:[#allocation2] sm:$0x1] 0.0
        $region76: #{tpu_custom_call.1} parent=47 // pred_fallthru
          _
        %v395 = vld [vmem:[%s333] sm:$0xff]
        %v396 = vpack.c.bf16 %v395, %v395
        %v397 = vld [vmem:[#allocation6] sm:$0xff]
        %v398 = vld [vmem:[#allocation6 + $0x8] sm:$0xff]
        %v399 = vld [vmem:[#allocation6 + $0x10] sm:$0xff]
        %v400 = vld [vmem:[#allocation6 + $0x18] sm:$0xff]
        %v401 = vld [vmem:[#allocation6 + $0x20] sm:$0xff]
        %v402 = vld [vmem:[#allocation6 + $0x28] sm:$0xff]
        %v403 = vld [vmem:[#allocation6 + $0x30] sm:$0xff]
        %v404 = vld [vmem:[#allocation6 + $0x38] sm:$0xff]
        %v405 = vld [vmem:[#allocation8] sm:$0xf]
        %v407 = vperm.slane %v405, 0
        %v408 = vperm.slane %v405, 1
        %v409 = vperm.slane %v405, 2
        %v410 = vperm.slane %v405, 3
        %v423 = vunpack.c.l.b16 %v397
        %v424 = vunpack.c.h.b16 %v397
        %v425 = vunpack.c.l.b16 %v398
        %v426 = vunpack.c.h.b16 %v398
        %v427 = vunpack.c.l.b16 %v399
        %v428 = vunpack.c.h.b16 %v399
        %v429 = vunpack.c.l.b16 %v400
        %v430 = vunpack.c.h.b16 %v400
        %v431 = vunpack.c.l.b16 %v401
        %v432 = vunpack.c.h.b16 %v401
        %v433 = vunpack.c.l.b16 %v402
        %v434 = vunpack.c.h.b16 %v402
        %v435 = vunpack.c.l.b16 %v403
        %v436 = vunpack.c.h.b16 %v403
        %v437 = vunpack.c.l.b16 %v404
        %v438 = vunpack.c.h.b16 %v404
        %v439 = vpack.c.b16 %v427, %v423
        %v440 = vpack.c.b16 %v428, %v424
        %v441 = vpack.c.b16 %v429, %v425
        %v442 = vpack.c.b16 %v430, %v426
        %v443 = vpack.c.b16 %v435, %v431
        %v444 = vpack.c.b16 %v436, %v432
        %v445 = vpack.c.b16 %v437, %v433
        %v446 = vpack.c.b16 %v438, %v434
        %vm455 = vcmask 261120
        %v457 = vsel %vm455, %v396, 0
        %459 = vmatpush.bf16.msra.mxu0 0
        %460 = vmatpush.bf16.msra.mxu0 0
        %461 = vmatpush.bf16.msra.mxu0 0
        %462 = vmatpush.bf16.msra.mxu0 0
        %463 = vmatpush.bf16.msra.mxu0 0
        %464 = vmatpush.bf16.msra.mxu0 0
        %465 = vmatpush.bf16.msra.mxu0 %v443
        %466 = vmatpush.bf16.msra.mxu0 %v439
        %467 = vmatmul.bf16.gmra.mxu0 %v457
        %v468 = vpop.f32.mrf.mxu0
        %v469 = vadd.f32 %v407, %v468
        %v470 = vpop.f32.mrf.mxu0
        %471 = vdwg.mxu0
        %472 = vmatpush.bf16.msra.mxu0 0
        %473 = vmatpush.bf16.msra.mxu0 0
        %474 = vmatpush.bf16.msra.mxu0 0
        %475 = vmatpush.bf16.msra.mxu0 0
        %476 = vmatpush.bf16.msra.mxu0 0
        %477 = vmatpush.bf16.msra.mxu0 0
        %478 = vmatpush.bf16.msra.mxu0 %v444
        %479 = vmatpush.bf16.msra.mxu0 %v440
        %480 = vmatmul.bf16.gmra.mxu0 %v457
        %v481 = vpop.f32.mrf.mxu0
        %v482 = vadd.f32 %v408, %v481
        %v483 = vpop.f32.mrf.mxu0
        %484 = vdwg.mxu0
        %485 = vmatpush.bf16.msra.mxu0 0
        %486 = vmatpush.bf16.msra.mxu0 0
        %487 = vmatpush.bf16.msra.mxu0 0
        %488 = vmatpush.bf16.msra.mxu0 0
        %489 = vmatpush.bf16.msra.mxu0 0
        %490 = vmatpush.bf16.msra.mxu0 0
        %491 = vmatpush.bf16.msra.mxu0 %v445
        %492 = vmatpush.bf16.msra.mxu0 %v441
        %493 = vmatmul.bf16.gmra.mxu0 %v457
        %v494 = vpop.f32.mrf.mxu0
        %v495 = vadd.f32 %v409, %v494
        %v496 = vpop.f32.mrf.mxu0
        %497 = vdwg.mxu0
        %498 = vmatpush.bf16.msra.mxu0 0
        %499 = vmatpush.bf16.msra.mxu0 0
        %500 = vmatpush.bf16.msra.mxu0 0
        %501 = vmatpush.bf16.msra.mxu0 0
        %502 = vmatpush.bf16.msra.mxu0 0
        %503 = vmatpush.bf16.msra.mxu0 0
        %504 = vmatpush.bf16.msra.mxu0 %v446
        %505 = vmatpush.bf16.msra.mxu0 %v442
        %506 = vmatmul.bf16.gmra.mxu0 %v457
        %v507 = vpop.f32.mrf.mxu0
        %v508 = vadd.f32 %v410, %v507
        %v509 = vpop.f32.mrf.mxu0
        %510 = vdwg.mxu0
        %v511 = vmax.f32 %v469, 0.0
        %v512 = vmax.f32 %v482, 0.0
        %v513 = vmax.f32 %v495, 0.0
        %v514 = vmax.f32 %v508, 0.0
        %v515 = vpack.c.bf16 %v511, %v511
        %v516 = vpack.c.bf16 %v512, %v512
        %v517 = vpack.c.bf16 %v513, %v513
        %v518 = vpack.c.bf16 %v514, %v514
        %v519 = vld [vmem:[#allocation9] sm:$0xff]
        %v520 = vld [vmem:[#allocation9 + $0x8] sm:$0xff]
        %v521 = vld [vmem:[#allocation9 + $0x10] sm:$0xff]
        %v522 = vld [vmem:[#allocation9 + $0x18] sm:$0xff]
        %v523 = vld [vmem:[#allocation9 + $0x20] sm:$0xff]
        %v524 = vld [vmem:[#allocation9 + $0x28] sm:$0xff]
        %v525 = vld [vmem:[#allocation9 + $0x30] sm:$0xff]
        %v526 = vld [vmem:[#allocation9 + $0x38] sm:$0xff]
        %v527 = vld [vmem:[#allocation9 + $0x40] sm:$0xff]
        %v528 = vld [vmem:[#allocation9 + $0x48] sm:$0xff]
        %v529 = vld [vmem:[#allocation9 + $0x50] sm:$0xff]
        %v530 = vld [vmem:[#allocation9 + $0x58] sm:$0xff]
        %v531 = vld [vmem:[#allocation9 + $0x60] sm:$0xff]
        %v532 = vld [vmem:[#allocation9 + $0x68] sm:$0xff]
        %v533 = vld [vmem:[#allocation9 + $0x70] sm:$0xff]
        %v534 = vld [vmem:[#allocation9 + $0x78] sm:$0xff]
        %v535 = vld [vmem:[#allocation9 + $0x80] sm:$0xff]
        %v536 = vld [vmem:[#allocation9 + $0x88] sm:$0xff]
        %v537 = vld [vmem:[#allocation9 + $0x90] sm:$0xff]
        %v538 = vld [vmem:[#allocation9 + $0x98] sm:$0xff]
        %v539 = vld [vmem:[#allocation9 + $0xa0] sm:$0xff]
        %v540 = vld [vmem:[#allocation9 + $0xa8] sm:$0xff]
        %v541 = vld [vmem:[#allocation9 + $0xb0] sm:$0xff]
        %v542 = vld [vmem:[#allocation9 + $0xb8] sm:$0xff]
        %v543 = vld [vmem:[#allocation9 + $0xc0] sm:$0xff]
        %v544 = vld [vmem:[#allocation9 + $0xc8] sm:$0xff]
        %v545 = vld [vmem:[#allocation9 + $0xd0] sm:$0xff]
        %v546 = vld [vmem:[#allocation9 + $0xd8] sm:$0xff]
        %v547 = vld [vmem:[#allocation9 + $0xe0] sm:$0xff]
        %v548 = vld [vmem:[#allocation9 + $0xe8] sm:$0xff]
        %v549 = vld [vmem:[#allocation9 + $0xf0] sm:$0xff]
        %v550 = vld [vmem:[#allocation9 + $0xf8] sm:$0xff]
        %v551 = vld [vmem:[#allocation9 + $0x100] sm:$0xff]
        %v552 = vld [vmem:[#allocation9 + $0x108] sm:$0xff]
        %v553 = vld [vmem:[#allocation9 + $0x110] sm:$0xff]
        %v554 = vld [vmem:[#allocation9 + $0x118] sm:$0xff]
        %v555 = vld [vmem:[#allocation9 + $0x120] sm:$0xff]
        %v556 = vld [vmem:[#allocation9 + $0x128] sm:$0xff]
        %v557 = vld [vmem:[#allocation9 + $0x130] sm:$0xff]
        %v558 = vld [vmem:[#allocation9 + $0x138] sm:$0xff]
        %v559 = vld [vmem:[#allocation9 + $0x140] sm:$0xff]
        %v560 = vld [vmem:[#allocation9 + $0x148] sm:$0xff]
        %v561 = vld [vmem:[#allocation9 + $0x150] sm:$0xff]
        %v562 = vld [vmem:[#allocation9 + $0x158] sm:$0xff]
        %v563 = vld [vmem:[#allocation9 + $0x160] sm:$0xff]
        %v564 = vld [vmem:[#allocation9 + $0x168] sm:$0xff]
        %v565 = vld [vmem:[#allocation9 + $0x170] sm:$0xff]
        %v566 = vld [vmem:[#allocation9 + $0x178] sm:$0xff]
        %v567 = vld [vmem:[#allocation9 + $0x180] sm:$0xff]
        %v568 = vld [vmem:[#allocation9 + $0x188] sm:$0xff]
        %v569 = vld [vmem:[#allocation9 + $0x190] sm:$0xff]
        %v570 = vld [vmem:[#allocation9 + $0x198] sm:$0xff]
        %v571 = vld [vmem:[#allocation9 + $0x1a0] sm:$0xff]
        %v572 = vld [vmem:[#allocation9 + $0x1a8] sm:$0xff]
        %v573 = vld [vmem:[#allocation9 + $0x1b0] sm:$0xff]
        %v574 = vld [vmem:[#allocation9 + $0x1b8] sm:$0xff]
        %v575 = vld [vmem:[#allocation9 + $0x1c0] sm:$0xff]
        %v576 = vld [vmem:[#allocation9 + $0x1c8] sm:$0xff]
        %v577 = vld [vmem:[#allocation9 + $0x1d0] sm:$0xff]
        %v578 = vld [vmem:[#allocation9 + $0x1d8] sm:$0xff]
        %v579 = vld [vmem:[#allocation9 + $0x1e0] sm:$0xff]
        %v580 = vld [vmem:[#allocation9 + $0x1e8] sm:$0xff]
        %v581 = vld [vmem:[#allocation9 + $0x1f0] sm:$0xff]
        %v582 = vld [vmem:[#allocation9 + $0x1f8] sm:$0xff]
        %v583 = vld [vmem:[#allocation9 + $0x200] sm:$0xff]
        %v584 = vld [vmem:[#allocation9 + $0x208] sm:$0xff]
        %v585 = vld [vmem:[#allocation9 + $0x210] sm:$0xff]
        %v586 = vld [vmem:[#allocation9 + $0x218] sm:$0xff]
        %v587 = vld [vmem:[#allocation9 + $0x220] sm:$0xff]
        %v588 = vld [vmem:[#allocation9 + $0x228] sm:$0xff]
        %v589 = vld [vmem:[#allocation9 + $0x230] sm:$0xff]
        %v590 = vld [vmem:[#allocation9 + $0x238] sm:$0xff]
        %v591 = vld [vmem:[#allocation9 + $0x240] sm:$0xff]
        %v592 = vld [vmem:[#allocation9 + $0x248] sm:$0xff]
        %v593 = vld [vmem:[#allocation9 + $0x250] sm:$0xff]
        %v594 = vld [vmem:[#allocation9 + $0x258] sm:$0xff]
        %v595 = vld [vmem:[#allocation9 + $0x260] sm:$0xff]
        %v596 = vld [vmem:[#allocation9 + $0x268] sm:$0xff]
        %v597 = vld [vmem:[#allocation9 + $0x270] sm:$0xff]
        %v598 = vld [vmem:[#allocation9 + $0x278] sm:$0xff]
        %v599 = vld [vmem:[#allocation9 + $0x280] sm:$0xff]
        %v600 = vld [vmem:[#allocation9 + $0x288] sm:$0xff]
        %v601 = vld [vmem:[#allocation9 + $0x290] sm:$0xff]
        %v602 = vld [vmem:[#allocation9 + $0x298] sm:$0xff]
        %v603 = vld [vmem:[#allocation9 + $0x2a0] sm:$0xff]
        %v604 = vld [vmem:[#allocation9 + $0x2a8] sm:$0xff]
        %v605 = vld [vmem:[#allocation9 + $0x2b0] sm:$0xff]
        %v606 = vld [vmem:[#allocation9 + $0x2b8] sm:$0xff]
        %v607 = vld [vmem:[#allocation9 + $0x2c0] sm:$0xff]
        %v608 = vld [vmem:[#allocation9 + $0x2c8] sm:$0xff]
        %v609 = vld [vmem:[#allocation9 + $0x2d0] sm:$0xff]
        %v610 = vld [vmem:[#allocation9 + $0x2d8] sm:$0xff]
        %v611 = vld [vmem:[#allocation9 + $0x2e0] sm:$0xff]
        %v612 = vld [vmem:[#allocation9 + $0x2e8] sm:$0xff]
        %v613 = vld [vmem:[#allocation9 + $0x2f0] sm:$0xff]
        %v614 = vld [vmem:[#allocation9 + $0x2f8] sm:$0xff]
        %v615 = vld [vmem:[#allocation9 + $0x300] sm:$0xff]
        %v616 = vld [vmem:[#allocation9 + $0x308] sm:$0xff]
        %v617 = vld [vmem:[#allocation9 + $0x310] sm:$0xff]
        %v618 = vld [vmem:[#allocation9 + $0x318] sm:$0xff]
        %v619 = vld [vmem:[#allocation9 + $0x320] sm:$0xff]
        %v620 = vld [vmem:[#allocation9 + $0x328] sm:$0xff]
        %v621 = vld [vmem:[#allocation9 + $0x330] sm:$0xff]
        %v622 = vld [vmem:[#allocation9 + $0x338] sm:$0xff]
        %v623 = vld [vmem:[#allocation9 + $0x340] sm:$0xff]
        %v624 = vld [vmem:[#allocation9 + $0x348] sm:$0xff]
        %v625 = vld [vmem:[#allocation9 + $0x350] sm:$0xff]
        %v626 = vld [vmem:[#allocation9 + $0x358] sm:$0xff]
        %v627 = vld [vmem:[#allocation9 + $0x360] sm:$0xff]
        %v628 = vld [vmem:[#allocation9 + $0x368] sm:$0xff]
        %v629 = vld [vmem:[#allocation9 + $0x370] sm:$0xff]
        %v630 = vld [vmem:[#allocation9 + $0x378] sm:$0xff]
        %v631 = vld [vmem:[#allocation9 + $0x380] sm:$0xff]
        %v632 = vld [vmem:[#allocation9 + $0x388] sm:$0xff]
        %v633 = vld [vmem:[#allocation9 + $0x390] sm:$0xff]
        %v634 = vld [vmem:[#allocation9 + $0x398] sm:$0xff]
        %v635 = vld [vmem:[#allocation9 + $0x3a0] sm:$0xff]
        %v636 = vld [vmem:[#allocation9 + $0x3a8] sm:$0xff]
        %v637 = vld [vmem:[#allocation9 + $0x3b0] sm:$0xff]
        %v638 = vld [vmem:[#allocation9 + $0x3b8] sm:$0xff]
        %v639 = vld [vmem:[#allocation9 + $0x3c0] sm:$0xff]
        %v640 = vld [vmem:[#allocation9 + $0x3c8] sm:$0xff]
        %v641 = vld [vmem:[#allocation9 + $0x3d0] sm:$0xff]
        %v642 = vld [vmem:[#allocation9 + $0x3d8] sm:$0xff]
        %v643 = vld [vmem:[#allocation9 + $0x3e0] sm:$0xff]
        %v644 = vld [vmem:[#allocation9 + $0x3e8] sm:$0xff]
        %v645 = vld [vmem:[#allocation9 + $0x3f0] sm:$0xff]
        %v646 = vld [vmem:[#allocation9 + $0x3f8] sm:$0xff]
        %v647 = vld [vmem:[#allocation11] sm:$0xf]
        %v649 = vperm.slane %v647, 0
        %v650 = vperm.slane %v647, 1
        %v651 = vperm.slane %v647, 2
        %v652 = vperm.slane %v647, 3
        %v785 = vunpack.c.l.b16 %v519
        %v786 = vunpack.c.h.b16 %v519
        %v787 = vunpack.c.l.b16 %v520
        %v788 = vunpack.c.h.b16 %v520
        %v789 = vunpack.c.l.b16 %v521
        %v790 = vunpack.c.h.b16 %v521
        %v791 = vunpack.c.l.b16 %v522
        %v792 = vunpack.c.h.b16 %v522
        %v793 = vunpack.c.l.b16 %v523
        %v794 = vunpack.c.h.b16 %v523
        %v795 = vunpack.c.l.b16 %v524
        %v796 = vunpack.c.h.b16 %v524
        %v797 = vunpack.c.l.b16 %v525
        %v798 = vunpack.c.h.b16 %v525
        %v799 = vunpack.c.l.b16 %v526
        %v800 = vunpack.c.h.b16 %v526
        %v801 = vunpack.c.l.b16 %v527
        %v802 = vunpack.c.h.b16 %v527
        %v803 = vunpack.c.l.b16 %v528
        %v804 = vunpack.c.h.b16 %v528
        %v805 = vunpack.c.l.b16 %v529
        %v806 = vunpack.c.h.b16 %v529
        %v807 = vunpack.c.l.b16 %v530
        %v808 = vunpack.c.h.b16 %v530
        %v809 = vunpack.c.l.b16 %v531
        %v810 = vunpack.c.h.b16 %v531
        %v811 = vunpack.c.l.b16 %v532
        %v812 = vunpack.c.h.b16 %v532
        %v813 = vunpack.c.l.b16 %v533
        %v814 = vunpack.c.h.b16 %v533
        %v815 = vunpack.c.l.b16 %v534
        %v816 = vunpack.c.h.b16 %v534
        %v817 = vunpack.c.l.b16 %v535
        %v818 = vunpack.c.h.b16 %v535
        %v819 = vunpack.c.l.b16 %v536
        %v820 = vunpack.c.h.b16 %v536
        %v821 = vunpack.c.l.b16 %v537
        %v822 = vunpack.c.h.b16 %v537
        %v823 = vunpack.c.l.b16 %v538
        %v824 = vunpack.c.h.b16 %v538
        %v825 = vunpack.c.l.b16 %v539
        %v826 = vunpack.c.h.b16 %v539
        %v827 = vunpack.c.l.b16 %v540
        %v828 = vunpack.c.h.b16 %v540
        %v829 = vunpack.c.l.b16 %v541
        %v830 = vunpack.c.h.b16 %v541
        %v831 = vunpack.c.l.b16 %v542
        %v832 = vunpack.c.h.b16 %v542
        %v833 = vunpack.c.l.b16 %v543
        %v834 = vunpack.c.h.b16 %v543
        %v835 = vunpack.c.l.b16 %v544
        %v836 = vunpack.c.h.b16 %v544
        %v837 = vunpack.c.l.b16 %v545
        %v838 = vunpack.c.h.b16 %v545
        %v839 = vunpack.c.l.b16 %v546
        %v840 = vunpack.c.h.b16 %v546
        %v841 = vunpack.c.l.b16 %v547
        %v842 = vunpack.c.h.b16 %v547
        %v843 = vunpack.c.l.b16 %v548
        %v844 = vunpack.c.h.b16 %v548
        %v845 = vunpack.c.l.b16 %v549
        %v846 = vunpack.c.h.b16 %v549
        %v847 = vunpack.c.l.b16 %v550
        %v848 = vunpack.c.h.b16 %v550
        %v849 = vunpack.c.l.b16 %v551
        %v850 = vunpack.c.h.b16 %v551
        %v851 = vunpack.c.l.b16 %v552
        %v852 = vunpack.c.h.b16 %v552
        %v853 = vunpack.c.l.b16 %v553
        %v854 = vunpack.c.h.b16 %v553
        %v855 = vunpack.c.l.b16 %v554
        %v856 = vunpack.c.h.b16 %v554
        %v857 = vunpack.c.l.b16 %v555
        %v858 = vunpack.c.h.b16 %v555
        %v859 = vunpack.c.l.b16 %v556
        %v860 = vunpack.c.h.b16 %v556
        %v861 = vunpack.c.l.b16 %v557
        %v862 = vunpack.c.h.b16 %v557
        %v863 = vunpack.c.l.b16 %v558
        %v864 = vunpack.c.h.b16 %v558
        %v865 = vunpack.c.l.b16 %v559
        %v866 = vunpack.c.h.b16 %v559
        %v867 = vunpack.c.l.b16 %v560
        %v868 = vunpack.c.h.b16 %v560
        %v869 = vunpack.c.l.b16 %v561
        %v870 = vunpack.c.h.b16 %v561
        %v871 = vunpack.c.l.b16 %v562
        %v872 = vunpack.c.h.b16 %v562
        %v873 = vunpack.c.l.b16 %v563
        %v874 = vunpack.c.h.b16 %v563
        %v875 = vunpack.c.l.b16 %v564
        %v876 = vunpack.c.h.b16 %v564
        %v877 = vunpack.c.l.b16 %v565
        %v878 = vunpack.c.h.b16 %v565
        %v879 = vunpack.c.l.b16 %v566
        %v880 = vunpack.c.h.b16 %v566
        %v881 = vunpack.c.l.b16 %v567
        %v882 = vunpack.c.h.b16 %v567
        %v883 = vunpack.c.l.b16 %v568
        %v884 = vunpack.c.h.b16 %v568
        %v885 = vunpack.c.l.b16 %v569
        %v886 = vunpack.c.h.b16 %v569
        %v887 = vunpack.c.l.b16 %v570
        %v888 = vunpack.c.h.b16 %v570
        %v889 = vunpack.c.l.b16 %v571
        %v890 = vunpack.c.h.b16 %v571
        %v891 = vunpack.c.l.b16 %v572
        %v892 = vunpack.c.h.b16 %v572
        %v893 = vunpack.c.l.b16 %v573
        %v894 = vunpack.c.h.b16 %v573
        %v895 = vunpack.c.l.b16 %v574
        %v896 = vunpack.c.h.b16 %v574
        %v897 = vunpack.c.l.b16 %v575
        %v898 = vunpack.c.h.b16 %v575
        %v899 = vunpack.c.l.b16 %v576
        %v900 = vunpack.c.h.b16 %v576
        %v901 = vunpack.c.l.b16 %v577
        %v902 = vunpack.c.h.b16 %v577
        %v903 = vunpack.c.l.b16 %v578
        %v904 = vunpack.c.h.b16 %v578
        %v905 = vunpack.c.l.b16 %v579
        %v906 = vunpack.c.h.b16 %v579
        %v907 = vunpack.c.l.b16 %v580
        %v908 = vunpack.c.h.b16 %v580
        %v909 = vunpack.c.l.b16 %v581
        %v910 = vunpack.c.h.b16 %v581
        %v911 = vunpack.c.l.b16 %v582
        %v912 = vunpack.c.h.b16 %v582
        %v913 = vunpack.c.l.b16 %v583
        %v914 = vunpack.c.h.b16 %v583
        %v915 = vunpack.c.l.b16 %v584
        %v916 = vunpack.c.h.b16 %v584
        %v917 = vunpack.c.l.b16 %v585
        %v918 = vunpack.c.h.b16 %v585
        %v919 = vunpack.c.l.b16 %v586
        %v920 = vunpack.c.h.b16 %v586
        %v921 = vunpack.c.l.b16 %v587
        %v922 = vunpack.c.h.b16 %v587
        %v923 = vunpack.c.l.b16 %v588
        %v924 = vunpack.c.h.b16 %v588
        %v925 = vunpack.c.l.b16 %v589
        %v926 = vunpack.c.h.b16 %v589
        %v927 = vunpack.c.l.b16 %v590
        %v928 = vunpack.c.h.b16 %v590
        %v929 = vunpack.c.l.b16 %v591
        %v930 = vunpack.c.h.b16 %v591
        %v931 = vunpack.c.l.b16 %v592
        %v932 = vunpack.c.h.b16 %v592
        %v933 = vunpack.c.l.b16 %v593
        %v934 = vunpack.c.h.b16 %v593
        %v935 = vunpack.c.l.b16 %v594
        %v936 = vunpack.c.h.b16 %v594
        %v937 = vunpack.c.l.b16 %v595
        %v938 = vunpack.c.h.b16 %v595
        %v939 = vunpack.c.l.b16 %v596
        %v940 = vunpack.c.h.b16 %v596
        %v941 = vunpack.c.l.b16 %v597
        %v942 = vunpack.c.h.b16 %v597
        %v943 = vunpack.c.l.b16 %v598
        %v944 = vunpack.c.h.b16 %v598
        %v945 = vunpack.c.l.b16 %v599
        %v946 = vunpack.c.h.b16 %v599
        %v947 = vunpack.c.l.b16 %v600
        %v948 = vunpack.c.h.b16 %v600
        %v949 = vunpack.c.l.b16 %v601
        %v950 = vunpack.c.h.b16 %v601
        %v951 = vunpack.c.l.b16 %v602
        %v952 = vunpack.c.h.b16 %v602
        %v953 = vunpack.c.l.b16 %v603
        %v954 = vunpack.c.h.b16 %v603
        %v955 = vunpack.c.l.b16 %v604
        %v956 = vunpack.c.h.b16 %v604
        %v957 = vunpack.c.l.b16 %v605
        %v958 = vunpack.c.h.b16 %v605
        %v959 = vunpack.c.l.b16 %v606
        %v960 = vunpack.c.h.b16 %v606
        %v961 = vunpack.c.l.b16 %v607
        %v962 = vunpack.c.h.b16 %v607
        %v963 = vunpack.c.l.b16 %v608
        %v964 = vunpack.c.h.b16 %v608
        %v965 = vunpack.c.l.b16 %v609
        %v966 = vunpack.c.h.b16 %v609
        %v967 = vunpack.c.l.b16 %v610
        %v968 = vunpack.c.h.b16 %v610
        %v969 = vunpack.c.l.b16 %v611
        %v970 = vunpack.c.h.b16 %v611
        %v971 = vunpack.c.l.b16 %v612
        %v972 = vunpack.c.h.b16 %v612
        %v973 = vunpack.c.l.b16 %v613
        %v974 = vunpack.c.h.b16 %v613
        %v975 = vunpack.c.l.b16 %v614
        %v976 = vunpack.c.h.b16 %v614
        %v977 = vunpack.c.l.b16 %v615
        %v978 = vunpack.c.h.b16 %v615
        %v979 = vunpack.c.l.b16 %v616
        %v980 = vunpack.c.h.b16 %v616
        %v981 = vunpack.c.l.b16 %v617
        %v982 = vunpack.c.h.b16 %v617
        %v983 = vunpack.c.l.b16 %v618
        %v984 = vunpack.c.h.b16 %v618
        %v985 = vunpack.c.l.b16 %v619
        %v986 = vunpack.c.h.b16 %v619
        %v987 = vunpack.c.l.b16 %v620
        %v988 = vunpack.c.h.b16 %v620
        %v989 = vunpack.c.l.b16 %v621
        %v990 = vunpack.c.h.b16 %v621
        %v991 = vunpack.c.l.b16 %v622
        %v992 = vunpack.c.h.b16 %v622
        %v993 = vunpack.c.l.b16 %v623
        %v994 = vunpack.c.h.b16 %v623
        %v995 = vunpack.c.l.b16 %v624
        %v996 = vunpack.c.h.b16 %v624
        %v997 = vunpack.c.l.b16 %v625
        %v998 = vunpack.c.h.b16 %v625
        %v999 = vunpack.c.l.b16 %v626
        %v1000 = vunpack.c.h.b16 %v626
        %v1001 = vunpack.c.l.b16 %v627
        %v1002 = vunpack.c.h.b16 %v627
        %v1003 = vunpack.c.l.b16 %v628
        %v1004 = vunpack.c.h.b16 %v628
        %v1005 = vunpack.c.l.b16 %v629
        %v1006 = vunpack.c.h.b16 %v629
        %v1007 = vunpack.c.l.b16 %v630
        %v1008 = vunpack.c.h.b16 %v630
        %v1009 = vunpack.c.l.b16 %v631
        %v1010 = vunpack.c.h.b16 %v631
        %v1011 = vunpack.c.l.b16 %v632
        %v1012 = vunpack.c.h.b16 %v632
        %v1013 = vunpack.c.l.b16 %v633
        %v1014 = vunpack.c.h.b16 %v633
        %v1015 = vunpack.c.l.b16 %v634
        %v1016 = vunpack.c.h.b16 %v634
        %v1017 = vunpack.c.l.b16 %v635
        %v1018 = vunpack.c.h.b16 %v635
        %v1019 = vunpack.c.l.b16 %v636
        %v1020 = vunpack.c.h.b16 %v636
        %v1021 = vunpack.c.l.b16 %v637
        %v1022 = vunpack.c.h.b16 %v637
        %v1023 = vunpack.c.l.b16 %v638
        %v1024 = vunpack.c.h.b16 %v638
        %v1025 = vunpack.c.l.b16 %v639
        %v1026 = vunpack.c.h.b16 %v639
        %v1027 = vunpack.c.l.b16 %v640
        %v1028 = vunpack.c.h.b16 %v640
        %v1029 = vunpack.c.l.b16 %v641
        %v1030 = vunpack.c.h.b16 %v641
        %v1031 = vunpack.c.l.b16 %v642
        %v1032 = vunpack.c.h.b16 %v642
        %v1033 = vunpack.c.l.b16 %v643
        %v1034 = vunpack.c.h.b16 %v643
        %v1035 = vunpack.c.l.b16 %v644
        %v1036 = vunpack.c.h.b16 %v644
        %v1037 = vunpack.c.l.b16 %v645
        %v1038 = vunpack.c.h.b16 %v645
        %v1039 = vunpack.c.l.b16 %v646
        %v1040 = vunpack.c.h.b16 %v646
        %v1041 = vpack.c.b16 %v789, %v785
        %v1042 = vpack.c.b16 %v790, %v786
        %v1043 = vpack.c.b16 %v791, %v787
        %v1044 = vpack.c.b16 %v792, %v788
        %v1045 = vpack.c.b16 %v797, %v793
        %v1046 = vpack.c.b16 %v798, %v794
        %v1047 = vpack.c.b16 %v799, %v795
        %v1048 = vpack.c.b16 %v800, %v796
        %v1049 = vpack.c.b16 %v805, %v801
        %v1050 = vpack.c.b16 %v806, %v802
        %v1051 = vpack.c.b16 %v807, %v803
        %v1052 = vpack.c.b16 %v808, %v804
        %v1053 = vpack.c.b16 %v813, %v809
        %v1054 = vpack.c.b16 %v814, %v810
        %v1055 = vpack.c.b16 %v815, %v811
        %v1056 = vpack.c.b16 %v816, %v812
        %v1057 = vpack.c.b16 %v821, %v817
        %v1058 = vpack.c.b16 %v822, %v818
        %v1059 = vpack.c.b16 %v823, %v819
        %v1060 = vpack.c.b16 %v824, %v820
        %v1061 = vpack.c.b16 %v829, %v825
        %v1062 = vpack.c.b16 %v830, %v826
        %v1063 = vpack.c.b16 %v831, %v827
        %v1064 = vpack.c.b16 %v832, %v828
        %v1065 = vpack.c.b16 %v837, %v833
        %v1066 = vpack.c.b16 %v838, %v834
        %v1067 = vpack.c.b16 %v839, %v835
        %v1068 = vpack.c.b16 %v840, %v836
        %v1069 = vpack.c.b16 %v845, %v841
        %v1070 = vpack.c.b16 %v846, %v842
        %v1071 = vpack.c.b16 %v847, %v843
        %v1072 = vpack.c.b16 %v848, %v844
        %v1073 = vpack.c.b16 %v853, %v849
        %v1074 = vpack.c.b16 %v854, %v850
        %v1075 = vpack.c.b16 %v855, %v851
        %v1076 = vpack.c.b16 %v856, %v852
        %v1077 = vpack.c.b16 %v861, %v857
        %v1078 = vpack.c.b16 %v862, %v858
        %v1079 = vpack.c.b16 %v863, %v859
        %v1080 = vpack.c.b16 %v864, %v860
        %v1081 = vpack.c.b16 %v869, %v865
        %v1082 = vpack.c.b16 %v870, %v866
        %v1083 = vpack.c.b16 %v871, %v867
        %v1084 = vpack.c.b16 %v872, %v868
        %v1085 = vpack.c.b16 %v877, %v873
        %v1086 = vpack.c.b16 %v878, %v874
        %v1087 = vpack.c.b16 %v879, %v875
        %v1088 = vpack.c.b16 %v880, %v876
        %v1089 = vpack.c.b16 %v885, %v881
        %v1090 = vpack.c.b16 %v886, %v882
        %v1091 = vpack.c.b16 %v887, %v883
        %v1092 = vpack.c.b16 %v888, %v884
        %v1093 = vpack.c.b16 %v893, %v889
        %v1094 = vpack.c.b16 %v894, %v890
        %v1095 = vpack.c.b16 %v895, %v891
        %v1096 = vpack.c.b16 %v896, %v892
        %v1097 = vpack.c.b16 %v901, %v897
        %v1098 = vpack.c.b16 %v902, %v898
        %v1099 = vpack.c.b16 %v903, %v899
        %v1100 = vpack.c.b16 %v904, %v900
        %v1101 = vpack.c.b16 %v909, %v905
        %v1102 = vpack.c.b16 %v910, %v906
        %v1103 = vpack.c.b16 %v911, %v907
        %v1104 = vpack.c.b16 %v912, %v908
        %v1105 = vpack.c.b16 %v917, %v913
        %v1106 = vpack.c.b16 %v918, %v914
        %v1107 = vpack.c.b16 %v919, %v915
        %v1108 = vpack.c.b16 %v920, %v916
        %v1109 = vpack.c.b16 %v925, %v921
        %v1110 = vpack.c.b16 %v926, %v922
        %v1111 = vpack.c.b16 %v927, %v923
        %v1112 = vpack.c.b16 %v928, %v924
        %v1113 = vpack.c.b16 %v933, %v929
        %v1114 = vpack.c.b16 %v934, %v930
        %v1115 = vpack.c.b16 %v935, %v931
        %v1116 = vpack.c.b16 %v936, %v932
        %v1117 = vpack.c.b16 %v941, %v937
        %v1118 = vpack.c.b16 %v942, %v938
        %v1119 = vpack.c.b16 %v943, %v939
        %v1120 = vpack.c.b16 %v944, %v940
        %v1121 = vpack.c.b16 %v949, %v945
        %v1122 = vpack.c.b16 %v950, %v946
        %v1123 = vpack.c.b16 %v951, %v947
        %v1124 = vpack.c.b16 %v952, %v948
        %v1125 = vpack.c.b16 %v957, %v953
        %v1126 = vpack.c.b16 %v958, %v954
        %v1127 = vpack.c.b16 %v959, %v955
        %v1128 = vpack.c.b16 %v960, %v956
        %v1129 = vpack.c.b16 %v965, %v961
        %v1130 = vpack.c.b16 %v966, %v962
        %v1131 = vpack.c.b16 %v967, %v963
        %v1132 = vpack.c.b16 %v968, %v964
        %v1133 = vpack.c.b16 %v973, %v969
        %v1134 = vpack.c.b16 %v974, %v970
        %v1135 = vpack.c.b16 %v975, %v971
        %v1136 = vpack.c.b16 %v976, %v972
        %v1137 = vpack.c.b16 %v981, %v977
        %v1138 = vpack.c.b16 %v982, %v978
        %v1139 = vpack.c.b16 %v983, %v979
        %v1140 = vpack.c.b16 %v984, %v980
        %v1141 = vpack.c.b16 %v989, %v985
        %v1142 = vpack.c.b16 %v990, %v986
        %v1143 = vpack.c.b16 %v991, %v987
        %v1144 = vpack.c.b16 %v992, %v988
        %v1145 = vpack.c.b16 %v997, %v993
        %v1146 = vpack.c.b16 %v998, %v994
        %v1147 = vpack.c.b16 %v999, %v995
        %v1148 = vpack.c.b16 %v1000, %v996
        %v1149 = vpack.c.b16 %v1005, %v1001
        %v1150 = vpack.c.b16 %v1006, %v1002
        %v1151 = vpack.c.b16 %v1007, %v1003
        %v1152 = vpack.c.b16 %v1008, %v1004
        %v1153 = vpack.c.b16 %v1013, %v1009
        %v1154 = vpack.c.b16 %v1014, %v1010
        %v1155 = vpack.c.b16 %v1015, %v1011
        %v1156 = vpack.c.b16 %v1016, %v1012
        %v1157 = vpack.c.b16 %v1021, %v1017
        %v1158 = vpack.c.b16 %v1022, %v1018
        %v1159 = vpack.c.b16 %v1023, %v1019
        %v1160 = vpack.c.b16 %v1024, %v1020
        %v1161 = vpack.c.b16 %v1029, %v1025
        %v1162 = vpack.c.b16 %v1030, %v1026
        %v1163 = vpack.c.b16 %v1031, %v1027
        %v1164 = vpack.c.b16 %v1032, %v1028
        %v1165 = vpack.c.b16 %v1037, %v1033
        %v1166 = vpack.c.b16 %v1038, %v1034
        %v1167 = vpack.c.b16 %v1039, %v1035
        %v1168 = vpack.c.b16 %v1040, %v1036
        %1297 = vmatpush.bf16.msra.mxu0 %v1069
        %1298 = vmatpush.bf16.msra.mxu0 %v1065
        %1299 = vmatpush.bf16.msra.mxu0 %v1061
        %1300 = vmatpush.bf16.msra.mxu0 %v1057
        %1301 = vmatpush.bf16.msra.mxu0 %v1053
        %1302 = vmatpush.bf16.msra.mxu0 %v1049
        %1303 = vmatpush.bf16.msra.mxu0 %v1045
        %1304 = vmatpush.bf16.msra.mxu0 %v1041
        %1305 = vmatmul.bf16.gmra.mxu0 %v515
        %v1306 = vpop.f32.mrf.mxu0
        %v1307 = vadd.f32 %v649, %v1306
        %v1308 = vpop.f32.mrf.mxu0
        %1309 = vdwg.mxu0
        %1310 = vmatpush.bf16.msra.mxu0 %v1101
        %1311 = vmatpush.bf16.msra.mxu0 %v1097
        %1312 = vmatpush.bf16.msra.mxu0 %v1093
        %1313 = vmatpush.bf16.msra.mxu0 %v1089
        %1314 = vmatpush.bf16.msra.mxu0 %v1085
        %1315 = vmatpush.bf16.msra.mxu0 %v1081
        %1316 = vmatpush.bf16.msra.mxu0 %v1077
        %1317 = vmatpush.bf16.msra.mxu0 %v1073
        %1318 = vmatmul.bf16.gmra.mxu0 %v516
        %v1319 = vpop.f32.mrf.mxu0
        %v1320 = vadd.f32 %v1307, %v1319
        %v1321 = vpop.f32.mrf.mxu0
        %1322 = vdwg.mxu0
        %1323 = vmatpush.bf16.msra.mxu0 %v1133
        %1324 = vmatpush.bf16.msra.mxu0 %v1129
        %1325 = vmatpush.bf16.msra.mxu0 %v1125
        %1326 = vmatpush.bf16.msra.mxu0 %v1121
        %1327 = vmatpush.bf16.msra.mxu0 %v1117
        %1328 = vmatpush.bf16.msra.mxu0 %v1113
        %1329 = vmatpush.bf16.msra.mxu0 %v1109
        %1330 = vmatpush.bf16.msra.mxu0 %v1105
        %1331 = vmatmul.bf16.gmra.mxu0 %v517
        %v1332 = vpop.f32.mrf.mxu0
        %v1333 = vadd.f32 %v1320, %v1332
        %v1334 = vpop.f32.mrf.mxu0
        %1335 = vdwg.mxu0
        %1336 = vmatpush.bf16.msra.mxu0 %v1165
        %1337 = vmatpush.bf16.msra.mxu0 %v1161
        %1338 = vmatpush.bf16.msra.mxu0 %v1157
        %1339 = vmatpush.bf16.msra.mxu0 %v1153
        %1340 = vmatpush.bf16.msra.mxu0 %v1149
        %1341 = vmatpush.bf16.msra.mxu0 %v1145
        %1342 = vmatpush.bf16.msra.mxu0 %v1141
        %1343 = vmatpush.bf16.msra.mxu0 %v1137
        %1344 = vmatmul.bf16.gmra.mxu0 %v518
        %v1345 = vpop.f32.mrf.mxu0
        %v1346 = vadd.f32 %v1333, %v1345
        %v1347 = vpop.f32.mrf.mxu0
        %1348 = vdwg.mxu0
        %1349 = vmatpush.bf16.msra.mxu0 %v1070
        %1350 = vmatpush.bf16.msra.mxu0 %v1066
        %1351 = vmatpush.bf16.msra.mxu0 %v1062
        %1352 = vmatpush.bf16.msra.mxu0 %v1058
        %1353 = vmatpush.bf16.msra.mxu0 %v1054
        %1354 = vmatpush.bf16.msra.mxu0 %v1050
        %1355 = vmatpush.bf16.msra.mxu0 %v1046
        %1356 = vmatpush.bf16.msra.mxu0 %v1042
        %1357 = vmatmul.bf16.gmra.mxu0 %v515
        %v1358 = vpop.f32.mrf.mxu0
        %v1359 = vadd.f32 %v650, %v1358
        %v1360 = vpop.f32.mrf.mxu0
        %1361 = vdwg.mxu0
        %1362 = vmatpush.bf16.msra.mxu0 %v1102
        %1363 = vmatpush.bf16.msra.mxu0 %v1098
        %1364 = vmatpush.bf16.msra.mxu0 %v1094
        %1365 = vmatpush.bf16.msra.mxu0 %v1090
        %1366 = vmatpush.bf16.msra.mxu0 %v1086
        %1367 = vmatpush.bf16.msra.mxu0 %v1082
        %1368 = vmatpush.bf16.msra.mxu0 %v1078
        %1369 = vmatpush.bf16.msra.mxu0 %v1074
        %1370 = vmatmul.bf16.gmra.mxu0 %v516
        %v1371 = vpop.f32.mrf.mxu0
        %v1372 = vadd.f32 %v1359, %v1371
        %v1373 = vpop.f32.mrf.mxu0
        %1374 = vdwg.mxu0
        %1375 = vmatpush.bf16.msra.mxu0 %v1134
        %1376 = vmatpush.bf16.msra.mxu0 %v1130
        %1377 = vmatpush.bf16.msra.mxu0 %v1126
        %1378 = vmatpush.bf16.msra.mxu0 %v1122
        %1379 = vmatpush.bf16.msra.mxu0 %v1118
        %1380 = vmatpush.bf16.msra.mxu0 %v1114
        %1381 = vmatpush.bf16.msra.mxu0 %v1110
        %1382 = vmatpush.bf16.msra.mxu0 %v1106
        %1383 = vmatmul.bf16.gmra.mxu0 %v517
        %v1384 = vpop.f32.mrf.mxu0
        %v1385 = vadd.f32 %v1372, %v1384
        %v1386 = vpop.f32.mrf.mxu0
        %1387 = vdwg.mxu0
        %1388 = vmatpush.bf16.msra.mxu0 %v1166
        %1389 = vmatpush.bf16.msra.mxu0 %v1162
        %1390 = vmatpush.bf16.msra.mxu0 %v1158
        %1391 = vmatpush.bf16.msra.mxu0 %v1154
        %1392 = vmatpush.bf16.msra.mxu0 %v1150
        %1393 = vmatpush.bf16.msra.mxu0 %v1146
        %1394 = vmatpush.bf16.msra.mxu0 %v1142
        %1395 = vmatpush.bf16.msra.mxu0 %v1138
        %1396 = vmatmul.bf16.gmra.mxu0 %v518
        %v1397 = vpop.f32.mrf.mxu0
        %v1398 = vadd.f32 %v1385, %v1397
        %v1399 = vpop.f32.mrf.mxu0
        %1400 = vdwg.mxu0
        %1401 = vmatpush.bf16.msra.mxu0 %v1071
        %1402 = vmatpush.bf16.msra.mxu0 %v1067
        %1403 = vmatpush.bf16.msra.mxu0 %v1063
        %1404 = vmatpush.bf16.msra.mxu0 %v1059
        %1405 = vmatpush.bf16.msra.mxu0 %v1055
        %1406 = vmatpush.bf16.msra.mxu0 %v1051
        %1407 = vmatpush.bf16.msra.mxu0 %v1047
        %1408 = vmatpush.bf16.msra.mxu0 %v1043
        %1409 = vmatmul.bf16.gmra.mxu0 %v515
        %v1410 = vpop.f32.mrf.mxu0
        %v1411 = vadd.f32 %v651, %v1410
        %v1412 = vpop.f32.mrf.mxu0
        %1413 = vdwg.mxu0
        %1414 = vmatpush.bf16.msra.mxu0 %v1103
        %1415 = vmatpush.bf16.msra.mxu0 %v1099
        %1416 = vmatpush.bf16.msra.mxu0 %v1095
        %1417 = vmatpush.bf16.msra.mxu0 %v1091
        %1418 = vmatpush.bf16.msra.mxu0 %v1087
        %1419 = vmatpush.bf16.msra.mxu0 %v1083
        %1420 = vmatpush.bf16.msra.mxu0 %v1079
        %1421 = vmatpush.bf16.msra.mxu0 %v1075
        %1422 = vmatmul.bf16.gmra.mxu0 %v516
        %v1423 = vpop.f32.mrf.mxu0
        %v1424 = vadd.f32 %v1411, %v1423
        %v1425 = vpop.f32.mrf.mxu0
        %1426 = vdwg.mxu0
        %1427 = vmatpush.bf16.msra.mxu0 %v1135
        %1428 = vmatpush.bf16.msra.mxu0 %v1131
        %1429 = vmatpush.bf16.msra.mxu0 %v1127
        %1430 = vmatpush.bf16.msra.mxu0 %v1123
        %1431 = vmatpush.bf16.msra.mxu0 %v1119
        %1432 = vmatpush.bf16.msra.mxu0 %v1115
        %1433 = vmatpush.bf16.msra.mxu0 %v1111
        %1434 = vmatpush.bf16.msra.mxu0 %v1107
        %1435 = vmatmul.bf16.gmra.mxu0 %v517
        %v1436 = vpop.f32.mrf.mxu0
        %v1437 = vadd.f32 %v1424, %v1436
        %v1438 = vpop.f32.mrf.mxu0
        %1439 = vdwg.mxu0
        %1440 = vmatpush.bf16.msra.mxu0 %v1167
        %1441 = vmatpush.bf16.msra.mxu0 %v1163
        %1442 = vmatpush.bf16.msra.mxu0 %v1159
        %1443 = vmatpush.bf16.msra.mxu0 %v1155
        %1444 = vmatpush.bf16.msra.mxu0 %v1151
        %1445 = vmatpush.bf16.msra.mxu0 %v1147
        %1446 = vmatpush.bf16.msra.mxu0 %v1143
        %1447 = vmatpush.bf16.msra.mxu0 %v1139
        %1448 = vmatmul.bf16.gmra.mxu0 %v518
        %v1449 = vpop.f32.mrf.mxu0
        %v1450 = vadd.f32 %v1437, %v1449
        %v1451 = vpop.f32.mrf.mxu0
        %1452 = vdwg.mxu0
        %1453 = vmatpush.bf16.msra.mxu0 %v1072
        %1454 = vmatpush.bf16.msra.mxu0 %v1068
        %1455 = vmatpush.bf16.msra.mxu0 %v1064
        %1456 = vmatpush.bf16.msra.mxu0 %v1060
        %1457 = vmatpush.bf16.msra.mxu0 %v1056
        %1458 = vmatpush.bf16.msra.mxu0 %v1052
        %1459 = vmatpush.bf16.msra.mxu0 %v1048
        %1460 = vmatpush.bf16.msra.mxu0 %v1044
        %1461 = vmatmul.bf16.gmra.mxu0 %v515
        %v1462 = vpop.f32.mrf.mxu0
        %v1463 = vadd.f32 %v652, %v1462
        %v1464 = vpop.f32.mrf.mxu0
        %1465 = vdwg.mxu0
        %1466 = vmatpush.bf16.msra.mxu0 %v1104
        %1467 = vmatpush.bf16.msra.mxu0 %v1100
        %1468 = vmatpush.bf16.msra.mxu0 %v1096
        %1469 = vmatpush.bf16.msra.mxu0 %v1092
        %1470 = vmatpush.bf16.msra.mxu0 %v1088
        %1471 = vmatpush.bf16.msra.mxu0 %v1084
        %1472 = vmatpush.bf16.msra.mxu0 %v1080
        %1473 = vmatpush.bf16.msra.mxu0 %v1076
        %1474 = vmatmul.bf16.gmra.mxu0 %v516
        %v1475 = vpop.f32.mrf.mxu0
        %v1476 = vadd.f32 %v1463, %v1475
        %v1477 = vpop.f32.mrf.mxu0
        %1478 = vdwg.mxu0
        %1479 = vmatpush.bf16.msra.mxu0 %v1136
        %1480 = vmatpush.bf16.msra.mxu0 %v1132
        %1481 = vmatpush.bf16.msra.mxu0 %v1128
        %1482 = vmatpush.bf16.msra.mxu0 %v1124
        %1483 = vmatpush.bf16.msra.mxu0 %v1120
        %1484 = vmatpush.bf16.msra.mxu0 %v1116
        %1485 = vmatpush.bf16.msra.mxu0 %v1112
        %1486 = vmatpush.bf16.msra.mxu0 %v1108
        %1487 = vmatmul.bf16.gmra.mxu0 %v517
        %v1488 = vpop.f32.mrf.mxu0
        %v1489 = vadd.f32 %v1476, %v1488
        %v1490 = vpop.f32.mrf.mxu0
        %1491 = vdwg.mxu0
        %1492 = vmatpush.bf16.msra.mxu0 %v1168
        %1493 = vmatpush.bf16.msra.mxu0 %v1164
        %1494 = vmatpush.bf16.msra.mxu0 %v1160
        %1495 = vmatpush.bf16.msra.mxu0 %v1156
        %1496 = vmatpush.bf16.msra.mxu0 %v1152
        %1497 = vmatpush.bf16.msra.mxu0 %v1148
        %1498 = vmatpush.bf16.msra.mxu0 %v1144
        %1499 = vmatpush.bf16.msra.mxu0 %v1140
        %1500 = vmatmul.bf16.gmra.mxu0 %v518
        %v1501 = vpop.f32.mrf.mxu0
        %v1502 = vadd.f32 %v1489, %v1501
        %v1503 = vpop.f32.mrf.mxu0
        %1504 = vdwg.mxu0
        %v1505 = vmax.f32 %v1346, 0.0
        %v1506 = vmax.f32 %v1398, 0.0
        %v1507 = vmax.f32 %v1450, 0.0
        %v1508 = vmax.f32 %v1502, 0.0
        %v1509 = vpack.c.bf16 %v1505, %v1505
        %v1510 = vpack.c.bf16 %v1506, %v1506
        %v1511 = vpack.c.bf16 %v1507, %v1507
        %v1512 = vpack.c.bf16 %v1508, %v1508
        %v1513 = vld [vmem:[#allocation12] sm:$0xf]
        %v1514 = vld [vmem:[#allocation12 + $0x4] sm:$0xf]
        %v1515 = vld [vmem:[#allocation12 + $0x8] sm:$0xf]
        %v1516 = vld [vmem:[#allocation12 + $0xc] sm:$0xf]
        %v1517 = vld [vmem:[#allocation12 + $0x10] sm:$0xf]
        %v1518 = vld [vmem:[#allocation12 + $0x14] sm:$0xf]
        %v1519 = vld [vmem:[#allocation12 + $0x18] sm:$0xf]
        %v1520 = vld [vmem:[#allocation12 + $0x1c] sm:$0xf]
        %v1521 = vld [vmem:[#allocation12 + $0x20] sm:$0xf]
        %v1522 = vld [vmem:[#allocation12 + $0x24] sm:$0xf]
        %v1523 = vld [vmem:[#allocation12 + $0x28] sm:$0xf]
        %v1524 = vld [vmem:[#allocation12 + $0x2c] sm:$0xf]
        %v1525 = vld [vmem:[#allocation12 + $0x30] sm:$0xf]
        %v1526 = vld [vmem:[#allocation12 + $0x34] sm:$0xf]
        %v1527 = vld [vmem:[#allocation12 + $0x38] sm:$0xf]
        %v1528 = vld [vmem:[#allocation12 + $0x3c] sm:$0xf]
        %v1529 = vld [vmem:[#allocation12 + $0x40] sm:$0xf]
        %v1530 = vld [vmem:[#allocation12 + $0x44] sm:$0xf]
        %v1531 = vld [vmem:[#allocation12 + $0x48] sm:$0xf]
        %v1532 = vld [vmem:[#allocation12 + $0x4c] sm:$0xf]
        %v1533 = vld [vmem:[#allocation12 + $0x50] sm:$0xf]
        %v1534 = vld [vmem:[#allocation12 + $0x54] sm:$0xf]
        %v1535 = vld [vmem:[#allocation12 + $0x58] sm:$0xf]
        %v1536 = vld [vmem:[#allocation12 + $0x5c] sm:$0xf]
        %v1537 = vld [vmem:[#allocation12 + $0x60] sm:$0xf]
        %v1538 = vld [vmem:[#allocation12 + $0x64] sm:$0xf]
        %v1539 = vld [vmem:[#allocation12 + $0x68] sm:$0xf]
        %v1540 = vld [vmem:[#allocation12 + $0x6c] sm:$0xf]
        %v1541 = vld [vmem:[#allocation12 + $0x70] sm:$0xf]
        %v1542 = vld [vmem:[#allocation12 + $0x74] sm:$0xf]
        %v1543 = vld [vmem:[#allocation12 + $0x78] sm:$0xf]
        %v1544 = vld [vmem:[#allocation12 + $0x7c] sm:$0xf]
        %v1545 = vld [vmem:[#allocation12 + $0x80] sm:$0xf]
        %v1546 = vld [vmem:[#allocation12 + $0x84] sm:$0xf]
        %v1547 = vld [vmem:[#allocation12 + $0x88] sm:$0xf]
        %v1548 = vld [vmem:[#allocation12 + $0x8c] sm:$0xf]
        %v1549 = vld [vmem:[#allocation12 + $0x90] sm:$0xf]
        %v1550 = vld [vmem:[#allocation12 + $0x94] sm:$0xf]
        %v1551 = vld [vmem:[#allocation12 + $0x98] sm:$0xf]
        %v1552 = vld [vmem:[#allocation12 + $0x9c] sm:$0xf]
        %v1553 = vld [vmem:[#allocation12 + $0xa0] sm:$0xf]
        %v1554 = vld [vmem:[#allocation12 + $0xa4] sm:$0xf]
        %v1555 = vld [vmem:[#allocation12 + $0xa8] sm:$0xf]
        %v1556 = vld [vmem:[#allocation12 + $0xac] sm:$0xf]
        %v1557 = vld [vmem:[#allocation12 + $0xb0] sm:$0xf]
        %v1558 = vld [vmem:[#allocation12 + $0xb4] sm:$0xf]
        %v1559 = vld [vmem:[#allocation12 + $0xb8] sm:$0xf]
        %v1560 = vld [vmem:[#allocation12 + $0xbc] sm:$0xf]
        %v1561 = vld [vmem:[#allocation12 + $0xc0] sm:$0xf]
        %v1562 = vld [vmem:[#allocation12 + $0xc4] sm:$0xf]
        %v1563 = vld [vmem:[#allocation12 + $0xc8] sm:$0xf]
        %v1564 = vld [vmem:[#allocation12 + $0xcc] sm:$0xf]
        %v1565 = vld [vmem:[#allocation12 + $0xd0] sm:$0xf]
        %v1566 = vld [vmem:[#allocation12 + $0xd4] sm:$0xf]
        %v1567 = vld [vmem:[#allocation12 + $0xd8] sm:$0xf]
        %v1568 = vld [vmem:[#allocation12 + $0xdc] sm:$0xf]
        %v1569 = vld [vmem:[#allocation12 + $0xe0] sm:$0xf]
        %v1570 = vld [vmem:[#allocation12 + $0xe4] sm:$0xf]
        %v1571 = vld [vmem:[#allocation12 + $0xe8] sm:$0xf]
        %v1572 = vld [vmem:[#allocation12 + $0xec] sm:$0xf]
        %v1573 = vld [vmem:[#allocation12 + $0xf0] sm:$0xf]
        %v1574 = vld [vmem:[#allocation12 + $0xf4] sm:$0xf]
        %v1575 = vld [vmem:[#allocation12 + $0xf8] sm:$0xf]
        %v1576 = vld [vmem:[#allocation12 + $0xfc] sm:$0xf]
        %v1577 = vld [vmem:[%s6] sm:$0x1]
        %v1579 = vperm.slane %v1577, 0
        %v1645 = vunpack.c.l.b16 %v1513
        %v1646 = vunpack.c.l.b16 %v1514
        %v1647 = vunpack.c.l.b16 %v1515
        %v1648 = vunpack.c.l.b16 %v1516
        %v1649 = vunpack.c.l.b16 %v1517
        %v1650 = vunpack.c.l.b16 %v1518
        %v1651 = vunpack.c.l.b16 %v1519
        %v1652 = vunpack.c.l.b16 %v1520
        %v1653 = vunpack.c.l.b16 %v1521
        %v1654 = vunpack.c.l.b16 %v1522
        %v1655 = vunpack.c.l.b16 %v1523
        %v1656 = vunpack.c.l.b16 %v1524
        %v1657 = vunpack.c.l.b16 %v1525
        %v1658 = vunpack.c.l.b16 %v1526
        %v1659 = vunpack.c.l.b16 %v1527
        %v1660 = vunpack.c.l.b16 %v1528
        %v1661 = vunpack.c.l.b16 %v1529
        %v1662 = vunpack.c.l.b16 %v1530
        %v1663 = vunpack.c.l.b16 %v1531
        %v1664 = vunpack.c.l.b16 %v1532
        %v1665 = vunpack.c.l.b16 %v1533
        %v1666 = vunpack.c.l.b16 %v1534
        %v1667 = vunpack.c.l.b16 %v1535
        %v1668 = vunpack.c.l.b16 %v1536
        %v1669 = vunpack.c.l.b16 %v1537
        %v1670 = vunpack.c.l.b16 %v1538
        %v1671 = vunpack.c.l.b16 %v1539
        %v1672 = vunpack.c.l.b16 %v1540
        %v1673 = vunpack.c.l.b16 %v1541
        %v1674 = vunpack.c.l.b16 %v1542
        %v1675 = vunpack.c.l.b16 %v1543
        %v1676 = vunpack.c.l.b16 %v1544
        %v1677 = vunpack.c.l.b16 %v1545
        %v1678 = vunpack.c.l.b16 %v1546
        %v1679 = vunpack.c.l.b16 %v1547
        %v1680 = vunpack.c.l.b16 %v1548
        %v1681 = vunpack.c.l.b16 %v1549
        %v1682 = vunpack.c.l.b16 %v1550
        %v1683 = vunpack.c.l.b16 %v1551
        %v1684 = vunpack.c.l.b16 %v1552
        %v1685 = vunpack.c.l.b16 %v1553
        %v1686 = vunpack.c.l.b16 %v1554
        %v1687 = vunpack.c.l.b16 %v1555
        %v1688 = vunpack.c.l.b16 %v1556
        %v1689 = vunpack.c.l.b16 %v1557
        %v1690 = vunpack.c.l.b16 %v1558
        %v1691 = vunpack.c.l.b16 %v1559
        %v1692 = vunpack.c.l.b16 %v1560
        %v1693 = vunpack.c.l.b16 %v1561
        %v1694 = vunpack.c.l.b16 %v1562
        %v1695 = vunpack.c.l.b16 %v1563
        %v1696 = vunpack.c.l.b16 %v1564
        %v1697 = vunpack.c.l.b16 %v1565
        %v1698 = vunpack.c.l.b16 %v1566
        %v1699 = vunpack.c.l.b16 %v1567
        %v1700 = vunpack.c.l.b16 %v1568
        %v1701 = vunpack.c.l.b16 %v1569
        %v1702 = vunpack.c.l.b16 %v1570
        %v1703 = vunpack.c.l.b16 %v1571
        %v1704 = vunpack.c.l.b16 %v1572
        %v1705 = vunpack.c.l.b16 %v1573
        %v1706 = vunpack.c.l.b16 %v1574
        %v1707 = vunpack.c.l.b16 %v1575
        %v1708 = vunpack.c.l.b16 %v1576
        %v1709 = vpack.c.b16 %v1646, %v1645
        %v1710 = vpack.c.b16 %v1648, %v1647
        %v1711 = vpack.c.b16 %v1650, %v1649
        %v1712 = vpack.c.b16 %v1652, %v1651
        %v1713 = vpack.c.b16 %v1654, %v1653
        %v1714 = vpack.c.b16 %v1656, %v1655
        %v1715 = vpack.c.b16 %v1658, %v1657
        %v1716 = vpack.c.b16 %v1660, %v1659
        %v1717 = vpack.c.b16 %v1662, %v1661
        %v1718 = vpack.c.b16 %v1664, %v1663
        %v1719 = vpack.c.b16 %v1666, %v1665
        %v1720 = vpack.c.b16 %v1668, %v1667
        %v1721 = vpack.c.b16 %v1670, %v1669
        %v1722 = vpack.c.b16 %v1672, %v1671
        %v1723 = vpack.c.b16 %v1674, %v1673
        %v1724 = vpack.c.b16 %v1676, %v1675
        %v1725 = vpack.c.b16 %v1678, %v1677
        %v1726 = vpack.c.b16 %v1680, %v1679
        %v1727 = vpack.c.b16 %v1682, %v1681
        %v1728 = vpack.c.b16 %v1684, %v1683
        %v1729 = vpack.c.b16 %v1686, %v1685
        %v1730 = vpack.c.b16 %v1688, %v1687
        %v1731 = vpack.c.b16 %v1690, %v1689
        %v1732 = vpack.c.b16 %v1692, %v1691
        %v1733 = vpack.c.b16 %v1694, %v1693
        %v1734 = vpack.c.b16 %v1696, %v1695
        %v1735 = vpack.c.b16 %v1698, %v1697
        %v1736 = vpack.c.b16 %v1700, %v1699
        %v1737 = vpack.c.b16 %v1702, %v1701
        %v1738 = vpack.c.b16 %v1704, %v1703
        %v1739 = vpack.c.b16 %v1706, %v1705
        %v1740 = vpack.c.b16 %v1708, %v1707
        %1773 = vmatpush.bf16.msra.mxu0 %v1716
        %1774 = vmatpush.bf16.msra.mxu0 %v1715
        %1775 = vmatpush.bf16.msra.mxu0 %v1714
        %1776 = vmatpush.bf16.msra.mxu0 %v1713
        %1777 = vmatpush.bf16.msra.mxu0 %v1712
        %1778 = vmatpush.bf16.msra.mxu0 %v1711
        %1779 = vmatpush.bf16.msra.mxu0 %v1710
        %1780 = vmatpush.bf16.msra.mxu0 %v1709
        %1781 = vmatmul.bf16.gmra.mxu0 %v1509
        %v1782 = vpop.f32.mrf.mxu0
        %v1783 = vadd.f32 %v1579, %v1782
        %v1784 = vpop.f32.mrf.mxu0
        %1785 = vdwg.mxu0
        %1786 = vmatpush.bf16.msra.mxu0 %v1724
        %1787 = vmatpush.bf16.msra.mxu0 %v1723
        %1788 = vmatpush.bf16.msra.mxu0 %v1722
        %1789 = vmatpush.bf16.msra.mxu0 %v1721
        %1790 = vmatpush.bf16.msra.mxu0 %v1720
        %1791 = vmatpush.bf16.msra.mxu0 %v1719
        %1792 = vmatpush.bf16.msra.mxu0 %v1718
        %1793 = vmatpush.bf16.msra.mxu0 %v1717
        %1794 = vmatmul.bf16.gmra.mxu0 %v1510
        %v1795 = vpop.f32.mrf.mxu0
        %v1796 = vadd.f32 %v1783, %v1795
        %v1797 = vpop.f32.mrf.mxu0
        %1798 = vdwg.mxu0
        %1799 = vmatpush.bf16.msra.mxu0 %v1732
        %1800 = vmatpush.bf16.msra.mxu0 %v1731
        %1801 = vmatpush.bf16.msra.mxu0 %v1730
        %1802 = vmatpush.bf16.msra.mxu0 %v1729
        %1803 = vmatpush.bf16.msra.mxu0 %v1728
        %1804 = vmatpush.bf16.msra.mxu0 %v1727
        %1805 = vmatpush.bf16.msra.mxu0 %v1726
        %1806 = vmatpush.bf16.msra.mxu0 %v1725
        %1807 = vmatmul.bf16.gmra.mxu0 %v1511
        %v1808 = vpop.f32.mrf.mxu0
        %v1809 = vadd.f32 %v1796, %v1808
        %v1810 = vpop.f32.mrf.mxu0
        %1811 = vdwg.mxu0
        %1812 = vmatpush.bf16.msra.mxu0 %v1740
        %1813 = vmatpush.bf16.msra.mxu0 %v1739
        %1814 = vmatpush.bf16.msra.mxu0 %v1738
        %1815 = vmatpush.bf16.msra.mxu0 %v1737
        %1816 = vmatpush.bf16.msra.mxu0 %v1736
        %1817 = vmatpush.bf16.msra.mxu0 %v1735
        %1818 = vmatpush.bf16.msra.mxu0 %v1734
        %1819 = vmatpush.bf16.msra.mxu0 %v1733
        %1820 = vmatmul.bf16.gmra.mxu0 %v1512
        %v1821 = vpop.f32.mrf.mxu0
        %v1822 = vadd.f32 %v1809, %v1821
        %v1823 = vpop.f32.mrf.mxu0
        %1824 = vdwg.mxu0
        %v1825 = vxor.u32 %v1822, 2147483648
        %v1826 = vmul.f32 %v1825, 1.442695
        %v1827 = vpow.pop %v1826
        %v1828 = vadd.f32 %v1827, 1.0
        %v1829 = vrcp.pop %v1828
        %v1830 = vmul.f32 %v1828, %v1829
        %v1831 = vsub.f32 1.0, %v1830
        %v1832 = vmul.f32 %v1829, %v1831
        %v1833 = vadd.f32 %v1829, %v1832
        %vm1834 = vweird.f32 %v1828
        %vm1835 = vweird.f32 %v1829
        %vm1836 = vmor %vm1834, %vm1835
        %v1837 = vsel %vm1836, %v1829, %v1833
        %v1838 = vand.u32 2147483647, %v1828
        %vm1839 = vcmp.eq.f32.partialorder %v1838, 8.507059e+37
        %v1840 = vand.u32 %v1828, 2147483648
        %v1841 = vor.u32 1.1754944e-38, %v1840
        %v1842 = vsel %vm1839, %v1841, %v1837
        %v1843 = vmul.f32 1.0, %v1842
        %v1844 = vld [vmem:[#allocation2] sm:$0x1]
        %v1845 = vrot.slane %v1843, 4
        %v1846 = vadd.f32 %v1843, %v1845
        %v1847 = vrot.slane %v1846, 2
        %v1848 = vadd.f32 %v1846, %v1847
        %v1849 = vrot.slane %v1848, 1
        %v1850 = vadd.f32 %v1848, %v1849
        %v1851 = vadd.f32 %v1844, %v1850
        %1852 = vst [vmem:[#allocation2] sm:$0x1] %v1851
        // Predicated region
        $region77: #{tpu_custom_call.1} parent=47 // pred_check
          %p1853 = pneg %p390
        $region78: #{tpu_custom_call.1} parent=47 // pred_check_branch
          %1855 = sbr.rel (%p1853) target = $region80
        $region79: #{tpu_custom_call.1} parent=47 // pred_region
          %v1856 = vld [vmem:[#allocation2] sm:$0x1]
          %v1857 = vmul.f32 %v1856, 0.125
          %1858 = vst [vmem:[%s388] sm:$0x1] %v1857
        $region80: #{tpu_custom_call.1} parent=47 // pred_fallthru
          _
        %s1859 = sand.u32 %s201, 1
        %s1860 = scalar_lea.sflag [#allocation5], %s1859
        %s1861 = sand.u32 %s201, 1
        %s1862 = scalar_lea.vmem [#allocation14], %s1861
        // Predicated region
        $region81: #{tpu_custom_call.1} parent=47 // pred_check
          %p1863 = pneg %p211
        $region82: #{tpu_custom_call.1} parent=47 // pred_check_branch
          %1865 = sbr.rel (%p1863) target = $region84
        $region83: #{tpu_custom_call.1} parent=47 // pred_region
          %1867 = vsyncadd %s1860, 0
          %s1868 = scalar_lea.hbm %s7, %s31
          %s1870 = sshll.u32 %s1862, 4
          %s1871 = int_to_ptr.vmem [resolvable:$true] %s1870
          %s1872 = sshll.u32 %s1868, 4
          %s1873 = int_to_ptr.hbm [resolvable:$true] %s1872
          %1875 = dma.vmem_to_hbm [thread:$0]  %s1871, 16, %s1873, %s1860
        $region84: #{tpu_custom_call.1} parent=47 // pred_fallthru
          _
      $region48: #{tpu_custom_call.1} parent=5 // pred_fallthru
        _
      %p1876 = scmp.le.s32.totalorder 2, %s22
      // Predicated region
      $region85: #{tpu_custom_call.1} parent=5 // pred_check
        %p1877 = pneg %p1876
      $region86: #{tpu_custom_call.1} parent=5 // pred_check_branch
        %1879 = sbr.rel (%p1877) target = $region88
      $region87: #{tpu_custom_call.1} parent=5 // pred_region
        %s1880 = ssub.s32 %s22, 2
        // Predicated region
        $region89: #{tpu_custom_call.1} parent=87 // pred_check
          %p1881 = pneg %p217
        $region90: #{tpu_custom_call.1} parent=87 // pred_check_branch
          %1883 = sbr.rel (%p1881) target = $region92
        $region91: #{tpu_custom_call.1} parent=87 // pred_region
          %s1884 = sand.u32 %s202, 1
          %s1885 = scalar_lea.sflag [#allocation5], %s1884
          %s1886 = sand.u32 %s202, 1
          %s1887 = scalar_lea.vmem [#allocation14], %s1886
          %1889 = dma.done %s1885, 16
        $region92: #{tpu_custom_call.1} parent=87 // pred_fallthru
          _
      $region88: #{tpu_custom_call.1} parent=5 // pred_fallthru
        _
    $region6: #{tpu_custom_call.1} parent=1 // loop_footer
      %s26 = sadd.s32 1, %s22
    $region7: #{tpu_custom_call.1} parent=1 // loop_footer_branch
      %21 = sbr.rel target = $region3
    $region8: #{tpu_custom_call.1} parent=1 // loop_exit
      _
    %1890 = vsyncpa [#allocation4], 1
    %s1891 = scalar_lea.sflag [#allocation4], 1
    %1892 = vsyncpa %s1891, 1
    %1893 = vsyncpa [#allocation7], 1
    %1894 = vsyncpa [#allocation10], 1
    %1895 = vsyncpa [#allocation13], 1
    %1896 = vsyncpa [#allocation5], 1
    %s1897 = scalar_lea.sflag [#allocation5], 1
    %1898 = vsyncpa %s1897, 1

</llo_original>
